<compile_context>
chip_gen: v7x
topology: tpu7x:2x2x1
jax: 0.10.0
libtpu: 0.0.40
codegen_flags: <defaults>
</compile_context>

<pallas_src>
import jax
import jax.numpy as jnp
import numpy as np
from jax import lax
from jax.experimental import pallas as pl
from jax.experimental.pallas import tpu as pltpu

LANE = 128


# ----------------------------- Pallas kernel ------------------------------ #

def _gru_gates(gi, gh, h, H):
    """PyTorch-order (r, z, n) GRU gate math; r/z sigmoids fused into one call."""
    rz = jax.nn.sigmoid(gi[:, :2 * H] + gh[:, :2 * H])
    r = rz[:, :H]
    z = rz[:, H:]
    n = jnp.tanh(gi[:, 2 * H:] + r * gh[:, 2 * H:])
    return (1.0 - z) * n + z * h


def transactions_rnn_kernel(x_ref,
                            wi_f_ref, wh_f_ref, bi_f_ref, bh_f_ref,
                            wi_b_ref, wh_b_ref, bi_b_ref, bh_b_ref,
                            w1_ref, b1_ref, w2_ref, b2_ref,
                            out_ref,
                            gif_ref, gib_ref):
    S, tB, E = x_ref.shape
    H = wh_f_ref.shape[0]

    # ---- hoisted input projection (not on the serial chain) --------------
    # One large matmul per direction with M = S*tB; bf16 operands, f32 acc.
    x2d = x_ref[...].reshape(S * tB, E).astype(jnp.bfloat16)
    gif_ref[...] = (
        jnp.dot(x2d, wi_f_ref[...], preferred_element_type=jnp.float32)
        + bi_f_ref[...])
    gib_ref[...] = (
        jnp.dot(x2d, wi_b_ref[...], preferred_element_type=jnp.float32)
        + bi_b_ref[...])

    wh_f = wh_f_ref[...]
    wh_b = wh_b_ref[...]
    bh_f = bh_f_ref[...]
    bh_b = bh_b_ref[...]

    zeros = jnp.zeros((tB, H), jnp.float32)
    ninf = jnp.full((tB, H), -jnp.inf, jnp.float32)

    # ---- fused forward + backward recurrence (single unrolled loop) ------
    def body(t, carry):
        h_f, h_b, mx_f, mx_b, sm_f, sm_b = carry
        off_f = pl.multiple_of(t * tB, tB)
        off_b = pl.multiple_of((S - 1 - t) * tB, tB)
        gi_f = gif_ref[pl.ds(off_f, tB), :]
        gi_b = gib_ref[pl.ds(off_b, tB), :]
        gh_f = jnp.dot(h_f, wh_f, preferred_element_type=jnp.float32) + bh_f
        gh_b = jnp.dot(h_b, wh_b, preferred_element_type=jnp.float32) + bh_b
        h_f = _gru_gates(gi_f, gh_f, h_f, H)
        h_b = _gru_gates(gi_b, gh_b, h_b, H)
        return (h_f, h_b,
                jnp.maximum(mx_f, h_f), jnp.maximum(mx_b, h_b),
                sm_f + h_f, sm_b + h_b)

    _, _, mx_f, mx_b, sm_f, sm_b = lax.fori_loop(
        0, S, body, (zeros, zeros, ninf, ninf, zeros, zeros), unroll=True)

    # states[:, t, :] = concat(h_fwd_t, h_bwd_t); max / avg pooling over t
    # decomposes per direction, so no full state history is needed.
    inv_s = jnp.float32(1.0 / S)
    combined = jnp.concatenate(
        [mx_f, mx_b, sm_f * inv_s, sm_b * inv_s], axis=-1)      # [tB, 4H]

    hidden = jnp.maximum(
        jnp.dot(combined, w1_ref[...], preferred_element_type=jnp.float32)
        + b1_ref[...], 0.0)
    # w2 is lane-padded to 128 columns (real logit in column 0) so the final
    # store is a full-width unmasked vst rather than a 1-lane masked store.
    out_ref[...] = (
        jnp.dot(hidden, w2_ref[...], preferred_element_type=jnp.float32)
        + b2_ref[...])


# ------------------------------- wrapper ----------------------------------- #

def transactions_rnn_forward(cat_idx, params):
    """cat_idx: int32 [F, B, S] (one row of indices per categorical feature)."""
    embs = [jnp.take(tbl, cat_idx[i], axis=0)
            for i, tbl in enumerate(params["emb"])]          # each [B, S, E_i]
    x = jnp.concatenate(embs, axis=-1).astype(jnp.float32)   # [B, S, E]
    # Dropout2d(p=0.05) is identity at inference time.
    # TODO(synk): training-mode spatial (channel) dropout not implemented.
    B, S, E = x.shape
    H = params["w_hh_f"].shape[1]
    C = params["w1"].shape[0]

    # Time-major layout [S, B, E]; pad batch to a sublane-friendly tile.
    if B <= LANE:
        B_pad = max(8, -(-B // 8) * 8)
        tB = B_pad
    else:
        tB = LANE
        B_pad = -(-B // tB) * tB
    x_sbe = jnp.transpose(x, (1, 0, 2))                       # [S, B, E]
    if B_pad != B:
        x_sbe = jnp.pad(x_sbe, ((0, 0), (0, B_pad - B), (0, 0)))

    f32, bf16 = jnp.float32, jnp.bfloat16

    def t32(w):  # PyTorch [out, in] -> kernel [in, out], f32
        return jnp.asarray(w, f32).T

    # Input-projection weights in bf16 (feed the big hoisted matmul, which is
    # not on the serial chain). Recurrent + classifier weights stay f32: they
    # are tiny here and keep the serial GRU chain numerically tight.
    wi_f = t32(params["w_ih_f"]).astype(bf16)
    wi_b = t32(params["w_ih_b"]).astype(bf16)
    wh_f = t32(params["w_hh_f"])
    wh_b = t32(params["w_hh_b"])
    bi_f = jnp.asarray(params["b_ih_f"], f32).reshape(1, -1)
    bh_f = jnp.asarray(params["b_hh_f"], f32).reshape(1, -1)
    bi_b = jnp.asarray(params["b_ih_b"], f32).reshape(1, -1)
    bh_b = jnp.asarray(params["b_hh_b"], f32).reshape(1, -1)
    w1 = t32(params["w1"])                                    # [4H, C]
    b1 = jnp.asarray(params["b1"], f32).reshape(1, -1)        # [1, C]
    # Lane-pad the final projection -> kernel writes a 128-lane-dense output.
    w2 = jnp.zeros((C, LANE), f32).at[:, 0].set(
        jnp.asarray(params["w2"], f32).reshape(-1))
    b2 = jnp.zeros((1, LANE), f32).at[0, 0].set(
        jnp.asarray(params["b2"], f32).reshape(-1)[0])

    args = (x_sbe, wi_f, wh_f, bi_f, bh_f, wi_b, wh_b, bi_b, bh_b,
            w1, b1, w2, b2)

    def full_spec(a):  # whole array resident, same block for every grid step
        n = a.ndim
        return pl.BlockSpec(a.shape, lambda i, n=n: (0,) * n)

    in_specs = ([pl.BlockSpec((S, tB, E), lambda i: (0, i, 0))]
                + [full_spec(a) for a in args[1:]])
    out_spec = pl.BlockSpec((tB, LANE), lambda i: (i, 0))

    out = pl.pallas_call(
        transactions_rnn_kernel,
        out_shape=jax.ShapeDtypeStruct((B_pad, LANE), f32),
        grid_spec=pltpu.PrefetchScalarGridSpec(
            num_scalar_prefetch=0,
            grid=(B_pad // tB,),
            in_specs=in_specs,
            out_specs=out_spec,
            scratch_shapes=[pltpu.VMEM((S * tB, 3 * H), f32),
                            pltpu.VMEM((S * tB, 3 * H), f32)]),
        compiler_params=pltpu.CompilerParams(
            dimension_semantics=("parallel",),
            vmem_limit_bytes=32 * 1024 * 1024),
    )(*args)
    return out[:B, :1]


# --------------------------- pure-JAX reference ---------------------------- #

def reference_forward(cat_idx, p):
    embs = [jnp.take(tbl, cat_idx[i], axis=0) for i, tbl in enumerate(p["emb"])]
    x = jnp.concatenate(embs, axis=-1).astype(jnp.float32)   # [B, S, E]
    B, S, _ = x.shape
    H = p["w_hh_f"].shape[1]

    def run_dir(wih, whh, bih, bhh, reverse):
        wi, wh = wih.T, whh.T
        xs = jnp.transpose(x, (1, 0, 2))
        if reverse:
            xs = xs[::-1]

        def step(h, x_t):
            gi = x_t @ wi + bih
            gh = h @ wh + bhh
            r = jax.nn.sigmoid(gi[:, :H] + gh[:, :H])
            z = jax.nn.sigmoid(gi[:, H:2 * H] + gh[:, H:2 * H])
            n = jnp.tanh(gi[:, 2 * H:] + r * gh[:, 2 * H:])
            h = (1.0 - z) * n + z * h
            return h, h

        _, hs = lax.scan(step, jnp.zeros((B, H), jnp.float32), xs)
        return hs[::-1] if reverse else hs                   # [S, B, H]

    hs_f = run_dir(p["w_ih_f"], p["w_hh_f"], p["b_ih_f"], p["b_hh_f"], False)
    hs_b = run_dir(p["w_ih_b"], p["w_hh_b"], p["b_ih_b"], p["b_hh_b"], True)
    states = jnp.concatenate([hs_f, hs_b], axis=-1).transpose(1, 0, 2)  # [B,S,2H]
    mx = states.max(axis=1)
    avg = states.sum(axis=1) / S
    comb = jnp.concatenate([mx, avg], axis=-1)
    h1 = jnp.maximum(comb @ p["w1"].T + p["b1"], 0.0)
    return h1 @ p["w2"].T + p["b2"]


# --------------------------------- main ------------------------------------ #

if __name__ == "__main__":
    # Small, module-consistent configuration.
    features = ["f0", "f1", "f2", "f3"]
    embedding_projections = {"f0": (10, 8), "f1": (20, 8), "f2": (8, 8), "f3": (12, 8)}
    F = len(features)
    B, S = 4, 8          # batch, sequence length
    H = 32               # rnn_units (hidden size per direction)
    C = 32               # top_classifier_units
    E = sum(embedding_projections[f][1] for f in features)   # 32

    key = jax.random.PRNGKey(0)
    keys = jax.random.split(key, 16)

    params = {
        # nn.Embedding(cardinality + 1, embed_size) per feature
        "emb": [0.1 * jax.random.normal(
                    keys[i],
                    (embedding_projections[f][0] + 1, embedding_projections[f][1]),
                    jnp.float32)
                for i, f in enumerate(features)],
        # bidirectional GRU, PyTorch parameter layout (gate order r, z, n)
        "w_ih_f": 0.1 * jax.random.normal(keys[4], (3 * H, E), jnp.float32),
        "w_hh_f": 0.1 * jax.random.normal(keys[5], (3 * H, H), jnp.float32),
        "b_ih_f": 0.1 * jax.random.normal(keys[6], (3 * H,), jnp.float32),
        "b_hh_f": 0.1 * jax.random.normal(keys[7], (3 * H,), jnp.float32),
        "w_ih_b": 0.1 * jax.random.normal(keys[8], (3 * H, E), jnp.float32),
        "w_hh_b": 0.1 * jax.random.normal(keys[9], (3 * H, H), jnp.float32),
        "b_ih_b": 0.1 * jax.random.normal(keys[10], (3 * H,), jnp.float32),
        "b_hh_b": 0.1 * jax.random.normal(keys[11], (3 * H,), jnp.float32),
        # top classifier: Linear(4H -> C), ReLU, Linear(C -> 1)
        "w1": 0.1 * jax.random.normal(keys[12], (C, 4 * H), jnp.float32),
        "b1": 0.1 * jax.random.normal(keys[13], (C,), jnp.float32),
        "w2": 0.1 * jax.random.normal(keys[14], (1, C), jnp.float32),
        "b2": 0.1 * jax.random.normal(keys[15], (1,), jnp.float32),
    }

    # Integer categorical features, one [B, S] slab per feature -> [F, B, S].
    idx_keys = jax.random.split(jax.random.PRNGKey(1), F)
    cat_idx = jnp.stack([
        jax.random.randint(idx_keys[i], (B, S), 0,
                           embedding_projections[f][0] + 1, dtype=jnp.int32)
        for i, f in enumerate(features)
    ], axis=0)

    logit = jax.block_until_ready(transactions_rnn_forward(cat_idx, params))
    ref = jax.block_until_ready(reference_forward(cat_idx, params))

    assert logit.shape == (B, 1), logit.shape
    np.testing.assert_allclose(np.asarray(logit), np.asarray(ref),
                               rtol=2e-2, atol=2e-2)
    print("KERNEL_OK")
</pallas_src>

<mosaic_0001>
module attributes {stable_mosaic.version = 11 : i64} {
  func.func @transactions_rnn_kernel(%arg0: i32, %arg1: memref<8x8x32xf32, #tpu.memory_space<vmem>>, %arg2: memref<32x96xbf16, #tpu.memory_space<vmem>>, %arg3: memref<32x96xf32, #tpu.memory_space<vmem>>, %arg4: memref<1x96xf32, #tpu.memory_space<vmem>>, %arg5: memref<1x96xf32, #tpu.memory_space<vmem>>, %arg6: memref<32x96xbf16, #tpu.memory_space<vmem>>, %arg7: memref<32x96xf32, #tpu.memory_space<vmem>>, %arg8: memref<1x96xf32, #tpu.memory_space<vmem>>, %arg9: memref<1x96xf32, #tpu.memory_space<vmem>>, %arg10: memref<128x32xf32, #tpu.memory_space<vmem>>, %arg11: memref<1x32xf32, #tpu.memory_space<vmem>>, %arg12: memref<32x128xf32, #tpu.memory_space<vmem>>, %arg13: memref<1x128xf32, #tpu.memory_space<vmem>>, %arg14: memref<8x128xf32, #tpu.memory_space<vmem>>, %arg15: memref<64x96xf32, #tpu.memory_space<vmem>>, %arg16: memref<64x96xf32, #tpu.memory_space<vmem>>) attributes {dimension_semantics = [#tpu.dimension_semantics<parallel>], iteration_bounds = array<i64: 1>, scalar_prefetch = 0 : i64, scratch_operands = 2 : i64, tpu.core_type = #tpu.core_type<tc>, window_params = [{transform_indices = @transform_0, window_bounds = array<i64: 8, 8, 32>}, {pipeline_mode = #tpu.pipeline_mode<synchronous>, transform_indices = @transform_1, window_bounds = array<i64: 32, 96>}, {pipeline_mode = #tpu.pipeline_mode<synchronous>, transform_indices = @transform_2, window_bounds = array<i64: 32, 96>}, {pipeline_mode = #tpu.pipeline_mode<synchronous>, transform_indices = @transform_3, window_bounds = array<i64: 1, 96>}, {pipeline_mode = #tpu.pipeline_mode<synchronous>, transform_indices = @transform_4, window_bounds = array<i64: 1, 96>}, {pipeline_mode = #tpu.pipeline_mode<synchronous>, transform_indices = @transform_5, window_bounds = array<i64: 32, 96>}, {pipeline_mode = #tpu.pipeline_mode<synchronous>, transform_indices = @transform_6, window_bounds = array<i64: 32, 96>}, {pipeline_mode = #tpu.pipeline_mode<synchronous>, transform_indices = @transform_7, window_bounds = array<i64: 1, 96>}, {pipeline_mode = #tpu.pipeline_mode<synchronous>, transform_indices = @transform_8, window_bounds = array<i64: 1, 96>}, {pipeline_mode = #tpu.pipeline_mode<synchronous>, transform_indices = @transform_9, window_bounds = array<i64: 128, 32>}, {pipeline_mode = #tpu.pipeline_mode<synchronous>, transform_indices = @transform_10, window_bounds = array<i64: 1, 32>}, {pipeline_mode = #tpu.pipeline_mode<synchronous>, transform_indices = @transform_11, window_bounds = array<i64: 32, 128>}, {pipeline_mode = #tpu.pipeline_mode<synchronous>, transform_indices = @transform_12, window_bounds = array<i64: 1, 128>}, {transform_indices = @transform_13, window_bounds = array<i64: 8, 128>}]} {
    %c0 = arith.constant 0 : index
    %c0_0 = arith.constant 0 : index
    %c0_1 = arith.constant 0 : index
    %0 = vector.load %arg1[%c0, %c0_0, %c0_1] : memref<8x8x32xf32, #tpu.memory_space<vmem>>, vector<8x8x32xf32>
    %1 = vector.shape_cast %0 : vector<8x8x32xf32> to vector<64x32xf32>
    %2 = arith.truncf %1 : vector<64x32xf32> to vector<64x32xbf16>
    %c0_2 = arith.constant 0 : index
    %c0_3 = arith.constant 0 : index
    %3 = vector.load %arg2[%c0_2, %c0_3] : memref<32x96xbf16, #tpu.memory_space<vmem>>, vector<32x96xbf16>
    %cst = arith.constant dense<0.000000e+00> : vector<64x96xf32>
    %4 = tpu.matmul %2, %3, %cst {dimension_numbers = #tpu.dot_dimension_numbers<[1], [0], [0], [1], [0, 0, 1, 1], [], []>} : vector<64x32xbf16>, vector<32x96xbf16>, vector<64x96xf32> -> vector<64x96xf32>
    %c0_4 = arith.constant 0 : index
    %c0_5 = arith.constant 0 : index
    %5 = vector.load %arg4[%c0_4, %c0_5] : memref<1x96xf32, #tpu.memory_space<vmem>>, vector<1x96xf32>
    %6 = vector.broadcast %5 : vector<1x96xf32> to vector<64x96xf32>
    %7 = arith.addf %4, %6 : vector<64x96xf32>
    %c0_6 = arith.constant 0 : index
    %c0_7 = arith.constant 0 : index
    %8 = vector.load %arg15[%c0_6, %c0_7] : memref<64x96xf32, #tpu.memory_space<vmem>>, vector<64x96xf32>
    tpu.vector_store %arg15[%c0_6, %c0_7], %7 {strides = array<i32>} : memref<64x96xf32, #tpu.memory_space<vmem>>, vector<64x96xf32>,
    %c0_8 = arith.constant 0 : index
    %c0_9 = arith.constant 0 : index
    %9 = vector.load %arg6[%c0_8, %c0_9] : memref<32x96xbf16, #tpu.memory_space<vmem>>, vector<32x96xbf16>
    %cst_10 = arith.constant dense<0.000000e+00> : vector<64x96xf32>
    %10 = tpu.matmul %2, %9, %cst_10 {dimension_numbers = #tpu.dot_dimension_numbers<[1], [0], [0], [1], [0, 0, 1, 1], [], []>} : vector<64x32xbf16>, vector<32x96xbf16>, vector<64x96xf32> -> vector<64x96xf32>
    %c0_11 = arith.constant 0 : index
    %c0_12 = arith.constant 0 : index
    %11 = vector.load %arg8[%c0_11, %c0_12] : memref<1x96xf32, #tpu.memory_space<vmem>>, vector<1x96xf32>
    %12 = vector.broadcast %11 : vector<1x96xf32> to vector<64x96xf32>
    %13 = arith.addf %10, %12 : vector<64x96xf32>
    %c0_13 = arith.constant 0 : index
    %c0_14 = arith.constant 0 : index
    %14 = vector.load %arg16[%c0_13, %c0_14] : memref<64x96xf32, #tpu.memory_space<vmem>>, vector<64x96xf32>
    tpu.vector_store %arg16[%c0_13, %c0_14], %13 {strides = array<i32>} : memref<64x96xf32, #tpu.memory_space<vmem>>, vector<64x96xf32>,
    %c0_15 = arith.constant 0 : index
    %c0_16 = arith.constant 0 : index
    %15 = vector.load %arg3[%c0_15, %c0_16] : memref<32x96xf32, #tpu.memory_space<vmem>>, vector<32x96xf32>
    %c0_17 = arith.constant 0 : index
    %c0_18 = arith.constant 0 : index
    %16 = vector.load %arg7[%c0_17, %c0_18] : memref<32x96xf32, #tpu.memory_space<vmem>>, vector<32x96xf32>
    %c0_19 = arith.constant 0 : index
    %c0_20 = arith.constant 0 : index
    %17 = vector.load %arg5[%c0_19, %c0_20] : memref<1x96xf32, #tpu.memory_space<vmem>>, vector<1x96xf32>
    %c0_21 = arith.constant 0 : index
    %c0_22 = arith.constant 0 : index
    %18 = vector.load %arg9[%c0_21, %c0_22] : memref<1x96xf32, #tpu.memory_space<vmem>>, vector<1x96xf32>
    %cst_23 = arith.constant 0.000000e+00 : f32
    %19 = vector.broadcast %cst_23 : f32 to vector<8x32xf32>
    %cst_24 = arith.constant 0xFF800000 : f32
    %20 = vector.broadcast %cst_24 : f32 to vector<8x32xf32>
    %c0_i32 = arith.constant 0 : i32
    %c8_i32 = arith.constant 8 : i32
    %21 = arith.muli %c0_i32, %c8_i32 : i32
    %22 = tpu.assume_multiple %21, 8 : i32
    %c7_i32 = arith.constant 7 : i32
    %23 = arith.subi %c7_i32, %c0_i32 : i32
    %c8_i32_25 = arith.constant 8 : i32
    %24 = arith.muli %23, %c8_i32_25 : i32
    %25 = tpu.assume_multiple %24, 8 : i32
    %26 = arith.index_cast %22 : i32 to index
    %c0_26 = arith.constant 0 : index
    %27 = vector.load %arg15[%26, %c0_26] : memref<64x96xf32, #tpu.memory_space<vmem>>, vector<8x96xf32>
    %28 = arith.index_cast %25 : i32 to index
    %c0_27 = arith.constant 0 : index
    %29 = vector.load %arg16[%28, %c0_27] : memref<64x96xf32, #tpu.memory_space<vmem>>, vector<8x96xf32>
    %cst_28 = arith.constant dense<0.000000e+00> : vector<8x96xf32>
    %30 = tpu.matmul %19, %15, %cst_28 {dimension_numbers = #tpu.dot_dimension_numbers<[1], [0], [0], [1], [0, 0, 1, 1], [], []>} : vector<8x32xf32>, vector<32x96xf32>, vector<8x96xf32> -> vector<8x96xf32>
    %31 = vector.broadcast %17 : vector<1x96xf32> to vector<8x96xf32>
    %32 = arith.addf %30, %31 : vector<8x96xf32>
    %cst_29 = arith.constant dense<0.000000e+00> : vector<8x96xf32>
    %33 = tpu.matmul %19, %16, %cst_29 {dimension_numbers = #tpu.dot_dimension_numbers<[1], [0], [0], [1], [0, 0, 1, 1], [], []>} : vector<8x32xf32>, vector<32x96xf32>, vector<8x96xf32> -> vector<8x96xf32>
    %34 = vector.broadcast %18 : vector<1x96xf32> to vector<8x96xf32>
    %35 = arith.addf %33, %34 : vector<8x96xf32>
    %36 = vector.extract_strided_slice %27 {offsets = [0, 0], sizes = [8, 64], strides = [1, 1]} : vector<8x96xf32> to vector<8x64xf32>
    %37 = vector.extract_strided_slice %32 {offsets = [0, 0], sizes = [8, 64], strides = [1, 1]} : vector<8x96xf32> to vector<8x64xf32>
    %38 = arith.addf %36, %37 : vector<8x64xf32>
    %39 = arith.negf %38 : vector<8x64xf32>
    %40 = math.exp %39 : vector<8x64xf32>
    %cst_30 = arith.constant 1.000000e+00 : f32
    %41 = vector.broadcast %cst_30 : f32 to vector<8x64xf32>
    %42 = arith.addf %41, %40 : vector<8x64xf32>
    %43 = arith.divf %41, %42 : vector<8x64xf32>
    %44 = vector.extract_strided_slice %43 {offsets = [0, 0], sizes = [8, 32], strides = [1, 1]} : vector<8x64xf32> to vector<8x32xf32>
    %45 = vector.extract_strided_slice %43 {offsets = [0, 32], sizes = [8, 32], strides = [1, 1]} : vector<8x64xf32> to vector<8x32xf32>
    %46 = vector.extract_strided_slice %27 {offsets = [0, 64], sizes = [8, 32], strides = [1, 1]} : vector<8x96xf32> to vector<8x32xf32>
    %47 = vector.extract_strided_slice %32 {offsets = [0, 64], sizes = [8, 32], strides = [1, 1]} : vector<8x96xf32> to vector<8x32xf32>
    %48 = arith.mulf %44, %47 : vector<8x32xf32>
    %49 = arith.addf %46, %48 : vector<8x32xf32>
    %50 = math.tanh %49 : vector<8x32xf32>
    %cst_31 = arith.constant 1.000000e+00 : f32
    %51 = vector.broadcast %cst_31 : f32 to vector<8x32xf32>
    %52 = arith.subf %51, %45 : vector<8x32xf32>
    %53 = arith.mulf %52, %50 : vector<8x32xf32>
    %54 = arith.mulf %45, %19 : vector<8x32xf32>
    %55 = arith.addf %53, %54 : vector<8x32xf32>
    %56 = vector.extract_strided_slice %29 {offsets = [0, 0], sizes = [8, 64], strides = [1, 1]} : vector<8x96xf32> to vector<8x64xf32>
    %57 = vector.extract_strided_slice %35 {offsets = [0, 0], sizes = [8, 64], strides = [1, 1]} : vector<8x96xf32> to vector<8x64xf32>
    %58 = arith.addf %56, %57 : vector<8x64xf32>
    %59 = arith.negf %58 : vector<8x64xf32>
    %60 = math.exp %59 : vector<8x64xf32>
    %cst_32 = arith.constant 1.000000e+00 : f32
    %61 = vector.broadcast %cst_32 : f32 to vector<8x64xf32>
    %62 = arith.addf %61, %60 : vector<8x64xf32>
    %63 = arith.divf %61, %62 : vector<8x64xf32>
    %64 = vector.extract_strided_slice %63 {offsets = [0, 0], sizes = [8, 32], strides = [1, 1]} : vector<8x64xf32> to vector<8x32xf32>
    %65 = vector.extract_strided_slice %63 {offsets = [0, 32], sizes = [8, 32], strides = [1, 1]} : vector<8x64xf32> to vector<8x32xf32>
    %66 = vector.extract_strided_slice %29 {offsets = [0, 64], sizes = [8, 32], strides = [1, 1]} : vector<8x96xf32> to vector<8x32xf32>
    %67 = vector.extract_strided_slice %35 {offsets = [0, 64], sizes = [8, 32], strides = [1, 1]} : vector<8x96xf32> to vector<8x32xf32>
    %68 = arith.mulf %64, %67 : vector<8x32xf32>
    %69 = arith.addf %66, %68 : vector<8x32xf32>
    %70 = math.tanh %69 : vector<8x32xf32>
    %cst_33 = arith.constant 1.000000e+00 : f32
    %71 = vector.broadcast %cst_33 : f32 to vector<8x32xf32>
    %72 = arith.subf %71, %65 : vector<8x32xf32>
    %73 = arith.mulf %72, %70 : vector<8x32xf32>
    %74 = arith.mulf %65, %19 : vector<8x32xf32>
    %75 = arith.addf %73, %74 : vector<8x32xf32>
    %76 = arith.maximumf %20, %55 : vector<8x32xf32>
    %77 = arith.maximumf %20, %75 : vector<8x32xf32>
    %78 = arith.addf %19, %55 : vector<8x32xf32>
    %79 = arith.addf %19, %75 : vector<8x32xf32>
    %c1_i32 = arith.constant 1 : i32
    %c8_i32_34 = arith.constant 8 : i32
    %80 = arith.muli %c1_i32, %c8_i32_34 : i32
    %81 = tpu.assume_multiple %80, 8 : i32
    %c7_i32_35 = arith.constant 7 : i32
    %82 = arith.subi %c7_i32_35, %c1_i32 : i32
    %c8_i32_36 = arith.constant 8 : i32
    %83 = arith.muli %82, %c8_i32_36 : i32
    %84 = tpu.assume_multiple %83, 8 : i32
    %85 = arith.index_cast %81 : i32 to index
    %c0_37 = arith.constant 0 : index
    %86 = vector.load %arg15[%85, %c0_37] : memref<64x96xf32, #tpu.memory_space<vmem>>, vector<8x96xf32>
    %87 = arith.index_cast %84 : i32 to index
    %c0_38 = arith.constant 0 : index
    %88 = vector.load %arg16[%87, %c0_38] : memref<64x96xf32, #tpu.memory_space<vmem>>, vector<8x96xf32>
    %cst_39 = arith.constant dense<0.000000e+00> : vector<8x96xf32>
    %89 = tpu.matmul %55, %15, %cst_39 {dimension_numbers = #tpu.dot_dimension_numbers<[1], [0], [0], [1], [0, 0, 1, 1], [], []>} : vector<8x32xf32>, vector<32x96xf32>, vector<8x96xf32> -> vector<8x96xf32>
    %90 = vector.broadcast %17 : vector<1x96xf32> to vector<8x96xf32>
    %91 = arith.addf %89, %90 : vector<8x96xf32>
    %cst_40 = arith.constant dense<0.000000e+00> : vector<8x96xf32>
    %92 = tpu.matmul %75, %16, %cst_40 {dimension_numbers = #tpu.dot_dimension_numbers<[1], [0], [0], [1], [0, 0, 1, 1], [], []>} : vector<8x32xf32>, vector<32x96xf32>, vector<8x96xf32> -> vector<8x96xf32>
    %93 = vector.broadcast %18 : vector<1x96xf32> to vector<8x96xf32>
    %94 = arith.addf %92, %93 : vector<8x96xf32>
    %95 = vector.extract_strided_slice %86 {offsets = [0, 0], sizes = [8, 64], strides = [1, 1]} : vector<8x96xf32> to vector<8x64xf32>
    %96 = vector.extract_strided_slice %91 {offsets = [0, 0], sizes = [8, 64], strides = [1, 1]} : vector<8x96xf32> to vector<8x64xf32>
    %97 = arith.addf %95, %96 : vector<8x64xf32>
    %98 = arith.negf %97 : vector<8x64xf32>
    %99 = math.exp %98 : vector<8x64xf32>
    %cst_41 = arith.constant 1.000000e+00 : f32
    %100 = vector.broadcast %cst_41 : f32 to vector<8x64xf32>
    %101 = arith.addf %100, %99 : vector<8x64xf32>
    %102 = arith.divf %100, %101 : vector<8x64xf32>
    %103 = vector.extract_strided_slice %102 {offsets = [0, 0], sizes = [8, 32], strides = [1, 1]} : vector<8x64xf32> to vector<8x32xf32>
    %104 = vector.extract_strided_slice %102 {offsets = [0, 32], sizes = [8, 32], strides = [1, 1]} : vector<8x64xf32> to vector<8x32xf32>
    %105 = vector.extract_strided_slice %86 {offsets = [0, 64], sizes = [8, 32], strides = [1, 1]} : vector<8x96xf32> to vector<8x32xf32>
    %106 = vector.extract_strided_slice %91 {offsets = [0, 64], sizes = [8, 32], strides = [1, 1]} : vector<8x96xf32> to vector<8x32xf32>
    %107 = arith.mulf %103, %106 : vector<8x32xf32>
    %108 = arith.addf %105, %107 : vector<8x32xf32>
    %109 = math.tanh %108 : vector<8x32xf32>
    %cst_42 = arith.constant 1.000000e+00 : f32
    %110 = vector.broadcast %cst_42 : f32 to vector<8x32xf32>
    %111 = arith.subf %110, %104 : vector<8x32xf32>
    %112 = arith.mulf %111, %109 : vector<8x32xf32>
    %113 = arith.mulf %104, %55 : vector<8x32xf32>
    %114 = arith.addf %112, %113 : vector<8x32xf32>
    %115 = vector.extract_strided_slice %88 {offsets = [0, 0], sizes = [8, 64], strides = [1, 1]} : vector<8x96xf32> to vector<8x64xf32>
    %116 = vector.extract_strided_slice %94 {offsets = [0, 0], sizes = [8, 64], strides = [1, 1]} : vector<8x96xf32> to vector<8x64xf32>
    %117 = arith.addf %115, %116 : vector<8x64xf32>
    %118 = arith.negf %117 : vector<8x64xf32>
    %119 = math.exp %118 : vector<8x64xf32>
    %cst_43 = arith.constant 1.000000e+00 : f32
    %120 = vector.broadcast %cst_43 : f32 to vector<8x64xf32>
    %121 = arith.addf %120, %119 : vector<8x64xf32>
    %122 = arith.divf %120, %121 : vector<8x64xf32>
    %123 = vector.extract_strided_slice %122 {offsets = [0, 0], sizes = [8, 32], strides = [1, 1]} : vector<8x64xf32> to vector<8x32xf32>
    %124 = vector.extract_strided_slice %122 {offsets = [0, 32], sizes = [8, 32], strides = [1, 1]} : vector<8x64xf32> to vector<8x32xf32>
    %125 = vector.extract_strided_slice %88 {offsets = [0, 64], sizes = [8, 32], strides = [1, 1]} : vector<8x96xf32> to vector<8x32xf32>
    %126 = vector.extract_strided_slice %94 {offsets = [0, 64], sizes = [8, 32], strides = [1, 1]} : vector<8x96xf32> to vector<8x32xf32>
    %127 = arith.mulf %123, %126 : vector<8x32xf32>
    %128 = arith.addf %125, %127 : vector<8x32xf32>
    %129 = math.tanh %128 : vector<8x32xf32>
    %cst_44 = arith.constant 1.000000e+00 : f32
    %130 = vector.broadcast %cst_44 : f32 to vector<8x32xf32>
    %131 = arith.subf %130, %124 : vector<8x32xf32>
    %132 = arith.mulf %131, %129 : vector<8x32xf32>
    %133 = arith.mulf %124, %75 : vector<8x32xf32>
    %134 = arith.addf %132, %133 : vector<8x32xf32>
    %135 = arith.maximumf %76, %114 : vector<8x32xf32>
    %136 = arith.maximumf %77, %134 : vector<8x32xf32>
    %137 = arith.addf %78, %114 : vector<8x32xf32>
    %138 = arith.addf %79, %134 : vector<8x32xf32>
    %c2_i32 = arith.constant 2 : i32
    %c8_i32_45 = arith.constant 8 : i32
    %139 = arith.muli %c2_i32, %c8_i32_45 : i32
    %140 = tpu.assume_multiple %139, 8 : i32
    %c7_i32_46 = arith.constant 7 : i32
    %141 = arith.subi %c7_i32_46, %c2_i32 : i32
    %c8_i32_47 = arith.constant 8 : i32
    %142 = arith.muli %141, %c8_i32_47 : i32
    %143 = tpu.assume_multiple %142, 8 : i32
    %144 = arith.index_cast %140 : i32 to index
    %c0_48 = arith.constant 0 : index
    %145 = vector.load %arg15[%144, %c0_48] : memref<64x96xf32, #tpu.memory_space<vmem>>, vector<8x96xf32>
    %146 = arith.index_cast %143 : i32 to index
    %c0_49 = arith.constant 0 : index
    %147 = vector.load %arg16[%146, %c0_49] : memref<64x96xf32, #tpu.memory_space<vmem>>, vector<8x96xf32>
    %cst_50 = arith.constant dense<0.000000e+00> : vector<8x96xf32>
    %148 = tpu.matmul %114, %15, %cst_50 {dimension_numbers = #tpu.dot_dimension_numbers<[1], [0], [0], [1], [0, 0, 1, 1], [], []>} : vector<8x32xf32>, vector<32x96xf32>, vector<8x96xf32> -> vector<8x96xf32>
    %149 = vector.broadcast %17 : vector<1x96xf32> to vector<8x96xf32>
    %150 = arith.addf %148, %149 : vector<8x96xf32>
    %cst_51 = arith.constant dense<0.000000e+00> : vector<8x96xf32>
    %151 = tpu.matmul %134, %16, %cst_51 {dimension_numbers = #tpu.dot_dimension_numbers<[1], [0], [0], [1], [0, 0, 1, 1], [], []>} : vector<8x32xf32>, vector<32x96xf32>, vector<8x96xf32> -> vector<8x96xf32>
    %152 = vector.broadcast %18 : vector<1x96xf32> to vector<8x96xf32>
    %153 = arith.addf %151, %152 : vector<8x96xf32>
    %154 = vector.extract_strided_slice %145 {offsets = [0, 0], sizes = [8, 64], strides = [1, 1]} : vector<8x96xf32> to vector<8x64xf32>
    %155 = vector.extract_strided_slice %150 {offsets = [0, 0], sizes = [8, 64], strides = [1, 1]} : vector<8x96xf32> to vector<8x64xf32>
    %156 = arith.addf %154, %155 : vector<8x64xf32>
    %157 = arith.negf %156 : vector<8x64xf32>
    %158 = math.exp %157 : vector<8x64xf32>
    %cst_52 = arith.constant 1.000000e+00 : f32
    %159 = vector.broadcast %cst_52 : f32 to vector<8x64xf32>
    %160 = arith.addf %159, %158 : vector<8x64xf32>
    %161 = arith.divf %159, %160 : vector<8x64xf32>
    %162 = vector.extract_strided_slice %161 {offsets = [0, 0], sizes = [8, 32], strides = [1, 1]} : vector<8x64xf32> to vector<8x32xf32>
    %163 = vector.extract_strided_slice %161 {offsets = [0, 32], sizes = [8, 32], strides = [1, 1]} : vector<8x64xf32> to vector<8x32xf32>
    %164 = vector.extract_strided_slice %145 {offsets = [0, 64], sizes = [8, 32], strides = [1, 1]} : vector<8x96xf32> to vector<8x32xf32>
    %165 = vector.extract_strided_slice %150 {offsets = [0, 64], sizes = [8, 32], strides = [1, 1]} : vector<8x96xf32> to vector<8x32xf32>
    %166 = arith.mulf %162, %165 : vector<8x32xf32>
    %167 = arith.addf %164, %166 : vector<8x32xf32>
    %168 = math.tanh %167 : vector<8x32xf32>
    %cst_53 = arith.constant 1.000000e+00 : f32
    %169 = vector.broadcast %cst_53 : f32 to vector<8x32xf32>
    %170 = arith.subf %169, %163 : vector<8x32xf32>
    %171 = arith.mulf %170, %168 : vector<8x32xf32>
    %172 = arith.mulf %163, %114 : vector<8x32xf32>
    %173 = arith.addf %171, %172 : vector<8x32xf32>
    %174 = vector.extract_strided_slice %147 {offsets = [0, 0], sizes = [8, 64], strides = [1, 1]} : vector<8x96xf32> to vector<8x64xf32>
    %175 = vector.extract_strided_slice %153 {offsets = [0, 0], sizes = [8, 64], strides = [1, 1]} : vector<8x96xf32> to vector<8x64xf32>
    %176 = arith.addf %174, %175 : vector<8x64xf32>
    %177 = arith.negf %176 : vector<8x64xf32>
    %178 = math.exp %177 : vector<8x64xf32>
    %cst_54 = arith.constant 1.000000e+00 : f32
    %179 = vector.broadcast %cst_54 : f32 to vector<8x64xf32>
    %180 = arith.addf %179, %178 : vector<8x64xf32>
    %181 = arith.divf %179, %180 : vector<8x64xf32>
    %182 = vector.extract_strided_slice %181 {offsets = [0, 0], sizes = [8, 32], strides = [1, 1]} : vector<8x64xf32> to vector<8x32xf32>
    %183 = vector.extract_strided_slice %181 {offsets = [0, 32], sizes = [8, 32], strides = [1, 1]} : vector<8x64xf32> to vector<8x32xf32>
    %184 = vector.extract_strided_slice %147 {offsets = [0, 64], sizes = [8, 32], strides = [1, 1]} : vector<8x96xf32> to vector<8x32xf32>
    %185 = vector.extract_strided_slice %153 {offsets = [0, 64], sizes = [8, 32], strides = [1, 1]} : vector<8x96xf32> to vector<8x32xf32>
    %186 = arith.mulf %182, %185 : vector<8x32xf32>
    %187 = arith.addf %184, %186 : vector<8x32xf32>
    %188 = math.tanh %187 : vector<8x32xf32>
    %cst_55 = arith.constant 1.000000e+00 : f32
    %189 = vector.broadcast %cst_55 : f32 to vector<8x32xf32>
    %190 = arith.subf %189, %183 : vector<8x32xf32>
    %191 = arith.mulf %190, %188 : vector<8x32xf32>
    %192 = arith.mulf %183, %134 : vector<8x32xf32>
    %193 = arith.addf %191, %192 : vector<8x32xf32>
    %194 = arith.maximumf %135, %173 : vector<8x32xf32>
    %195 = arith.maximumf %136, %193 : vector<8x32xf32>
    %196 = arith.addf %137, %173 : vector<8x32xf32>
    %197 = arith.addf %138, %193 : vector<8x32xf32>
    %c3_i32 = arith.constant 3 : i32
    %c8_i32_56 = arith.constant 8 : i32
    %198 = arith.muli %c3_i32, %c8_i32_56 : i32
    %199 = tpu.assume_multiple %198, 8 : i32
    %c7_i32_57 = arith.constant 7 : i32
    %200 = arith.subi %c7_i32_57, %c3_i32 : i32
    %c8_i32_58 = arith.constant 8 : i32
    %201 = arith.muli %200, %c8_i32_58 : i32
    %202 = tpu.assume_multiple %201, 8 : i32
    %203 = arith.index_cast %199 : i32 to index
    %c0_59 = arith.constant 0 : index
    %204 = vector.load %arg15[%203, %c0_59] : memref<64x96xf32, #tpu.memory_space<vmem>>, vector<8x96xf32>
    %205 = arith.index_cast %202 : i32 to index
    %c0_60 = arith.constant 0 : index
    %206 = vector.load %arg16[%205, %c0_60] : memref<64x96xf32, #tpu.memory_space<vmem>>, vector<8x96xf32>
    %cst_61 = arith.constant dense<0.000000e+00> : vector<8x96xf32>
    %207 = tpu.matmul %173, %15, %cst_61 {dimension_numbers = #tpu.dot_dimension_numbers<[1], [0], [0], [1], [0, 0, 1, 1], [], []>} : vector<8x32xf32>, vector<32x96xf32>, vector<8x96xf32> -> vector<8x96xf32>
    %208 = vector.broadcast %17 : vector<1x96xf32> to vector<8x96xf32>
    %209 = arith.addf %207, %208 : vector<8x96xf32>
    %cst_62 = arith.constant dense<0.000000e+00> : vector<8x96xf32>
    %210 = tpu.matmul %193, %16, %cst_62 {dimension_numbers = #tpu.dot_dimension_numbers<[1], [0], [0], [1], [0, 0, 1, 1], [], []>} : vector<8x32xf32>, vector<32x96xf32>, vector<8x96xf32> -> vector<8x96xf32>
    %211 = vector.broadcast %18 : vector<1x96xf32> to vector<8x96xf32>
    %212 = arith.addf %210, %211 : vector<8x96xf32>
    %213 = vector.extract_strided_slice %204 {offsets = [0, 0], sizes = [8, 64], strides = [1, 1]} : vector<8x96xf32> to vector<8x64xf32>
    %214 = vector.extract_strided_slice %209 {offsets = [0, 0], sizes = [8, 64], strides = [1, 1]} : vector<8x96xf32> to vector<8x64xf32>
    %215 = arith.addf %213, %214 : vector<8x64xf32>
    %216 = arith.negf %215 : vector<8x64xf32>
    %217 = math.exp %216 : vector<8x64xf32>
    %cst_63 = arith.constant 1.000000e+00 : f32
    %218 = vector.broadcast %cst_63 : f32 to vector<8x64xf32>
    %219 = arith.addf %218, %217 : vector<8x64xf32>
    %220 = arith.divf %218, %219 : vector<8x64xf32>
    %221 = vector.extract_strided_slice %220 {offsets = [0, 0], sizes = [8, 32], strides = [1, 1]} : vector<8x64xf32> to vector<8x32xf32>
    %222 = vector.extract_strided_slice %220 {offsets = [0, 32], sizes = [8, 32], strides = [1, 1]} : vector<8x64xf32> to vector<8x32xf32>
    %223 = vector.extract_strided_slice %204 {offsets = [0, 64], sizes = [8, 32], strides = [1, 1]} : vector<8x96xf32> to vector<8x32xf32>
    %224 = vector.extract_strided_slice %209 {offsets = [0, 64], sizes = [8, 32], strides = [1, 1]} : vector<8x96xf32> to vector<8x32xf32>
    %225 = arith.mulf %221, %224 : vector<8x32xf32>
    %226 = arith.addf %223, %225 : vector<8x32xf32>
    %227 = math.tanh %226 : vector<8x32xf32>
    %cst_64 = arith.constant 1.000000e+00 : f32
    %228 = vector.broadcast %cst_64 : f32 to vector<8x32xf32>
    %229 = arith.subf %228, %222 : vector<8x32xf32>
    %230 = arith.mulf %229, %227 : vector<8x32xf32>
    %231 = arith.mulf %222, %173 : vector<8x32xf32>
    %232 = arith.addf %230, %231 : vector<8x32xf32>
    %233 = vector.extract_strided_slice %206 {offsets = [0, 0], sizes = [8, 64], strides = [1, 1]} : vector<8x96xf32> to vector<8x64xf32>
    %234 = vector.extract_strided_slice %212 {offsets = [0, 0], sizes = [8, 64], strides = [1, 1]} : vector<8x96xf32> to vector<8x64xf32>
    %235 = arith.addf %233, %234 : vector<8x64xf32>
    %236 = arith.negf %235 : vector<8x64xf32>
    %237 = math.exp %236 : vector<8x64xf32>
    %cst_65 = arith.constant 1.000000e+00 : f32
    %238 = vector.broadcast %cst_65 : f32 to vector<8x64xf32>
    %239 = arith.addf %238, %237 : vector<8x64xf32>
    %240 = arith.divf %238, %239 : vector<8x64xf32>
    %241 = vector.extract_strided_slice %240 {offsets = [0, 0], sizes = [8, 32], strides = [1, 1]} : vector<8x64xf32> to vector<8x32xf32>
    %242 = vector.extract_strided_slice %240 {offsets = [0, 32], sizes = [8, 32], strides = [1, 1]} : vector<8x64xf32> to vector<8x32xf32>
    %243 = vector.extract_strided_slice %206 {offsets = [0, 64], sizes = [8, 32], strides = [1, 1]} : vector<8x96xf32> to vector<8x32xf32>
    %244 = vector.extract_strided_slice %212 {offsets = [0, 64], sizes = [8, 32], strides = [1, 1]} : vector<8x96xf32> to vector<8x32xf32>
    %245 = arith.mulf %241, %244 : vector<8x32xf32>
    %246 = arith.addf %243, %245 : vector<8x32xf32>
    %247 = math.tanh %246 : vector<8x32xf32>
    %cst_66 = arith.constant 1.000000e+00 : f32
    %248 = vector.broadcast %cst_66 : f32 to vector<8x32xf32>
    %249 = arith.subf %248, %242 : vector<8x32xf32>
    %250 = arith.mulf %249, %247 : vector<8x32xf32>
    %251 = arith.mulf %242, %193 : vector<8x32xf32>
    %252 = arith.addf %250, %251 : vector<8x32xf32>
    %253 = arith.maximumf %194, %232 : vector<8x32xf32>
    %254 = arith.maximumf %195, %252 : vector<8x32xf32>
    %255 = arith.addf %196, %232 : vector<8x32xf32>
    %256 = arith.addf %197, %252 : vector<8x32xf32>
    %c4_i32 = arith.constant 4 : i32
    %c8_i32_67 = arith.constant 8 : i32
    %257 = arith.muli %c4_i32, %c8_i32_67 : i32
    %258 = tpu.assume_multiple %257, 8 : i32
    %c7_i32_68 = arith.constant 7 : i32
    %259 = arith.subi %c7_i32_68, %c4_i32 : i32
    %c8_i32_69 = arith.constant 8 : i32
    %260 = arith.muli %259, %c8_i32_69 : i32
    %261 = tpu.assume_multiple %260, 8 : i32
    %262 = arith.index_cast %258 : i32 to index
    %c0_70 = arith.constant 0 : index
    %263 = vector.load %arg15[%262, %c0_70] : memref<64x96xf32, #tpu.memory_space<vmem>>, vector<8x96xf32>
    %264 = arith.index_cast %261 : i32 to index
    %c0_71 = arith.constant 0 : index
    %265 = vector.load %arg16[%264, %c0_71] : memref<64x96xf32, #tpu.memory_space<vmem>>, vector<8x96xf32>
    %cst_72 = arith.constant dense<0.000000e+00> : vector<8x96xf32>
    %266 = tpu.matmul %232, %15, %cst_72 {dimension_numbers = #tpu.dot_dimension_numbers<[1], [0], [0], [1], [0, 0, 1, 1], [], []>} : vector<8x32xf32>, vector<32x96xf32>, vector<8x96xf32> -> vector<8x96xf32>
    %267 = vector.broadcast %17 : vector<1x96xf32> to vector<8x96xf32>
    %268 = arith.addf %266, %267 : vector<8x96xf32>
    %cst_73 = arith.constant dense<0.000000e+00> : vector<8x96xf32>
    %269 = tpu.matmul %252, %16, %cst_73 {dimension_numbers = #tpu.dot_dimension_numbers<[1], [0], [0], [1], [0, 0, 1, 1], [], []>} : vector<8x32xf32>, vector<32x96xf32>, vector<8x96xf32> -> vector<8x96xf32>
    %270 = vector.broadcast %18 : vector<1x96xf32> to vector<8x96xf32>
    %271 = arith.addf %269, %270 : vector<8x96xf32>
    %272 = vector.extract_strided_slice %263 {offsets = [0, 0], sizes = [8, 64], strides = [1, 1]} : vector<8x96xf32> to vector<8x64xf32>
    %273 = vector.extract_strided_slice %268 {offsets = [0, 0], sizes = [8, 64], strides = [1, 1]} : vector<8x96xf32> to vector<8x64xf32>
    %274 = arith.addf %272, %273 : vector<8x64xf32>
    %275 = arith.negf %274 : vector<8x64xf32>
    %276 = math.exp %275 : vector<8x64xf32>
    %cst_74 = arith.constant 1.000000e+00 : f32
    %277 = vector.broadcast %cst_74 : f32 to vector<8x64xf32>
    %278 = arith.addf %277, %276 : vector<8x64xf32>
    %279 = arith.divf %277, %278 : vector<8x64xf32>
    %280 = vector.extract_strided_slice %279 {offsets = [0, 0], sizes = [8, 32], strides = [1, 1]} : vector<8x64xf32> to vector<8x32xf32>
    %281 = vector.extract_strided_slice %279 {offsets = [0, 32], sizes = [8, 32], strides = [1, 1]} : vector<8x64xf32> to vector<8x32xf32>
    %282 = vector.extract_strided_slice %263 {offsets = [0, 64], sizes = [8, 32], strides = [1, 1]} : vector<8x96xf32> to vector<8x32xf32>
    %283 = vector.extract_strided_slice %268 {offsets = [0, 64], sizes = [8, 32], strides = [1, 1]} : vector<8x96xf32> to vector<8x32xf32>
    %284 = arith.mulf %280, %283 : vector<8x32xf32>
    %285 = arith.addf %282, %284 : vector<8x32xf32>
    %286 = math.tanh %285 : vector<8x32xf32>
    %cst_75 = arith.constant 1.000000e+00 : f32
    %287 = vector.broadcast %cst_75 : f32 to vector<8x32xf32>
    %288 = arith.subf %287, %281 : vector<8x32xf32>
    %289 = arith.mulf %288, %286 : vector<8x32xf32>
    %290 = arith.mulf %281, %232 : vector<8x32xf32>
    %291 = arith.addf %289, %290 : vector<8x32xf32>
    %292 = vector.extract_strided_slice %265 {offsets = [0, 0], sizes = [8, 64], strides = [1, 1]} : vector<8x96xf32> to vector<8x64xf32>
    %293 = vector.extract_strided_slice %271 {offsets = [0, 0], sizes = [8, 64], strides = [1, 1]} : vector<8x96xf32> to vector<8x64xf32>
    %294 = arith.addf %292, %293 : vector<8x64xf32>
    %295 = arith.negf %294 : vector<8x64xf32>
    %296 = math.exp %295 : vector<8x64xf32>
    %cst_76 = arith.constant 1.000000e+00 : f32
    %297 = vector.broadcast %cst_76 : f32 to vector<8x64xf32>
    %298 = arith.addf %297, %296 : vector<8x64xf32>
    %299 = arith.divf %297, %298 : vector<8x64xf32>
    %300 = vector.extract_strided_slice %299 {offsets = [0, 0], sizes = [8, 32], strides = [1, 1]} : vector<8x64xf32> to vector<8x32xf32>
    %301 = vector.extract_strided_slice %299 {offsets = [0, 32], sizes = [8, 32], strides = [1, 1]} : vector<8x64xf32> to vector<8x32xf32>
    %302 = vector.extract_strided_slice %265 {offsets = [0, 64], sizes = [8, 32], strides = [1, 1]} : vector<8x96xf32> to vector<8x32xf32>
    %303 = vector.extract_strided_slice %271 {offsets = [0, 64], sizes = [8, 32], strides = [1, 1]} : vector<8x96xf32> to vector<8x32xf32>
    %304 = arith.mulf %300, %303 : vector<8x32xf32>
    %305 = arith.addf %302, %304 : vector<8x32xf32>
    %306 = math.tanh %305 : vector<8x32xf32>
    %cst_77 = arith.constant 1.000000e+00 : f32
    %307 = vector.broadcast %cst_77 : f32 to vector<8x32xf32>
    %308 = arith.subf %307, %301 : vector<8x32xf32>
    %309 = arith.mulf %308, %306 : vector<8x32xf32>
    %310 = arith.mulf %301, %252 : vector<8x32xf32>
    %311 = arith.addf %309, %310 : vector<8x32xf32>
    %312 = arith.maximumf %253, %291 : vector<8x32xf32>
    %313 = arith.maximumf %254, %311 : vector<8x32xf32>
    %314 = arith.addf %255, %291 : vector<8x32xf32>
    %315 = arith.addf %256, %311 : vector<8x32xf32>
    %c5_i32 = arith.constant 5 : i32
    %c8_i32_78 = arith.constant 8 : i32
    %316 = arith.muli %c5_i32, %c8_i32_78 : i32
    %317 = tpu.assume_multiple %316, 8 : i32
    %c7_i32_79 = arith.constant 7 : i32
    %318 = arith.subi %c7_i32_79, %c5_i32 : i32
    %c8_i32_80 = arith.constant 8 : i32
    %319 = arith.muli %318, %c8_i32_80 : i32
    %320 = tpu.assume_multiple %319, 8 : i32
    %321 = arith.index_cast %317 : i32 to index
    %c0_81 = arith.constant 0 : index
    %322 = vector.load %arg15[%321, %c0_81] : memref<64x96xf32, #tpu.memory_space<vmem>>, vector<8x96xf32>
    %323 = arith.index_cast %320 : i32 to index
    %c0_82 = arith.constant 0 : index
    %324 = vector.load %arg16[%323, %c0_82] : memref<64x96xf32, #tpu.memory_space<vmem>>, vector<8x96xf32>
    %cst_83 = arith.constant dense<0.000000e+00> : vector<8x96xf32>
    %325 = tpu.matmul %291, %15, %cst_83 {dimension_numbers = #tpu.dot_dimension_numbers<[1], [0], [0], [1], [0, 0, 1, 1], [], []>} : vector<8x32xf32>, vector<32x96xf32>, vector<8x96xf32> -> vector<8x96xf32>
    %326 = vector.broadcast %17 : vector<1x96xf32> to vector<8x96xf32>
    %327 = arith.addf %325, %326 : vector<8x96xf32>
    %cst_84 = arith.constant dense<0.000000e+00> : vector<8x96xf32>
    %328 = tpu.matmul %311, %16, %cst_84 {dimension_numbers = #tpu.dot_dimension_numbers<[1], [0], [0], [1], [0, 0, 1, 1], [], []>} : vector<8x32xf32>, vector<32x96xf32>, vector<8x96xf32> -> vector<8x96xf32>
    %329 = vector.broadcast %18 : vector<1x96xf32> to vector<8x96xf32>
    %330 = arith.addf %328, %329 : vector<8x96xf32>
    %331 = vector.extract_strided_slice %322 {offsets = [0, 0], sizes = [8, 64], strides = [1, 1]} : vector<8x96xf32> to vector<8x64xf32>
    %332 = vector.extract_strided_slice %327 {offsets = [0, 0], sizes = [8, 64], strides = [1, 1]} : vector<8x96xf32> to vector<8x64xf32>
    %333 = arith.addf %331, %332 : vector<8x64xf32>
    %334 = arith.negf %333 : vector<8x64xf32>
    %335 = math.exp %334 : vector<8x64xf32>
    %cst_85 = arith.constant 1.000000e+00 : f32
    %336 = vector.broadcast %cst_85 : f32 to vector<8x64xf32>
    %337 = arith.addf %336, %335 : vector<8x64xf32>
    %338 = arith.divf %336, %337 : vector<8x64xf32>
    %339 = vector.extract_strided_slice %338 {offsets = [0, 0], sizes = [8, 32], strides = [1, 1]} : vector<8x64xf32> to vector<8x32xf32>
    %340 = vector.extract_strided_slice %338 {offsets = [0, 32], sizes = [8, 32], strides = [1, 1]} : vector<8x64xf32> to vector<8x32xf32>
    %341 = vector.extract_strided_slice %322 {offsets = [0, 64], sizes = [8, 32], strides = [1, 1]} : vector<8x96xf32> to vector<8x32xf32>
    %342 = vector.extract_strided_slice %327 {offsets = [0, 64], sizes = [8, 32], strides = [1, 1]} : vector<8x96xf32> to vector<8x32xf32>
    %343 = arith.mulf %339, %342 : vector<8x32xf32>
    %344 = arith.addf %341, %343 : vector<8x32xf32>
    %345 = math.tanh %344 : vector<8x32xf32>
    %cst_86 = arith.constant 1.000000e+00 : f32
    %346 = vector.broadcast %cst_86 : f32 to vector<8x32xf32>
    %347 = arith.subf %346, %340 : vector<8x32xf32>
    %348 = arith.mulf %347, %345 : vector<8x32xf32>
    %349 = arith.mulf %340, %291 : vector<8x32xf32>
    %350 = arith.addf %348, %349 : vector<8x32xf32>
    %351 = vector.extract_strided_slice %324 {offsets = [0, 0], sizes = [8, 64], strides = [1, 1]} : vector<8x96xf32> to vector<8x64xf32>
    %352 = vector.extract_strided_slice %330 {offsets = [0, 0], sizes = [8, 64], strides = [1, 1]} : vector<8x96xf32> to vector<8x64xf32>
    %353 = arith.addf %351, %352 : vector<8x64xf32>
    %354 = arith.negf %353 : vector<8x64xf32>
    %355 = math.exp %354 : vector<8x64xf32>
    %cst_87 = arith.constant 1.000000e+00 : f32
    %356 = vector.broadcast %cst_87 : f32 to vector<8x64xf32>
    %357 = arith.addf %356, %355 : vector<8x64xf32>
    %358 = arith.divf %356, %357 : vector<8x64xf32>
    %359 = vector.extract_strided_slice %358 {offsets = [0, 0], sizes = [8, 32], strides = [1, 1]} : vector<8x64xf32> to vector<8x32xf32>
    %360 = vector.extract_strided_slice %358 {offsets = [0, 32], sizes = [8, 32], strides = [1, 1]} : vector<8x64xf32> to vector<8x32xf32>
    %361 = vector.extract_strided_slice %324 {offsets = [0, 64], sizes = [8, 32], strides = [1, 1]} : vector<8x96xf32> to vector<8x32xf32>
    %362 = vector.extract_strided_slice %330 {offsets = [0, 64], sizes = [8, 32], strides = [1, 1]} : vector<8x96xf32> to vector<8x32xf32>
    %363 = arith.mulf %359, %362 : vector<8x32xf32>
    %364 = arith.addf %361, %363 : vector<8x32xf32>
    %365 = math.tanh %364 : vector<8x32xf32>
    %cst_88 = arith.constant 1.000000e+00 : f32
    %366 = vector.broadcast %cst_88 : f32 to vector<8x32xf32>
    %367 = arith.subf %366, %360 : vector<8x32xf32>
    %368 = arith.mulf %367, %365 : vector<8x32xf32>
    %369 = arith.mulf %360, %311 : vector<8x32xf32>
    %370 = arith.addf %368, %369 : vector<8x32xf32>
    %371 = arith.maximumf %312, %350 : vector<8x32xf32>
    %372 = arith.maximumf %313, %370 : vector<8x32xf32>
    %373 = arith.addf %314, %350 : vector<8x32xf32>
    %374 = arith.addf %315, %370 : vector<8x32xf32>
    %c6_i32 = arith.constant 6 : i32
    %c8_i32_89 = arith.constant 8 : i32
    %375 = arith.muli %c6_i32, %c8_i32_89 : i32
    %376 = tpu.assume_multiple %375, 8 : i32
    %c7_i32_90 = arith.constant 7 : i32
    %377 = arith.subi %c7_i32_90, %c6_i32 : i32
    %c8_i32_91 = arith.constant 8 : i32
    %378 = arith.muli %377, %c8_i32_91 : i32
    %379 = tpu.assume_multiple %378, 8 : i32
    %380 = arith.index_cast %376 : i32 to index
    %c0_92 = arith.constant 0 : index
    %381 = vector.load %arg15[%380, %c0_92] : memref<64x96xf32, #tpu.memory_space<vmem>>, vector<8x96xf32>
    %382 = arith.index_cast %379 : i32 to index
    %c0_93 = arith.constant 0 : index
    %383 = vector.load %arg16[%382, %c0_93] : memref<64x96xf32, #tpu.memory_space<vmem>>, vector<8x96xf32>
    %cst_94 = arith.constant dense<0.000000e+00> : vector<8x96xf32>
    %384 = tpu.matmul %350, %15, %cst_94 {dimension_numbers = #tpu.dot_dimension_numbers<[1], [0], [0], [1], [0, 0, 1, 1], [], []>} : vector<8x32xf32>, vector<32x96xf32>, vector<8x96xf32> -> vector<8x96xf32>
    %385 = vector.broadcast %17 : vector<1x96xf32> to vector<8x96xf32>
    %386 = arith.addf %384, %385 : vector<8x96xf32>
    %cst_95 = arith.constant dense<0.000000e+00> : vector<8x96xf32>
    %387 = tpu.matmul %370, %16, %cst_95 {dimension_numbers = #tpu.dot_dimension_numbers<[1], [0], [0], [1], [0, 0, 1, 1], [], []>} : vector<8x32xf32>, vector<32x96xf32>, vector<8x96xf32> -> vector<8x96xf32>
    %388 = vector.broadcast %18 : vector<1x96xf32> to vector<8x96xf32>
    %389 = arith.addf %387, %388 : vector<8x96xf32>
    %390 = vector.extract_strided_slice %381 {offsets = [0, 0], sizes = [8, 64], strides = [1, 1]} : vector<8x96xf32> to vector<8x64xf32>
    %391 = vector.extract_strided_slice %386 {offsets = [0, 0], sizes = [8, 64], strides = [1, 1]} : vector<8x96xf32> to vector<8x64xf32>
    %392 = arith.addf %390, %391 : vector<8x64xf32>
    %393 = arith.negf %392 : vector<8x64xf32>
    %394 = math.exp %393 : vector<8x64xf32>
    %cst_96 = arith.constant 1.000000e+00 : f32
    %395 = vector.broadcast %cst_96 : f32 to vector<8x64xf32>
    %396 = arith.addf %395, %394 : vector<8x64xf32>
    %397 = arith.divf %395, %396 : vector<8x64xf32>
    %398 = vector.extract_strided_slice %397 {offsets = [0, 0], sizes = [8, 32], strides = [1, 1]} : vector<8x64xf32> to vector<8x32xf32>
    %399 = vector.extract_strided_slice %397 {offsets = [0, 32], sizes = [8, 32], strides = [1, 1]} : vector<8x64xf32> to vector<8x32xf32>
    %400 = vector.extract_strided_slice %381 {offsets = [0, 64], sizes = [8, 32], strides = [1, 1]} : vector<8x96xf32> to vector<8x32xf32>
    %401 = vector.extract_strided_slice %386 {offsets = [0, 64], sizes = [8, 32], strides = [1, 1]} : vector<8x96xf32> to vector<8x32xf32>
    %402 = arith.mulf %398, %401 : vector<8x32xf32>
    %403 = arith.addf %400, %402 : vector<8x32xf32>
    %404 = math.tanh %403 : vector<8x32xf32>
    %cst_97 = arith.constant 1.000000e+00 : f32
    %405 = vector.broadcast %cst_97 : f32 to vector<8x32xf32>
    %406 = arith.subf %405, %399 : vector<8x32xf32>
    %407 = arith.mulf %406, %404 : vector<8x32xf32>
    %408 = arith.mulf %399, %350 : vector<8x32xf32>
    %409 = arith.addf %407, %408 : vector<8x32xf32>
    %410 = vector.extract_strided_slice %383 {offsets = [0, 0], sizes = [8, 64], strides = [1, 1]} : vector<8x96xf32> to vector<8x64xf32>
    %411 = vector.extract_strided_slice %389 {offsets = [0, 0], sizes = [8, 64], strides = [1, 1]} : vector<8x96xf32> to vector<8x64xf32>
    %412 = arith.addf %410, %411 : vector<8x64xf32>
    %413 = arith.negf %412 : vector<8x64xf32>
    %414 = math.exp %413 : vector<8x64xf32>
    %cst_98 = arith.constant 1.000000e+00 : f32
    %415 = vector.broadcast %cst_98 : f32 to vector<8x64xf32>
    %416 = arith.addf %415, %414 : vector<8x64xf32>
    %417 = arith.divf %415, %416 : vector<8x64xf32>
    %418 = vector.extract_strided_slice %417 {offsets = [0, 0], sizes = [8, 32], strides = [1, 1]} : vector<8x64xf32> to vector<8x32xf32>
    %419 = vector.extract_strided_slice %417 {offsets = [0, 32], sizes = [8, 32], strides = [1, 1]} : vector<8x64xf32> to vector<8x32xf32>
    %420 = vector.extract_strided_slice %383 {offsets = [0, 64], sizes = [8, 32], strides = [1, 1]} : vector<8x96xf32> to vector<8x32xf32>
    %421 = vector.extract_strided_slice %389 {offsets = [0, 64], sizes = [8, 32], strides = [1, 1]} : vector<8x96xf32> to vector<8x32xf32>
    %422 = arith.mulf %418, %421 : vector<8x32xf32>
    %423 = arith.addf %420, %422 : vector<8x32xf32>
    %424 = math.tanh %423 : vector<8x32xf32>
    %cst_99 = arith.constant 1.000000e+00 : f32
    %425 = vector.broadcast %cst_99 : f32 to vector<8x32xf32>
    %426 = arith.subf %425, %419 : vector<8x32xf32>
    %427 = arith.mulf %426, %424 : vector<8x32xf32>
    %428 = arith.mulf %419, %370 : vector<8x32xf32>
    %429 = arith.addf %427, %428 : vector<8x32xf32>
    %430 = arith.maximumf %371, %409 : vector<8x32xf32>
    %431 = arith.maximumf %372, %429 : vector<8x32xf32>
    %432 = arith.addf %373, %409 : vector<8x32xf32>
    %433 = arith.addf %374, %429 : vector<8x32xf32>
    %c7_i32_100 = arith.constant 7 : i32
    %c8_i32_101 = arith.constant 8 : i32
    %434 = arith.muli %c7_i32_100, %c8_i32_101 : i32
    %435 = tpu.assume_multiple %434, 8 : i32
    %c7_i32_102 = arith.constant 7 : i32
    %436 = arith.subi %c7_i32_102, %c7_i32_100 : i32
    %c8_i32_103 = arith.constant 8 : i32
    %437 = arith.muli %436, %c8_i32_103 : i32
    %438 = tpu.assume_multiple %437, 8 : i32
    %439 = arith.index_cast %435 : i32 to index
    %c0_104 = arith.constant 0 : index
    %440 = vector.load %arg15[%439, %c0_104] : memref<64x96xf32, #tpu.memory_space<vmem>>, vector<8x96xf32>
    %441 = arith.index_cast %438 : i32 to index
    %c0_105 = arith.constant 0 : index
    %442 = vector.load %arg16[%441, %c0_105] : memref<64x96xf32, #tpu.memory_space<vmem>>, vector<8x96xf32>
    %cst_106 = arith.constant dense<0.000000e+00> : vector<8x96xf32>
    %443 = tpu.matmul %409, %15, %cst_106 {dimension_numbers = #tpu.dot_dimension_numbers<[1], [0], [0], [1], [0, 0, 1, 1], [], []>} : vector<8x32xf32>, vector<32x96xf32>, vector<8x96xf32> -> vector<8x96xf32>
    %444 = vector.broadcast %17 : vector<1x96xf32> to vector<8x96xf32>
    %445 = arith.addf %443, %444 : vector<8x96xf32>
    %cst_107 = arith.constant dense<0.000000e+00> : vector<8x96xf32>
    %446 = tpu.matmul %429, %16, %cst_107 {dimension_numbers = #tpu.dot_dimension_numbers<[1], [0], [0], [1], [0, 0, 1, 1], [], []>} : vector<8x32xf32>, vector<32x96xf32>, vector<8x96xf32> -> vector<8x96xf32>
    %447 = vector.broadcast %18 : vector<1x96xf32> to vector<8x96xf32>
    %448 = arith.addf %446, %447 : vector<8x96xf32>
    %449 = vector.extract_strided_slice %440 {offsets = [0, 0], sizes = [8, 64], strides = [1, 1]} : vector<8x96xf32> to vector<8x64xf32>
    %450 = vector.extract_strided_slice %445 {offsets = [0, 0], sizes = [8, 64], strides = [1, 1]} : vector<8x96xf32> to vector<8x64xf32>
    %451 = arith.addf %449, %450 : vector<8x64xf32>
    %452 = arith.negf %451 : vector<8x64xf32>
    %453 = math.exp %452 : vector<8x64xf32>
    %cst_108 = arith.constant 1.000000e+00 : f32
    %454 = vector.broadcast %cst_108 : f32 to vector<8x64xf32>
    %455 = arith.addf %454, %453 : vector<8x64xf32>
    %456 = arith.divf %454, %455 : vector<8x64xf32>
    %457 = vector.extract_strided_slice %456 {offsets = [0, 0], sizes = [8, 32], strides = [1, 1]} : vector<8x64xf32> to vector<8x32xf32>
    %458 = vector.extract_strided_slice %456 {offsets = [0, 32], sizes = [8, 32], strides = [1, 1]} : vector<8x64xf32> to vector<8x32xf32>
    %459 = vector.extract_strided_slice %440 {offsets = [0, 64], sizes = [8, 32], strides = [1, 1]} : vector<8x96xf32> to vector<8x32xf32>
    %460 = vector.extract_strided_slice %445 {offsets = [0, 64], sizes = [8, 32], strides = [1, 1]} : vector<8x96xf32> to vector<8x32xf32>
    %461 = arith.mulf %457, %460 : vector<8x32xf32>
    %462 = arith.addf %459, %461 : vector<8x32xf32>
    %463 = math.tanh %462 : vector<8x32xf32>
    %cst_109 = arith.constant 1.000000e+00 : f32
    %464 = vector.broadcast %cst_109 : f32 to vector<8x32xf32>
    %465 = arith.subf %464, %458 : vector<8x32xf32>
    %466 = arith.mulf %465, %463 : vector<8x32xf32>
    %467 = arith.mulf %458, %409 : vector<8x32xf32>
    %468 = arith.addf %466, %467 : vector<8x32xf32>
    %469 = vector.extract_strided_slice %442 {offsets = [0, 0], sizes = [8, 64], strides = [1, 1]} : vector<8x96xf32> to vector<8x64xf32>
    %470 = vector.extract_strided_slice %448 {offsets = [0, 0], sizes = [8, 64], strides = [1, 1]} : vector<8x96xf32> to vector<8x64xf32>
    %471 = arith.addf %469, %470 : vector<8x64xf32>
    %472 = arith.negf %471 : vector<8x64xf32>
    %473 = math.exp %472 : vector<8x64xf32>
    %cst_110 = arith.constant 1.000000e+00 : f32
    %474 = vector.broadcast %cst_110 : f32 to vector<8x64xf32>
    %475 = arith.addf %474, %473 : vector<8x64xf32>
    %476 = arith.divf %474, %475 : vector<8x64xf32>
    %477 = vector.extract_strided_slice %476 {offsets = [0, 0], sizes = [8, 32], strides = [1, 1]} : vector<8x64xf32> to vector<8x32xf32>
    %478 = vector.extract_strided_slice %476 {offsets = [0, 32], sizes = [8, 32], strides = [1, 1]} : vector<8x64xf32> to vector<8x32xf32>
    %479 = vector.extract_strided_slice %442 {offsets = [0, 64], sizes = [8, 32], strides = [1, 1]} : vector<8x96xf32> to vector<8x32xf32>
    %480 = vector.extract_strided_slice %448 {offsets = [0, 64], sizes = [8, 32], strides = [1, 1]} : vector<8x96xf32> to vector<8x32xf32>
    %481 = arith.mulf %477, %480 : vector<8x32xf32>
    %482 = arith.addf %479, %481 : vector<8x32xf32>
    %483 = math.tanh %482 : vector<8x32xf32>
    %cst_111 = arith.constant 1.000000e+00 : f32
    %484 = vector.broadcast %cst_111 : f32 to vector<8x32xf32>
    %485 = arith.subf %484, %478 : vector<8x32xf32>
    %486 = arith.mulf %485, %483 : vector<8x32xf32>
    %487 = arith.mulf %478, %429 : vector<8x32xf32>
    %488 = arith.addf %486, %487 : vector<8x32xf32>
    %489 = arith.maximumf %430, %468 : vector<8x32xf32>
    %490 = arith.maximumf %431, %488 : vector<8x32xf32>
    %491 = arith.addf %432, %468 : vector<8x32xf32>
    %492 = arith.addf %433, %488 : vector<8x32xf32>
    %c8_i32_112 = arith.constant 8 : i32
    %cst_113 = arith.constant 1.250000e-01 : f32
    %493 = vector.broadcast %cst_113 : f32 to vector<8x32xf32>
    %494 = arith.mulf %491, %493 : vector<8x32xf32>
    %cst_114 = arith.constant 1.250000e-01 : f32
    %495 = vector.broadcast %cst_114 : f32 to vector<8x32xf32>
    %496 = arith.mulf %492, %495 : vector<8x32xf32>
    %497 = tpu.concatenate %489, %490, %494, %496 in 1 : vector<8x32xf32>, vector<8x32xf32>, vector<8x32xf32>, vector<8x32xf32> -> vector<8x128xf32>
    %c0_115 = arith.constant 0 : index
    %c0_116 = arith.constant 0 : index
    %498 = vector.load %arg10[%c0_115, %c0_116] : memref<128x32xf32, #tpu.memory_space<vmem>>, vector<128x32xf32>
    %cst_117 = arith.constant dense<0.000000e+00> : vector<8x32xf32>
    %499 = tpu.matmul %497, %498, %cst_117 {dimension_numbers = #tpu.dot_dimension_numbers<[1], [0], [0], [1], [0, 0, 1, 1], [], []>} : vector<8x128xf32>, vector<128x32xf32>, vector<8x32xf32> -> vector<8x32xf32>
    %c0_118 = arith.constant 0 : index
    %c0_119 = arith.constant 0 : index
    %500 = vector.load %arg11[%c0_118, %c0_119] : memref<1x32xf32, #tpu.memory_space<vmem>>, vector<1x32xf32>
    %501 = vector.broadcast %500 : vector<1x32xf32> to vector<8x32xf32>
    %502 = arith.addf %499, %501 : vector<8x32xf32>
    %cst_120 = arith.constant 0.000000e+00 : f32
    %503 = vector.broadcast %cst_120 : f32 to vector<8x32xf32>
    %504 = arith.maximumf %502, %503 : vector<8x32xf32>
    %c0_121 = arith.constant 0 : index
    %c0_122 = arith.constant 0 : index
    %505 = vector.load %arg12[%c0_121, %c0_122] : memref<32x128xf32, #tpu.memory_space<vmem>>, vector<32x128xf32>
    %cst_123 = arith.constant dense<0.000000e+00> : vector<8x128xf32>
    %506 = tpu.matmul %504, %505, %cst_123 {dimension_numbers = #tpu.dot_dimension_numbers<[1], [0], [0], [1], [0, 0, 1, 1], [], []>} : vector<8x32xf32>, vector<32x128xf32>, vector<8x128xf32> -> vector<8x128xf32>
    %c0_124 = arith.constant 0 : index
    %c0_125 = arith.constant 0 : index
    %507 = vector.load %arg13[%c0_124, %c0_125] : memref<1x128xf32, #tpu.memory_space<vmem>>, vector<1x128xf32>
    %508 = vector.broadcast %507 : vector<1x128xf32> to vector<8x128xf32>
    %509 = arith.addf %506, %508 : vector<8x128xf32>
    %c0_126 = arith.constant 0 : index
    %c0_127 = arith.constant 0 : index
    %510 = vector.load %arg14[%c0_126, %c0_127] : memref<8x128xf32, #tpu.memory_space<vmem>>, vector<8x128xf32>
    tpu.vector_store %arg14[%c0_126, %c0_127], %509 {strides = array<i32>} : memref<8x128xf32, #tpu.memory_space<vmem>>, vector<8x128xf32>,
    return
  }
  func.func @transform_0(%arg0: i32) -> (i32, i32, i32) {
    %c0_i32 = arith.constant 0 : i32
    %c0_i32_0 = arith.constant 0 : i32
    %c0_i32_1 = arith.constant 0 : i32
    return %c0_i32, %arg0, %c0_i32_0 : i32, i32, i32
  }
  func.func @transform_1(%arg0: i32) -> (i32, i32) {
    %c0_i32 = arith.constant 0 : i32
    %c0_i32_0 = arith.constant 0 : i32
    %c0_i32_1 = arith.constant 0 : i32
    return %c0_i32, %c0_i32_0 : i32, i32
  }
  func.func @transform_2(%arg0: i32) -> (i32, i32) {
    %c0_i32 = arith.constant 0 : i32
    %c0_i32_0 = arith.constant 0 : i32
    %c0_i32_1 = arith.constant 0 : i32
    return %c0_i32, %c0_i32_0 : i32, i32
  }
  func.func @transform_3(%arg0: i32) -> (i32, i32) {
    %c0_i32 = arith.constant 0 : i32
    %c0_i32_0 = arith.constant 0 : i32
    %c0_i32_1 = arith.constant 0 : i32
    return %c0_i32, %c0_i32_0 : i32, i32
  }
  func.func @transform_4(%arg0: i32) -> (i32, i32) {
    %c0_i32 = arith.constant 0 : i32
    %c0_i32_0 = arith.constant 0 : i32
    %c0_i32_1 = arith.constant 0 : i32
    return %c0_i32, %c0_i32_0 : i32, i32
  }
  func.func @transform_5(%arg0: i32) -> (i32, i32) {
    %c0_i32 = arith.constant 0 : i32
    %c0_i32_0 = arith.constant 0 : i32
    %c0_i32_1 = arith.constant 0 : i32
    return %c0_i32, %c0_i32_0 : i32, i32
  }
  func.func @transform_6(%arg0: i32) -> (i32, i32) {
    %c0_i32 = arith.constant 0 : i32
    %c0_i32_0 = arith.constant 0 : i32
    %c0_i32_1 = arith.constant 0 : i32
    return %c0_i32, %c0_i32_0 : i32, i32
  }
  func.func @transform_7(%arg0: i32) -> (i32, i32) {
    %c0_i32 = arith.constant 0 : i32
    %c0_i32_0 = arith.constant 0 : i32
    %c0_i32_1 = arith.constant 0 : i32
    return %c0_i32, %c0_i32_0 : i32, i32
  }
  func.func @transform_8(%arg0: i32) -> (i32, i32) {
    %c0_i32 = arith.constant 0 : i32
    %c0_i32_0 = arith.constant 0 : i32
    %c0_i32_1 = arith.constant 0 : i32
    return %c0_i32, %c0_i32_0 : i32, i32
  }
  func.func @transform_9(%arg0: i32) -> (i32, i32) {
    %c0_i32 = arith.constant 0 : i32
    %c0_i32_0 = arith.constant 0 : i32
    %c0_i32_1 = arith.constant 0 : i32
    return %c0_i32, %c0_i32_0 : i32, i32
  }
  func.func @transform_10(%arg0: i32) -> (i32, i32) {
    %c0_i32 = arith.constant 0 : i32
    %c0_i32_0 = arith.constant 0 : i32
    %c0_i32_1 = arith.constant 0 : i32
    return %c0_i32, %c0_i32_0 : i32, i32
  }
  func.func @transform_11(%arg0: i32) -> (i32, i32) {
    %c0_i32 = arith.constant 0 : i32
    %c0_i32_0 = arith.constant 0 : i32
    %c0_i32_1 = arith.constant 0 : i32
    return %c0_i32, %c0_i32_0 : i32, i32
  }
  func.func @transform_12(%arg0: i32) -> (i32, i32) {
    %c0_i32 = arith.constant 0 : i32
    %c0_i32_0 = arith.constant 0 : i32
    %c0_i32_1 = arith.constant 0 : i32
    return %c0_i32, %c0_i32_0 : i32, i32
  }
  func.func @transform_13(%arg0: i32) -> (i32, i32) {
    %c0_i32 = arith.constant 0 : i32
    %c0_i32_0 = arith.constant 0 : i32
    return %arg0, %c0_i32 : i32, i32
  }
}

</mosaic_0001>

<llo_original>
// kernel: tpu_custom_call.1
$region0: #{tpu_custom_call.1}
  #allocation0 [shape = 'u32[]', space=smem, size = 0x4, offset = 0x4, fixed_abs, tag = 'smem constant byte address 0x4 - core index']
  #allocation1 [shape = 'u32[144,128]{1,0:T(1,128)}', space=vmem, size = 0x12000, scoped, tag = 'internal scratch']
  #allocation2 [shape = 'f32[64,96]{1,0:T(8,128)}', space=vmem, size = 0x8000, scoped, tag = 'scratch operand']
  #allocation3 [shape = 'f32[64,96]{1,0:T(8,128)}', space=vmem, size = 0x8000, scoped, tag = 'scratch operand']
  %s0 = inlined_call_operand.vmem [shape: f32[8,8,32], index: 0, kind: input, shape index: {}]
  %s1 = inlined_call_operand.hbm [shape: bf16[32,96], index: 1, kind: input, shape index: {}]
  %s2 = inlined_call_operand.vmem [shape: f32[32,96], index: 2, kind: input, shape index: {}]
  %s3 = inlined_call_operand.vmem [shape: f32[1,96], index: 3, kind: input, shape index: {}]
  %s4 = inlined_call_operand.vmem [shape: f32[1,96], index: 4, kind: input, shape index: {}]
  %s5 = inlined_call_operand.hbm [shape: bf16[32,96], index: 5, kind: input, shape index: {}]
  %s6 = inlined_call_operand.vmem [shape: f32[32,96], index: 6, kind: input, shape index: {}]
  %s7 = inlined_call_operand.hbm [shape: f32[1,96], index: 7, kind: input, shape index: {}]
  %s8 = inlined_call_operand.hbm [shape: f32[1,96], index: 8, kind: input, shape index: {}]
  %s9 = inlined_call_operand.vmem [shape: f32[128,32], index: 9, kind: input, shape index: {}]
  %s10 = inlined_call_operand.vmem [shape: f32[1,32], index: 10, kind: input, shape index: {}]
  %s11 = inlined_call_operand.vmem [shape: f32[32,128], index: 11, kind: input, shape index: {}]
  %s12 = inlined_call_operand.vmem [shape: f32[1,128], index: 12, kind: input, shape index: {}]
  %s13 = inlined_call_operand.hbm [shape: f32[8,128], index: 13, kind: output, shape index: {}]
  %s14 = sld [smem:[#allocation0]]
  $region78: #{tpu_custom_call.1} parent=0
    _
  %s16 = ssub.s32 1, %s14
  %s17 = scalar_select 0, %s16, %s14
  $region1: #{tpu_custom_call.1} parent=0
    #allocation4 [shape = 'u8[8192]{0}', space=vmem, size = 0x2000, scoped, tag = 'input window, operand 1, single buffered']
    #allocation5 [shape = 's32[1]{0}', space=sflag, size = 0x4, scoped, tag = 'scoped memory for tpu_custom_call.1']
    #allocation6 [shape = 's32[1]{0}', space=sflag, size = 0x4, scoped, tag = 'scoped memory for tpu_custom_call.1']
    #allocation7 [shape = 'u8[8192]{0}', space=vmem, size = 0x2000, scoped, tag = 'input window, operand 5, single buffered']
    #allocation8 [shape = 's32[1]{0}', space=sflag, size = 0x4, scoped, tag = 'scoped memory for tpu_custom_call.1']
    #allocation9 [shape = 'u8[512]{0}', space=vmem, size = 0x400, scoped, tag = 'input window, operand 7, single buffered']
    #allocation10 [shape = 'u8[512]{0}', space=vmem, size = 0x400, scoped, tag = 'input window, operand 8, single buffered']
    #allocation11 [shape = 's32[1]{0}', space=sflag, size = 0x4, scoped, tag = 'scoped memory for tpu_custom_call.1']
    #allocation12 [shape = 'u8[4096]{0}', space=vmem, size = 0x1000, scoped, tag = 'output window, operand 0, single buffered']
    %18 = vsyncpa [#allocation5], 0
    %19 = vsyncpa [#allocation8], 0
    %20 = vsyncpa [#allocation11], 0
    %21 = vsyncpa [#allocation6], 0
    // Predicated region
    $region2: #{tpu_custom_call.1} parent=1 // pred_check
      _
    $region3: #{tpu_custom_call.1} parent=1 // pred_check_branch
      %23 = sbr.rel (0) target = $region5
    $region4: #{tpu_custom_call.1} parent=1 // pred_region
      _
    $region5: #{tpu_custom_call.1} parent=1 // pred_fallthru
      _
    // Predicated region
    $region6: #{tpu_custom_call.1} parent=1 // pred_check
      _
    $region7: #{tpu_custom_call.1} parent=1 // pred_check_branch
      %25 = sbr.rel (0) target = $region9
    $region8: #{tpu_custom_call.1} parent=1 // pred_region
      %s27 = ssub.s32 256, 256
      %28 = vsyncadd [#allocation5], %s27
      %s29 = sshll.u32 [#allocation4], 4
      %s30 = int_to_ptr.vmem [resolvable:$true] %s29
      %35 = dma.hbm_to_vmem [thread:$0]  %s1, 256, %s30, [#allocation5], 64, 64, 4
    $region9: #{tpu_custom_call.1} parent=1 // pred_fallthru
      _
    // Predicated region
    $region10: #{tpu_custom_call.1} parent=1 // pred_check
      _
    $region11: #{tpu_custom_call.1} parent=1 // pred_check_branch
      %37 = sbr.rel (0) target = $region13
    $region12: #{tpu_custom_call.1} parent=1 // pred_region
      _
    $region13: #{tpu_custom_call.1} parent=1 // pred_fallthru
      _
    // Predicated region
    $region14: #{tpu_custom_call.1} parent=1 // pred_check
      _
    $region15: #{tpu_custom_call.1} parent=1 // pred_check_branch
      %39 = sbr.rel (0) target = $region17
    $region16: #{tpu_custom_call.1} parent=1 // pred_region
      _
    $region17: #{tpu_custom_call.1} parent=1 // pred_fallthru
      _
    // Predicated region
    $region18: #{tpu_custom_call.1} parent=1 // pred_check
      _
    $region19: #{tpu_custom_call.1} parent=1 // pred_check_branch
      %41 = sbr.rel (0) target = $region21
    $region20: #{tpu_custom_call.1} parent=1 // pred_region
      _
    $region21: #{tpu_custom_call.1} parent=1 // pred_fallthru
      _
    // Predicated region
    $region22: #{tpu_custom_call.1} parent=1 // pred_check
      _
    $region23: #{tpu_custom_call.1} parent=1 // pred_check_branch
      %43 = sbr.rel (0) target = $region25
    $region24: #{tpu_custom_call.1} parent=1 // pred_region
      %s45 = ssub.s32 256, 256
      %46 = vsyncadd [#allocation8], %s45
      %s47 = sshll.u32 [#allocation7], 4
      %s48 = int_to_ptr.vmem [resolvable:$true] %s47
      %53 = dma.hbm_to_vmem [thread:$0]  %s5, 256, %s48, [#allocation8], 64, 64, 4
    $region25: #{tpu_custom_call.1} parent=1 // pred_fallthru
      _
    // Predicated region
    $region26: #{tpu_custom_call.1} parent=1 // pred_check
      _
    $region27: #{tpu_custom_call.1} parent=1 // pred_check_branch
      %55 = sbr.rel (0) target = $region29
    $region28: #{tpu_custom_call.1} parent=1 // pred_region
      _
    $region29: #{tpu_custom_call.1} parent=1 // pred_fallthru
      _
    // Predicated region
    $region30: #{tpu_custom_call.1} parent=1 // pred_check
      _
    $region31: #{tpu_custom_call.1} parent=1 // pred_check_branch
      %57 = sbr.rel (0) target = $region33
    $region32: #{tpu_custom_call.1} parent=1 // pred_region
      %s59 = ssub.s32 16, 16
      %60 = vsyncadd [#allocation8], %s59
      %s62 = sshll.u32 [#allocation9], 4
      %s63 = int_to_ptr.vmem [resolvable:$true] %s62
      %65 = dma.hbm_to_vmem [thread:$0]  %s7, 16, %s63, [#allocation8]
    $region33: #{tpu_custom_call.1} parent=1 // pred_fallthru
      _
    // Predicated region
    $region34: #{tpu_custom_call.1} parent=1 // pred_check
      _
    $region35: #{tpu_custom_call.1} parent=1 // pred_check_branch
      %67 = sbr.rel (0) target = $region37
    $region36: #{tpu_custom_call.1} parent=1 // pred_region
      %s69 = ssub.s32 16, 16
      %70 = vsyncadd [#allocation11], %s69
      %s72 = sshll.u32 [#allocation10], 4
      %s73 = int_to_ptr.vmem [resolvable:$true] %s72
      %75 = dma.hbm_to_vmem [thread:$0]  %s8, 16, %s73, [#allocation11]
    $region37: #{tpu_custom_call.1} parent=1 // pred_fallthru
      _
    // Predicated region
    $region38: #{tpu_custom_call.1} parent=1 // pred_check
      _
    $region39: #{tpu_custom_call.1} parent=1 // pred_check_branch
      %77 = sbr.rel (0) target = $region41
    $region40: #{tpu_custom_call.1} parent=1 // pred_region
      _
    $region41: #{tpu_custom_call.1} parent=1 // pred_fallthru
      _
    // Predicated region
    $region42: #{tpu_custom_call.1} parent=1 // pred_check
      _
    $region43: #{tpu_custom_call.1} parent=1 // pred_check_branch
      %79 = sbr.rel (0) target = $region45
    $region44: #{tpu_custom_call.1} parent=1 // pred_region
      _
    $region45: #{tpu_custom_call.1} parent=1 // pred_fallthru
      _
    // Predicated region
    $region46: #{tpu_custom_call.1} parent=1 // pred_check
      _
    $region47: #{tpu_custom_call.1} parent=1 // pred_check_branch
      %81 = sbr.rel (0) target = $region49
    $region48: #{tpu_custom_call.1} parent=1 // pred_region
      _
    $region49: #{tpu_custom_call.1} parent=1 // pred_fallthru
      _
    // Predicated region
    $region50: #{tpu_custom_call.1} parent=1 // pred_check
      _
    $region51: #{tpu_custom_call.1} parent=1 // pred_check_branch
      %83 = sbr.rel (0) target = $region53
    $region52: #{tpu_custom_call.1} parent=1 // pred_region
      _
    $region53: #{tpu_custom_call.1} parent=1 // pred_fallthru
      _
    // Predicated region
    $region54: #{tpu_custom_call.1} parent=1 // pred_check
      _
    $region55: #{tpu_custom_call.1} parent=1 // pred_check_branch
      %85 = sbr.rel (0) target = $region57
    $region56: #{tpu_custom_call.1} parent=1 // pred_region
      %86 = dma.done [#allocation5], 256
    $region57: #{tpu_custom_call.1} parent=1 // pred_fallthru
      _
    // Predicated region
    $region58: #{tpu_custom_call.1} parent=1 // pred_check
      _
    $region59: #{tpu_custom_call.1} parent=1 // pred_check_branch
      %88 = sbr.rel (0) target = $region61
    $region60: #{tpu_custom_call.1} parent=1 // pred_region
      %89 = dma.done [#allocation8], 256
    $region61: #{tpu_custom_call.1} parent=1 // pred_fallthru
      _
    // Predicated region
    $region62: #{tpu_custom_call.1} parent=1 // pred_check
      _
    $region63: #{tpu_custom_call.1} parent=1 // pred_check_branch
      %91 = sbr.rel (0) target = $region65
    $region64: #{tpu_custom_call.1} parent=1 // pred_region
      %92 = dma.done [#allocation8], 16
    $region65: #{tpu_custom_call.1} parent=1 // pred_fallthru
      _
    // Predicated region
    $region66: #{tpu_custom_call.1} parent=1 // pred_check
      _
    $region67: #{tpu_custom_call.1} parent=1 // pred_check_branch
      %94 = sbr.rel (0) target = $region69
    $region68: #{tpu_custom_call.1} parent=1 // pred_region
      %95 = dma.done [#allocation11], 16
    $region69: #{tpu_custom_call.1} parent=1 // pred_fallthru
      _
    %v97 = vld [vmem:[%s0] sm:$0xff]
    %v98 = vld [vmem:[%s0 + $0x8] sm:$0xff]
    %v99 = vld [vmem:[%s0 + $0x10] sm:$0xff]
    %v100 = vld [vmem:[%s0 + $0x18] sm:$0xff]
    %v101 = vld [vmem:[%s0 + $0x20] sm:$0xff]
    %v102 = vld [vmem:[%s0 + $0x28] sm:$0xff]
    %v103 = vld [vmem:[%s0 + $0x30] sm:$0xff]
    %v104 = vld [vmem:[%s0 + $0x38] sm:$0xff]
    %v105 = vpack.c.bf16 %v98, %v97
    %v106 = vpack.c.bf16 %v100, %v99
    %v107 = vpack.c.bf16 %v102, %v101
    %v108 = vpack.c.bf16 %v104, %v103
    %v109 = vld [vmem:[#allocation4] sm:$0xf]
    %v110 = vld [vmem:[#allocation4 + $0x4] sm:$0xf]
    %v111 = vld [vmem:[#allocation4 + $0x8] sm:$0xf]
    %v112 = vld [vmem:[#allocation4 + $0xc] sm:$0xf]
    %v113 = vld [vmem:[%s3] sm:$0x1]
    %v115 = vlaneseq
    %v116 = vshrl.u32 %v115, 7
    %v117 = vsub.s32 0, %v116
    %v118 = vrot.slane %v113, %v117
    %v124 = vunpack.c.l.b16 %v109
    %v125 = vunpack.c.l.b16 %v110
    %v126 = vunpack.c.l.b16 %v111
    %v127 = vunpack.c.l.b16 %v112
    %v128 = vpack.c.b16 %v125, %v124
    %v129 = vpack.c.b16 %v127, %v126
    %vm132 = vcmask 261120
    %v134 = vsel %vm132, %v105, 0
    %v137 = vsel %vm132, %v106, 0
    %v140 = vsel %vm132, %v107, 0
    %v143 = vsel %vm132, %v108, 0
    %145 = vmatprep.subr.bf16.mxu0 0
    %146 = vmatpush1.bf16.msra.mxu0 %v128
    %147 = vmatprep.subr.bf16.mxu0 0
    %148 = vmatpush1.bf16.msra.mxu0 %v129
    %149 = vmatprep.subr.bf16.mxu0 0
    %150 = vmatpush1.bf16.msra.mxu0 0
    %151 = vmatprep.subr.bf16.mxu0 0
    %152 = vmatpush1.bf16.msra.mxu0 0
    %153 = vmatprep.subr.bf16.mxu0 0
    %154 = vmatpush1.bf16.msra.mxu0 0
    %155 = vmatprep.subr.bf16.mxu0 0
    %156 = vmatpush1.bf16.msra.mxu0 0
    %157 = vmatprep.subr.bf16.mxu0 0
    %158 = vmatpush1.bf16.msra.mxu0 0
    %159 = vmatprep.subr.bf16.mxu0 0
    %160 = vmatpush1.bf16.msra.mxu0 0
    %161 = vmatprep.subr.bf16.mxu0 0
    %162 = vmatpush1.bf16.msra.mxu0 0
    %163 = vmatprep.subr.bf16.mxu0 0
    %164 = vmatpush1.bf16.msra.mxu0 0
    %165 = vmatprep.subr.bf16.mxu0 0
    %166 = vmatpush1.bf16.msra.mxu0 0
    %167 = vmatprep.subr.bf16.mxu0 0
    %168 = vmatpush1.bf16.msra.mxu0 0
    %169 = vmatprep.subr.bf16.mxu0 0
    %170 = vmatpush1.bf16.msra.mxu0 0
    %171 = vmatprep.subr.bf16.mxu0 0
    %172 = vmatpush1.bf16.msra.mxu0 0
    %173 = vmatprep.subr.bf16.mxu0 0
    %174 = vmatpush1.bf16.msra.mxu0 0
    %175 = vmatprep.subr.bf16.mxu0 0
    %176 = vmatpush1.bf16.msra.mxu0 0
    %177 = vmatprep.mubr.bf16.mxu0 0
    %178 = vmatmul.mubr.bf16.gmra.mrb[0].mxu0 %v134
    %v179 = vpop.f32.mrb[0].mxu0
    %v180 = vadd.f32 %v118, %v179
    %v181 = vpop.f32.mrb[0].mxu0
    %v182 = vpop.f32.mrb[0].mxu0
    %v183 = vadd.f32 %v118, %v182
    %v184 = vpop.f32.mrb[0].mxu0
    %185 = vmatprep.mubr.bf16.mxu0 0
    %186 = vmatmul.mubr.bf16.gmra.mrb[0].mxu0 %v137
    %v187 = vpop.f32.mrb[0].mxu0
    %v188 = vadd.f32 %v118, %v187
    %v189 = vpop.f32.mrb[0].mxu0
    %v190 = vpop.f32.mrb[0].mxu0
    %v191 = vadd.f32 %v118, %v190
    %v192 = vpop.f32.mrb[0].mxu0
    %193 = vmatprep.mubr.bf16.mxu0 0
    %194 = vmatmul.mubr.bf16.gmra.mrb[0].mxu0 %v140
    %v195 = vpop.f32.mrb[0].mxu0
    %v196 = vadd.f32 %v118, %v195
    %v197 = vpop.f32.mrb[0].mxu0
    %v198 = vpop.f32.mrb[0].mxu0
    %v199 = vadd.f32 %v118, %v198
    %v200 = vpop.f32.mrb[0].mxu0
    %201 = vmatprep.mubr.bf16.mxu0 0
    %202 = vmatmul.mubr.bf16.gmra.mrb[0].mxu0 %v143
    %v203 = vpop.f32.mrb[0].mxu0
    %v204 = vadd.f32 %v118, %v203
    %v205 = vpop.f32.mrb[0].mxu0
    %v206 = vpop.f32.mrb[0].mxu0
    %v207 = vadd.f32 %v118, %v206
    %v208 = vpop.f32.mrb[0].mxu0
    %209 = vdwg.mxu0
    %vm210 = vcmask 785408
    %211 = vst.msk [vmem:[#allocation2] sm:$0xff] %vm210, %v180
    %212 = vst.msk [vmem:[#allocation2 + $0x8] sm:$0xff] %vm210, %v183
    %213 = vst.msk [vmem:[#allocation2 + $0x10] sm:$0xff] %vm210, %v188
    %214 = vst.msk [vmem:[#allocation2 + $0x18] sm:$0xff] %vm210, %v191
    %215 = vst.msk [vmem:[#allocation2 + $0x20] sm:$0xff] %vm210, %v196
    %216 = vst.msk [vmem:[#allocation2 + $0x28] sm:$0xff] %vm210, %v199
    %217 = vst.msk [vmem:[#allocation2 + $0x30] sm:$0xff] %vm210, %v204
    %218 = vst.msk [vmem:[#allocation2 + $0x38] sm:$0xff] %vm210, %v207
    %v219 = vld [vmem:[#allocation7] sm:$0xf]
    %v220 = vld [vmem:[#allocation7 + $0x4] sm:$0xf]
    %v221 = vld [vmem:[#allocation7 + $0x8] sm:$0xf]
    %v222 = vld [vmem:[#allocation7 + $0xc] sm:$0xf]
    %v223 = vld [vmem:[#allocation9] sm:$0x1]
    %v225 = vlaneseq
    %v226 = vshrl.u32 %v225, 7
    %v227 = vsub.s32 0, %v226
    %v228 = vrot.slane %v223, %v227
    %v234 = vunpack.c.l.b16 %v219
    %v235 = vunpack.c.l.b16 %v220
    %v236 = vunpack.c.l.b16 %v221
    %v237 = vunpack.c.l.b16 %v222
    %v238 = vpack.c.b16 %v235, %v234
    %v239 = vpack.c.b16 %v237, %v236
    %242 = vmatprep.subr.bf16.mxu0 0
    %243 = vmatpush1.bf16.msra.mxu0 %v238
    %244 = vmatprep.subr.bf16.mxu0 0
    %245 = vmatpush1.bf16.msra.mxu0 %v239
    %246 = vmatprep.subr.bf16.mxu0 0
    %247 = vmatpush1.bf16.msra.mxu0 0
    %248 = vmatprep.subr.bf16.mxu0 0
    %249 = vmatpush1.bf16.msra.mxu0 0
    %250 = vmatprep.subr.bf16.mxu0 0
    %251 = vmatpush1.bf16.msra.mxu0 0
    %252 = vmatprep.subr.bf16.mxu0 0
    %253 = vmatpush1.bf16.msra.mxu0 0
    %254 = vmatprep.subr.bf16.mxu0 0
    %255 = vmatpush1.bf16.msra.mxu0 0
    %256 = vmatprep.subr.bf16.mxu0 0
    %257 = vmatpush1.bf16.msra.mxu0 0
    %258 = vmatprep.subr.bf16.mxu0 0
    %259 = vmatpush1.bf16.msra.mxu0 0
    %260 = vmatprep.subr.bf16.mxu0 0
    %261 = vmatpush1.bf16.msra.mxu0 0
    %262 = vmatprep.subr.bf16.mxu0 0
    %263 = vmatpush1.bf16.msra.mxu0 0
    %264 = vmatprep.subr.bf16.mxu0 0
    %265 = vmatpush1.bf16.msra.mxu0 0
    %266 = vmatprep.subr.bf16.mxu0 0
    %267 = vmatpush1.bf16.msra.mxu0 0
    %268 = vmatprep.subr.bf16.mxu0 0
    %269 = vmatpush1.bf16.msra.mxu0 0
    %270 = vmatprep.subr.bf16.mxu0 0
    %271 = vmatpush1.bf16.msra.mxu0 0
    %272 = vmatprep.subr.bf16.mxu0 0
    %273 = vmatpush1.bf16.msra.mxu0 0
    %274 = vmatprep.mubr.bf16.mxu0 0
    %275 = vmatmul.mubr.bf16.gmra.mrb[0].mxu0 %v134
    %v276 = vpop.f32.mrb[0].mxu0
    %v277 = vadd.f32 %v228, %v276
    %v278 = vpop.f32.mrb[0].mxu0
    %v279 = vpop.f32.mrb[0].mxu0
    %v280 = vadd.f32 %v228, %v279
    %v281 = vpop.f32.mrb[0].mxu0
    %282 = vmatprep.mubr.bf16.mxu0 0
    %283 = vmatmul.mubr.bf16.gmra.mrb[0].mxu0 %v137
    %v284 = vpop.f32.mrb[0].mxu0
    %v285 = vadd.f32 %v228, %v284
    %v286 = vpop.f32.mrb[0].mxu0
    %v287 = vpop.f32.mrb[0].mxu0
    %v288 = vadd.f32 %v228, %v287
    %v289 = vpop.f32.mrb[0].mxu0
    %290 = vmatprep.mubr.bf16.mxu0 0
    %291 = vmatmul.mubr.bf16.gmra.mrb[0].mxu0 %v140
    %v292 = vpop.f32.mrb[0].mxu0
    %v293 = vadd.f32 %v228, %v292
    %v294 = vpop.f32.mrb[0].mxu0
    %v295 = vpop.f32.mrb[0].mxu0
    %v296 = vadd.f32 %v228, %v295
    %v297 = vpop.f32.mrb[0].mxu0
    %298 = vmatprep.mubr.bf16.mxu0 0
    %299 = vmatmul.mubr.bf16.gmra.mrb[0].mxu0 %v143
    %v300 = vpop.f32.mrb[0].mxu0
    %v301 = vadd.f32 %v228, %v300
    %v302 = vpop.f32.mrb[0].mxu0
    %v303 = vpop.f32.mrb[0].mxu0
    %v304 = vadd.f32 %v228, %v303
    %v305 = vpop.f32.mrb[0].mxu0
    %306 = vdwg.mxu0
    %307 = vst.msk [vmem:[#allocation3] sm:$0xff] %vm210, %v277
    %308 = vst.msk [vmem:[#allocation3 + $0x8] sm:$0xff] %vm210, %v280
    %309 = vst.msk [vmem:[#allocation3 + $0x10] sm:$0xff] %vm210, %v285
    %310 = vst.msk [vmem:[#allocation3 + $0x18] sm:$0xff] %vm210, %v288
    %311 = vst.msk [vmem:[#allocation3 + $0x20] sm:$0xff] %vm210, %v293
    %312 = vst.msk [vmem:[#allocation3 + $0x28] sm:$0xff] %vm210, %v296
    %313 = vst.msk [vmem:[#allocation3 + $0x30] sm:$0xff] %vm210, %v301
    %314 = vst.msk [vmem:[#allocation3 + $0x38] sm:$0xff] %vm210, %v304
    %v315 = vld [vmem:[%s2] sm:$0xff]
    %v316 = vld [vmem:[%s2 + $0x8] sm:$0xff]
    %v317 = vld [vmem:[%s2 + $0x10] sm:$0xff]
    %v318 = vld [vmem:[%s2 + $0x18] sm:$0xff]
    %v319 = vld [vmem:[%s6] sm:$0xff]
    %v320 = vld [vmem:[%s6 + $0x8] sm:$0xff]
    %v321 = vld [vmem:[%s6 + $0x10] sm:$0xff]
    %v322 = vld [vmem:[%s6 + $0x18] sm:$0xff]
    %v323 = vld [vmem:[%s4] sm:$0x1]
    %v324 = vld [vmem:[#allocation10] sm:$0x1]
    %v325 = vld [vmem:[#allocation2] sm:$0xff]
    %s326 = scalar_lea.vmem [#allocation3], 56
    %v327 = vld [vmem:[%s326] sm:$0xff]
    %v329 = vlaneseq
    %v330 = vshrl.u32 %v329, 7
    %v331 = vsub.s32 0, %v330
    %v332 = vrot.slane %v323, %v331
    %v335 = vsel %vm132, 0.0, 0
    %337 = vmatprep.subr.mxu0 0.0
    %338 = vmatpush1.msra.mxu0 %v315
    %339 = vmatprep.subr.mxu0 0.0
    %340 = vmatpush1.msra.mxu0 %v316
    %341 = vmatprep.subr.mxu0 0.0
    %342 = vmatpush1.msra.mxu0 %v317
    %343 = vmatprep.subr.mxu0 0.0
    %344 = vmatpush1.msra.mxu0 %v318
    %345 = vmatprep.subr.mxu0 0.0
    %346 = vmatpush1.msra.mxu0 0.0
    %347 = vmatprep.subr.mxu0 0.0
    %348 = vmatpush1.msra.mxu0 0.0
    %349 = vmatprep.subr.mxu0 0.0
    %350 = vmatpush1.msra.mxu0 0.0
    %351 = vmatprep.subr.mxu0 0.0
    %352 = vmatpush1.msra.mxu0 0.0
    %353 = vmatprep.subr.mxu0 0.0
    %354 = vmatpush1.msra.mxu0 0.0
    %355 = vmatprep.subr.mxu0 0.0
    %356 = vmatpush1.msra.mxu0 0.0
    %357 = vmatprep.subr.mxu0 0.0
    %358 = vmatpush1.msra.mxu0 0.0
    %359 = vmatprep.subr.mxu0 0.0
    %360 = vmatpush1.msra.mxu0 0.0
    %361 = vmatprep.subr.mxu0 0.0
    %362 = vmatpush1.msra.mxu0 0.0
    %363 = vmatprep.subr.mxu0 0.0
    %364 = vmatpush1.msra.mxu0 0.0
    %365 = vmatprep.subr.mxu0 0.0
    %366 = vmatpush1.msra.mxu0 0.0
    %367 = vmatprep.subr.mxu0 0.0
    %368 = vmatpush1.msra.mxu0 0.0
    %369 = vmatprep.subr.mxu0 0.0
    %370 = vmatpush1.msra.mxu0 0.0
    %371 = vmatprep.subr.mxu0 0.0
    %372 = vmatpush1.msra.mxu0 0.0
    %373 = vmatprep.subr.mxu0 0.0
    %374 = vmatpush1.msra.mxu0 0.0
    %375 = vmatprep.subr.mxu0 0.0
    %376 = vmatpush1.msra.mxu0 0.0
    %377 = vmatprep.subr.mxu0 0.0
    %378 = vmatpush1.msra.mxu0 0.0
    %379 = vmatprep.subr.mxu0 0.0
    %380 = vmatpush1.msra.mxu0 0.0
    %381 = vmatprep.subr.mxu0 0.0
    %382 = vmatpush1.msra.mxu0 0.0
    %383 = vmatprep.subr.mxu0 0.0
    %384 = vmatpush1.msra.mxu0 0.0
    %385 = vmatprep.subr.mxu0 0.0
    %386 = vmatpush1.msra.mxu0 0.0
    %387 = vmatprep.subr.mxu0 0.0
    %388 = vmatpush1.msra.mxu0 0.0
    %389 = vmatprep.subr.mxu0 0.0
    %390 = vmatpush1.msra.mxu0 0.0
    %391 = vmatprep.subr.mxu0 0.0
    %392 = vmatpush1.msra.mxu0 0.0
    %393 = vmatprep.subr.mxu0 0.0
    %394 = vmatpush1.msra.mxu0 0.0
    %395 = vmatprep.subr.mxu0 0.0
    %396 = vmatpush1.msra.mxu0 0.0
    %397 = vmatprep.subr.mxu0 0.0
    %398 = vmatpush1.msra.mxu0 0.0
    %399 = vmatprep.subr.mxu0 0.0
    %400 = vmatpush1.msra.mxu0 0.0
    %401 = vmatprep.mubr.f32.mxu0 0.0
    %402 = vmatmul.mubr.f32.gmra.mrb[0].mxu0 %v335
    %v403 = vpop.f32.mrb[0].mxu0
    %v404 = vadd.f32 %v332, %v403
    %v405 = vpop.f32.mrb[0].mxu0
    %406 = vdwg.mxu0
    %v408 = vlaneseq
    %v409 = vshrl.u32 %v408, 7
    %v410 = vsub.s32 0, %v409
    %v411 = vrot.slane %v324, %v410
    %413 = vmatprep.subr.mxu0 0.0
    %414 = vmatpush1.msra.mxu0 %v319
    %415 = vmatprep.subr.mxu0 0.0
    %416 = vmatpush1.msra.mxu0 %v320
    %417 = vmatprep.subr.mxu0 0.0
    %418 = vmatpush1.msra.mxu0 %v321
    %419 = vmatprep.subr.mxu0 0.0
    %420 = vmatpush1.msra.mxu0 %v322
    %421 = vmatprep.subr.mxu0 0.0
    %422 = vmatpush1.msra.mxu0 0.0
    %423 = vmatprep.subr.mxu0 0.0
    %424 = vmatpush1.msra.mxu0 0.0
    %425 = vmatprep.subr.mxu0 0.0
    %426 = vmatpush1.msra.mxu0 0.0
    %427 = vmatprep.subr.mxu0 0.0
    %428 = vmatpush1.msra.mxu0 0.0
    %429 = vmatprep.subr.mxu0 0.0
    %430 = vmatpush1.msra.mxu0 0.0
    %431 = vmatprep.subr.mxu0 0.0
    %432 = vmatpush1.msra.mxu0 0.0
    %433 = vmatprep.subr.mxu0 0.0
    %434 = vmatpush1.msra.mxu0 0.0
    %435 = vmatprep.subr.mxu0 0.0
    %436 = vmatpush1.msra.mxu0 0.0
    %437 = vmatprep.subr.mxu0 0.0
    %438 = vmatpush1.msra.mxu0 0.0
    %439 = vmatprep.subr.mxu0 0.0
    %440 = vmatpush1.msra.mxu0 0.0
    %441 = vmatprep.subr.mxu0 0.0
    %442 = vmatpush1.msra.mxu0 0.0
    %443 = vmatprep.subr.mxu0 0.0
    %444 = vmatpush1.msra.mxu0 0.0
    %445 = vmatprep.subr.mxu0 0.0
    %446 = vmatpush1.msra.mxu0 0.0
    %447 = vmatprep.subr.mxu0 0.0
    %448 = vmatpush1.msra.mxu0 0.0
    %449 = vmatprep.subr.mxu0 0.0
    %450 = vmatpush1.msra.mxu0 0.0
    %451 = vmatprep.subr.mxu0 0.0
    %452 = vmatpush1.msra.mxu0 0.0
    %453 = vmatprep.subr.mxu0 0.0
    %454 = vmatpush1.msra.mxu0 0.0
    %455 = vmatprep.subr.mxu0 0.0
    %456 = vmatpush1.msra.mxu0 0.0
    %457 = vmatprep.subr.mxu0 0.0
    %458 = vmatpush1.msra.mxu0 0.0
    %459 = vmatprep.subr.mxu0 0.0
    %460 = vmatpush1.msra.mxu0 0.0
    %461 = vmatprep.subr.mxu0 0.0
    %462 = vmatpush1.msra.mxu0 0.0
    %463 = vmatprep.subr.mxu0 0.0
    %464 = vmatpush1.msra.mxu0 0.0
    %465 = vmatprep.subr.mxu0 0.0
    %466 = vmatpush1.msra.mxu0 0.0
    %467 = vmatprep.subr.mxu0 0.0
    %468 = vmatpush1.msra.mxu0 0.0
    %469 = vmatprep.subr.mxu0 0.0
    %470 = vmatpush1.msra.mxu0 0.0
    %471 = vmatprep.subr.mxu0 0.0
    %472 = vmatpush1.msra.mxu0 0.0
    %473 = vmatprep.subr.mxu0 0.0
    %474 = vmatpush1.msra.mxu0 0.0
    %475 = vmatprep.subr.mxu0 0.0
    %476 = vmatpush1.msra.mxu0 0.0
    %477 = vmatprep.mubr.f32.mxu0 0.0
    %478 = vmatmul.mubr.f32.gmra.mrb[0].mxu0 %v335
    %v479 = vpop.f32.mrb[0].mxu0
    %v480 = vadd.f32 %v411, %v479
    %v481 = vpop.f32.mrb[0].mxu0
    %482 = vdwg.mxu0
    %v483 = vadd.f32 %v325, %v404
    %v484 = vxor.u32 %v483, 2147483648
    %v485 = vmul.f32 %v484, 1.442695
    %v486 = vpow.pop %v485
    %v487 = vadd.f32 %v486, 1.0
    %v488 = vrcp.pop %v487
    %v489 = vmul.f32 1.0, %v488
    %491 = vrot.lane.b32.xlu0 %v404, 64
    %v492 = vpop.permute.xlu0 %491
    %v494 = vmul.f32 %v489, %v492
    %496 = vrot.lane.b32.xlu0 %v494, 64
    %v497 = vpop.permute.xlu0 %496
    %v499 = vadd.f32 %v325, %v497
    %v500 = vtanh.pop %v499
    %v501 = vsub.f32 1.0, %v489
    %503 = vrot.lane.b32.xlu0 %v500, 96
    %v504 = vpop.permute.xlu0 %503
    %v506 = vmul.f32 %v501, %v504
    %v507 = vmul.f32 %v489, 0.0
    %v508 = vadd.f32 %v506, %v507
    %v509 = vadd.f32 %v327, %v480
    %v510 = vxor.u32 %v509, 2147483648
    %v511 = vmul.f32 %v510, 1.442695
    %v512 = vpow.pop %v511
    %v513 = vadd.f32 %v512, 1.0
    %v514 = vrcp.pop %v513
    %v515 = vmul.f32 1.0, %v514
    %517 = vrot.lane.b32.xlu0 %v480, 64
    %v518 = vpop.permute.xlu0 %517
    %v520 = vmul.f32 %v515, %v518
    %522 = vrot.lane.b32.xlu0 %v520, 64
    %v523 = vpop.permute.xlu0 %522
    %v525 = vadd.f32 %v327, %v523
    %v526 = vtanh.pop %v525
    %v527 = vsub.f32 1.0, %v515
    %529 = vrot.lane.b32.xlu0 %v526, 96
    %v530 = vpop.permute.xlu0 %529
    %v532 = vmul.f32 %v527, %v530
    %v533 = vmul.f32 %v515, 0.0
    %v534 = vadd.f32 %v532, %v533
    %v535 = vadd.f32 %v508, 0.0
    %v536 = vadd.f32 %v534, 0.0
    %s537 = scalar_lea.vmem [#allocation2], 8
    %v538 = vld [vmem:[%s537] sm:$0xff]
    %s539 = scalar_lea.vmem [#allocation3], 48
    %v540 = vld [vmem:[%s539] sm:$0xff]
    %542 = vrot.lane.b32.xlu0 %v508, 96
    %v543 = vpop.permute.xlu0 %542
    %v544 = vsel %vm132, %v543, 0
    %546 = vmatprep.subr.mxu0 0.0
    %547 = vmatpush1.msra.mxu0 %v315
    %548 = vmatprep.subr.mxu0 0.0
    %549 = vmatpush1.msra.mxu0 %v316
    %550 = vmatprep.subr.mxu0 0.0
    %551 = vmatpush1.msra.mxu0 %v317
    %552 = vmatprep.subr.mxu0 0.0
    %553 = vmatpush1.msra.mxu0 %v318
    %554 = vmatprep.subr.mxu0 0.0
    %555 = vmatpush1.msra.mxu0 0.0
    %556 = vmatprep.subr.mxu0 0.0
    %557 = vmatpush1.msra.mxu0 0.0
    %558 = vmatprep.subr.mxu0 0.0
    %559 = vmatpush1.msra.mxu0 0.0
    %560 = vmatprep.subr.mxu0 0.0
    %561 = vmatpush1.msra.mxu0 0.0
    %562 = vmatprep.subr.mxu0 0.0
    %563 = vmatpush1.msra.mxu0 0.0
    %564 = vmatprep.subr.mxu0 0.0
    %565 = vmatpush1.msra.mxu0 0.0
    %566 = vmatprep.subr.mxu0 0.0
    %567 = vmatpush1.msra.mxu0 0.0
    %568 = vmatprep.subr.mxu0 0.0
    %569 = vmatpush1.msra.mxu0 0.0
    %570 = vmatprep.subr.mxu0 0.0
    %571 = vmatpush1.msra.mxu0 0.0
    %572 = vmatprep.subr.mxu0 0.0
    %573 = vmatpush1.msra.mxu0 0.0
    %574 = vmatprep.subr.mxu0 0.0
    %575 = vmatpush1.msra.mxu0 0.0
    %576 = vmatprep.subr.mxu0 0.0
    %577 = vmatpush1.msra.mxu0 0.0
    %578 = vmatprep.subr.mxu0 0.0
    %579 = vmatpush1.msra.mxu0 0.0
    %580 = vmatprep.subr.mxu0 0.0
    %581 = vmatpush1.msra.mxu0 0.0
    %582 = vmatprep.subr.mxu0 0.0
    %583 = vmatpush1.msra.mxu0 0.0
    %584 = vmatprep.subr.mxu0 0.0
    %585 = vmatpush1.msra.mxu0 0.0
    %586 = vmatprep.subr.mxu0 0.0
    %587 = vmatpush1.msra.mxu0 0.0
    %588 = vmatprep.subr.mxu0 0.0
    %589 = vmatpush1.msra.mxu0 0.0
    %590 = vmatprep.subr.mxu0 0.0
    %591 = vmatpush1.msra.mxu0 0.0
    %592 = vmatprep.subr.mxu0 0.0
    %593 = vmatpush1.msra.mxu0 0.0
    %594 = vmatprep.subr.mxu0 0.0
    %595 = vmatpush1.msra.mxu0 0.0
    %596 = vmatprep.subr.mxu0 0.0
    %597 = vmatpush1.msra.mxu0 0.0
    %598 = vmatprep.subr.mxu0 0.0
    %599 = vmatpush1.msra.mxu0 0.0
    %600 = vmatprep.subr.mxu0 0.0
    %601 = vmatpush1.msra.mxu0 0.0
    %602 = vmatprep.subr.mxu0 0.0
    %603 = vmatpush1.msra.mxu0 0.0
    %604 = vmatprep.subr.mxu0 0.0
    %605 = vmatpush1.msra.mxu0 0.0
    %606 = vmatprep.subr.mxu0 0.0
    %607 = vmatpush1.msra.mxu0 0.0
    %608 = vmatprep.subr.mxu0 0.0
    %609 = vmatpush1.msra.mxu0 0.0
    %610 = vmatprep.mubr.f32.mxu0 0.0
    %611 = vmatmul.mubr.f32.gmra.mrb[0].mxu0 %v544
    %v612 = vpop.f32.mrb[0].mxu0
    %v613 = vadd.f32 %v332, %v612
    %v614 = vpop.f32.mrb[0].mxu0
    %615 = vdwg.mxu0
    %617 = vrot.lane.b32.xlu0 %v534, 96
    %v618 = vpop.permute.xlu0 %617
    %v619 = vsel %vm132, %v618, 0
    %621 = vmatprep.subr.mxu0 0.0
    %622 = vmatpush1.msra.mxu0 %v319
    %623 = vmatprep.subr.mxu0 0.0
    %624 = vmatpush1.msra.mxu0 %v320
    %625 = vmatprep.subr.mxu0 0.0
    %626 = vmatpush1.msra.mxu0 %v321
    %627 = vmatprep.subr.mxu0 0.0
    %628 = vmatpush1.msra.mxu0 %v322
    %629 = vmatprep.subr.mxu0 0.0
    %630 = vmatpush1.msra.mxu0 0.0
    %631 = vmatprep.subr.mxu0 0.0
    %632 = vmatpush1.msra.mxu0 0.0
    %633 = vmatprep.subr.mxu0 0.0
    %634 = vmatpush1.msra.mxu0 0.0
    %635 = vmatprep.subr.mxu0 0.0
    %636 = vmatpush1.msra.mxu0 0.0
    %637 = vmatprep.subr.mxu0 0.0
    %638 = vmatpush1.msra.mxu0 0.0
    %639 = vmatprep.subr.mxu0 0.0
    %640 = vmatpush1.msra.mxu0 0.0
    %641 = vmatprep.subr.mxu0 0.0
    %642 = vmatpush1.msra.mxu0 0.0
    %643 = vmatprep.subr.mxu0 0.0
    %644 = vmatpush1.msra.mxu0 0.0
    %645 = vmatprep.subr.mxu0 0.0
    %646 = vmatpush1.msra.mxu0 0.0
    %647 = vmatprep.subr.mxu0 0.0
    %648 = vmatpush1.msra.mxu0 0.0
    %649 = vmatprep.subr.mxu0 0.0
    %650 = vmatpush1.msra.mxu0 0.0
    %651 = vmatprep.subr.mxu0 0.0
    %652 = vmatpush1.msra.mxu0 0.0
    %653 = vmatprep.subr.mxu0 0.0
    %654 = vmatpush1.msra.mxu0 0.0
    %655 = vmatprep.subr.mxu0 0.0
    %656 = vmatpush1.msra.mxu0 0.0
    %657 = vmatprep.subr.mxu0 0.0
    %658 = vmatpush1.msra.mxu0 0.0
    %659 = vmatprep.subr.mxu0 0.0
    %660 = vmatpush1.msra.mxu0 0.0
    %661 = vmatprep.subr.mxu0 0.0
    %662 = vmatpush1.msra.mxu0 0.0
    %663 = vmatprep.subr.mxu0 0.0
    %664 = vmatpush1.msra.mxu0 0.0
    %665 = vmatprep.subr.mxu0 0.0
    %666 = vmatpush1.msra.mxu0 0.0
    %667 = vmatprep.subr.mxu0 0.0
    %668 = vmatpush1.msra.mxu0 0.0
    %669 = vmatprep.subr.mxu0 0.0
    %670 = vmatpush1.msra.mxu0 0.0
    %671 = vmatprep.subr.mxu0 0.0
    %672 = vmatpush1.msra.mxu0 0.0
    %673 = vmatprep.subr.mxu0 0.0
    %674 = vmatpush1.msra.mxu0 0.0
    %675 = vmatprep.subr.mxu0 0.0
    %676 = vmatpush1.msra.mxu0 0.0
    %677 = vmatprep.subr.mxu0 0.0
    %678 = vmatpush1.msra.mxu0 0.0
    %679 = vmatprep.subr.mxu0 0.0
    %680 = vmatpush1.msra.mxu0 0.0
    %681 = vmatprep.subr.mxu0 0.0
    %682 = vmatpush1.msra.mxu0 0.0
    %683 = vmatprep.subr.mxu0 0.0
    %684 = vmatpush1.msra.mxu0 0.0
    %685 = vmatprep.mubr.f32.mxu0 0.0
    %686 = vmatmul.mubr.f32.gmra.mrb[0].mxu0 %v619
    %v687 = vpop.f32.mrb[0].mxu0
    %v688 = vadd.f32 %v411, %v687
    %v689 = vpop.f32.mrb[0].mxu0
    %690 = vdwg.mxu0
    %v691 = vadd.f32 %v538, %v613
    %v692 = vxor.u32 %v691, 2147483648
    %v693 = vmul.f32 %v692, 1.442695
    %v694 = vpow.pop %v693
    %v695 = vadd.f32 %v694, 1.0
    %v696 = vrcp.pop %v695
    %v697 = vmul.f32 1.0, %v696
    %699 = vrot.lane.b32.xlu0 %v613, 64
    %v700 = vpop.permute.xlu0 %699
    %v702 = vmul.f32 %v697, %v700
    %704 = vrot.lane.b32.xlu0 %v702, 64
    %v705 = vpop.permute.xlu0 %704
    %v707 = vadd.f32 %v538, %v705
    %v708 = vtanh.pop %v707
    %v709 = vsub.f32 1.0, %v697
    %711 = vrot.lane.b32.xlu0 %v708, 96
    %v712 = vpop.permute.xlu0 %711
    %v714 = vmul.f32 %v709, %v712
    %v715 = vmul.f32 %v697, %v508
    %v716 = vadd.f32 %v714, %v715
    %v717 = vadd.f32 %v540, %v688
    %v718 = vxor.u32 %v717, 2147483648
    %v719 = vmul.f32 %v718, 1.442695
    %v720 = vpow.pop %v719
    %v721 = vadd.f32 %v720, 1.0
    %v722 = vrcp.pop %v721
    %v723 = vmul.f32 1.0, %v722
    %725 = vrot.lane.b32.xlu0 %v688, 64
    %v726 = vpop.permute.xlu0 %725
    %v728 = vmul.f32 %v723, %v726
    %730 = vrot.lane.b32.xlu0 %v728, 64
    %v731 = vpop.permute.xlu0 %730
    %v733 = vadd.f32 %v540, %v731
    %v734 = vtanh.pop %v733
    %v735 = vsub.f32 1.0, %v723
    %737 = vrot.lane.b32.xlu0 %v734, 96
    %v738 = vpop.permute.xlu0 %737
    %v740 = vmul.f32 %v735, %v738
    %v741 = vmul.f32 %v723, %v534
    %v742 = vadd.f32 %v740, %v741
    %v743 = vmax.f32 %v508, %v716
    %v744 = vmax.f32 %v534, %v742
    %v745 = vadd.f32 %v535, %v716
    %v746 = vadd.f32 %v536, %v742
    %s747 = scalar_lea.vmem [#allocation2], 16
    %v748 = vld [vmem:[%s747] sm:$0xff]
    %s749 = scalar_lea.vmem [#allocation3], 40
    %v750 = vld [vmem:[%s749] sm:$0xff]
    %752 = vrot.lane.b32.xlu0 %v716, 96
    %v753 = vpop.permute.xlu0 %752
    %v754 = vsel %vm132, %v753, 0
    %756 = vmatprep.subr.mxu0 0.0
    %757 = vmatpush1.msra.mxu0 %v315
    %758 = vmatprep.subr.mxu0 0.0
    %759 = vmatpush1.msra.mxu0 %v316
    %760 = vmatprep.subr.mxu0 0.0
    %761 = vmatpush1.msra.mxu0 %v317
    %762 = vmatprep.subr.mxu0 0.0
    %763 = vmatpush1.msra.mxu0 %v318
    %764 = vmatprep.subr.mxu0 0.0
    %765 = vmatpush1.msra.mxu0 0.0
    %766 = vmatprep.subr.mxu0 0.0
    %767 = vmatpush1.msra.mxu0 0.0
    %768 = vmatprep.subr.mxu0 0.0
    %769 = vmatpush1.msra.mxu0 0.0
    %770 = vmatprep.subr.mxu0 0.0
    %771 = vmatpush1.msra.mxu0 0.0
    %772 = vmatprep.subr.mxu0 0.0
    %773 = vmatpush1.msra.mxu0 0.0
    %774 = vmatprep.subr.mxu0 0.0
    %775 = vmatpush1.msra.mxu0 0.0
    %776 = vmatprep.subr.mxu0 0.0
    %777 = vmatpush1.msra.mxu0 0.0
    %778 = vmatprep.subr.mxu0 0.0
    %779 = vmatpush1.msra.mxu0 0.0
    %780 = vmatprep.subr.mxu0 0.0
    %781 = vmatpush1.msra.mxu0 0.0
    %782 = vmatprep.subr.mxu0 0.0
    %783 = vmatpush1.msra.mxu0 0.0
    %784 = vmatprep.subr.mxu0 0.0
    %785 = vmatpush1.msra.mxu0 0.0
    %786 = vmatprep.subr.mxu0 0.0
    %787 = vmatpush1.msra.mxu0 0.0
    %788 = vmatprep.subr.mxu0 0.0
    %789 = vmatpush1.msra.mxu0 0.0
    %790 = vmatprep.subr.mxu0 0.0
    %791 = vmatpush1.msra.mxu0 0.0
    %792 = vmatprep.subr.mxu0 0.0
    %793 = vmatpush1.msra.mxu0 0.0
    %794 = vmatprep.subr.mxu0 0.0
    %795 = vmatpush1.msra.mxu0 0.0
    %796 = vmatprep.subr.mxu0 0.0
    %797 = vmatpush1.msra.mxu0 0.0
    %798 = vmatprep.subr.mxu0 0.0
    %799 = vmatpush1.msra.mxu0 0.0
    %800 = vmatprep.subr.mxu0 0.0
    %801 = vmatpush1.msra.mxu0 0.0
    %802 = vmatprep.subr.mxu0 0.0
    %803 = vmatpush1.msra.mxu0 0.0
    %804 = vmatprep.subr.mxu0 0.0
    %805 = vmatpush1.msra.mxu0 0.0
    %806 = vmatprep.subr.mxu0 0.0
    %807 = vmatpush1.msra.mxu0 0.0
    %808 = vmatprep.subr.mxu0 0.0
    %809 = vmatpush1.msra.mxu0 0.0
    %810 = vmatprep.subr.mxu0 0.0
    %811 = vmatpush1.msra.mxu0 0.0
    %812 = vmatprep.subr.mxu0 0.0
    %813 = vmatpush1.msra.mxu0 0.0
    %814 = vmatprep.subr.mxu0 0.0
    %815 = vmatpush1.msra.mxu0 0.0
    %816 = vmatprep.subr.mxu0 0.0
    %817 = vmatpush1.msra.mxu0 0.0
    %818 = vmatprep.subr.mxu0 0.0
    %819 = vmatpush1.msra.mxu0 0.0
    %820 = vmatprep.mubr.f32.mxu0 0.0
    %821 = vmatmul.mubr.f32.gmra.mrb[0].mxu0 %v754
    %v822 = vpop.f32.mrb[0].mxu0
    %v823 = vadd.f32 %v332, %v822
    %v824 = vpop.f32.mrb[0].mxu0
    %825 = vdwg.mxu0
    %827 = vrot.lane.b32.xlu0 %v742, 96
    %v828 = vpop.permute.xlu0 %827
    %v829 = vsel %vm132, %v828, 0
    %831 = vmatprep.subr.mxu0 0.0
    %832 = vmatpush1.msra.mxu0 %v319
    %833 = vmatprep.subr.mxu0 0.0
    %834 = vmatpush1.msra.mxu0 %v320
    %835 = vmatprep.subr.mxu0 0.0
    %836 = vmatpush1.msra.mxu0 %v321
    %837 = vmatprep.subr.mxu0 0.0
    %838 = vmatpush1.msra.mxu0 %v322
    %839 = vmatprep.subr.mxu0 0.0
    %840 = vmatpush1.msra.mxu0 0.0
    %841 = vmatprep.subr.mxu0 0.0
    %842 = vmatpush1.msra.mxu0 0.0
    %843 = vmatprep.subr.mxu0 0.0
    %844 = vmatpush1.msra.mxu0 0.0
    %845 = vmatprep.subr.mxu0 0.0
    %846 = vmatpush1.msra.mxu0 0.0
    %847 = vmatprep.subr.mxu0 0.0
    %848 = vmatpush1.msra.mxu0 0.0
    %849 = vmatprep.subr.mxu0 0.0
    %850 = vmatpush1.msra.mxu0 0.0
    %851 = vmatprep.subr.mxu0 0.0
    %852 = vmatpush1.msra.mxu0 0.0
    %853 = vmatprep.subr.mxu0 0.0
    %854 = vmatpush1.msra.mxu0 0.0
    %855 = vmatprep.subr.mxu0 0.0
    %856 = vmatpush1.msra.mxu0 0.0
    %857 = vmatprep.subr.mxu0 0.0
    %858 = vmatpush1.msra.mxu0 0.0
    %859 = vmatprep.subr.mxu0 0.0
    %860 = vmatpush1.msra.mxu0 0.0
    %861 = vmatprep.subr.mxu0 0.0
    %862 = vmatpush1.msra.mxu0 0.0
    %863 = vmatprep.subr.mxu0 0.0
    %864 = vmatpush1.msra.mxu0 0.0
    %865 = vmatprep.subr.mxu0 0.0
    %866 = vmatpush1.msra.mxu0 0.0
    %867 = vmatprep.subr.mxu0 0.0
    %868 = vmatpush1.msra.mxu0 0.0
    %869 = vmatprep.subr.mxu0 0.0
    %870 = vmatpush1.msra.mxu0 0.0
    %871 = vmatprep.subr.mxu0 0.0
    %872 = vmatpush1.msra.mxu0 0.0
    %873 = vmatprep.subr.mxu0 0.0
    %874 = vmatpush1.msra.mxu0 0.0
    %875 = vmatprep.subr.mxu0 0.0
    %876 = vmatpush1.msra.mxu0 0.0
    %877 = vmatprep.subr.mxu0 0.0
    %878 = vmatpush1.msra.mxu0 0.0
    %879 = vmatprep.subr.mxu0 0.0
    %880 = vmatpush1.msra.mxu0 0.0
    %881 = vmatprep.subr.mxu0 0.0
    %882 = vmatpush1.msra.mxu0 0.0
    %883 = vmatprep.subr.mxu0 0.0
    %884 = vmatpush1.msra.mxu0 0.0
    %885 = vmatprep.subr.mxu0 0.0
    %886 = vmatpush1.msra.mxu0 0.0
    %887 = vmatprep.subr.mxu0 0.0
    %888 = vmatpush1.msra.mxu0 0.0
    %889 = vmatprep.subr.mxu0 0.0
    %890 = vmatpush1.msra.mxu0 0.0
    %891 = vmatprep.subr.mxu0 0.0
    %892 = vmatpush1.msra.mxu0 0.0
    %893 = vmatprep.subr.mxu0 0.0
    %894 = vmatpush1.msra.mxu0 0.0
    %895 = vmatprep.mubr.f32.mxu0 0.0
    %896 = vmatmul.mubr.f32.gmra.mrb[0].mxu0 %v829
    %v897 = vpop.f32.mrb[0].mxu0
    %v898 = vadd.f32 %v411, %v897
    %v899 = vpop.f32.mrb[0].mxu0
    %900 = vdwg.mxu0
    %v901 = vadd.f32 %v748, %v823
    %v902 = vxor.u32 %v901, 2147483648
    %v903 = vmul.f32 %v902, 1.442695
    %v904 = vpow.pop %v903
    %v905 = vadd.f32 %v904, 1.0
    %v906 = vrcp.pop %v905
    %v907 = vmul.f32 1.0, %v906
    %909 = vrot.lane.b32.xlu0 %v823, 64
    %v910 = vpop.permute.xlu0 %909
    %v912 = vmul.f32 %v907, %v910
    %914 = vrot.lane.b32.xlu0 %v912, 64
    %v915 = vpop.permute.xlu0 %914
    %v917 = vadd.f32 %v748, %v915
    %v918 = vtanh.pop %v917
    %v919 = vsub.f32 1.0, %v907
    %921 = vrot.lane.b32.xlu0 %v918, 96
    %v922 = vpop.permute.xlu0 %921
    %v924 = vmul.f32 %v919, %v922
    %v925 = vmul.f32 %v907, %v716
    %v926 = vadd.f32 %v924, %v925
    %v927 = vadd.f32 %v750, %v898
    %v928 = vxor.u32 %v927, 2147483648
    %v929 = vmul.f32 %v928, 1.442695
    %v930 = vpow.pop %v929
    %v931 = vadd.f32 %v930, 1.0
    %v932 = vrcp.pop %v931
    %v933 = vmul.f32 1.0, %v932
    %935 = vrot.lane.b32.xlu0 %v898, 64
    %v936 = vpop.permute.xlu0 %935
    %v938 = vmul.f32 %v933, %v936
    %940 = vrot.lane.b32.xlu0 %v938, 64
    %v941 = vpop.permute.xlu0 %940
    %v943 = vadd.f32 %v750, %v941
    %v944 = vtanh.pop %v943
    %v945 = vsub.f32 1.0, %v933
    %947 = vrot.lane.b32.xlu0 %v944, 96
    %v948 = vpop.permute.xlu0 %947
    %v950 = vmul.f32 %v945, %v948
    %v951 = vmul.f32 %v933, %v742
    %v952 = vadd.f32 %v950, %v951
    %v953 = vmax.f32 %v743, %v926
    %v954 = vmax.f32 %v744, %v952
    %v955 = vadd.f32 %v745, %v926
    %v956 = vadd.f32 %v746, %v952
    %s957 = scalar_lea.vmem [#allocation2], 24
    %v958 = vld [vmem:[%s957] sm:$0xff]
    %s959 = scalar_lea.vmem [#allocation3], 32
    %v960 = vld [vmem:[%s959] sm:$0xff]
    %962 = vrot.lane.b32.xlu0 %v926, 96
    %v963 = vpop.permute.xlu0 %962
    %v964 = vsel %vm132, %v963, 0
    %966 = vmatprep.subr.mxu0 0.0
    %967 = vmatpush1.msra.mxu0 %v315
    %968 = vmatprep.subr.mxu0 0.0
    %969 = vmatpush1.msra.mxu0 %v316
    %970 = vmatprep.subr.mxu0 0.0
    %971 = vmatpush1.msra.mxu0 %v317
    %972 = vmatprep.subr.mxu0 0.0
    %973 = vmatpush1.msra.mxu0 %v318
    %974 = vmatprep.subr.mxu0 0.0
    %975 = vmatpush1.msra.mxu0 0.0
    %976 = vmatprep.subr.mxu0 0.0
    %977 = vmatpush1.msra.mxu0 0.0
    %978 = vmatprep.subr.mxu0 0.0
    %979 = vmatpush1.msra.mxu0 0.0
    %980 = vmatprep.subr.mxu0 0.0
    %981 = vmatpush1.msra.mxu0 0.0
    %982 = vmatprep.subr.mxu0 0.0
    %983 = vmatpush1.msra.mxu0 0.0
    %984 = vmatprep.subr.mxu0 0.0
    %985 = vmatpush1.msra.mxu0 0.0
    %986 = vmatprep.subr.mxu0 0.0
    %987 = vmatpush1.msra.mxu0 0.0
    %988 = vmatprep.subr.mxu0 0.0
    %989 = vmatpush1.msra.mxu0 0.0
    %990 = vmatprep.subr.mxu0 0.0
    %991 = vmatpush1.msra.mxu0 0.0
    %992 = vmatprep.subr.mxu0 0.0
    %993 = vmatpush1.msra.mxu0 0.0
    %994 = vmatprep.subr.mxu0 0.0
    %995 = vmatpush1.msra.mxu0 0.0
    %996 = vmatprep.subr.mxu0 0.0
    %997 = vmatpush1.msra.mxu0 0.0
    %998 = vmatprep.subr.mxu0 0.0
    %999 = vmatpush1.msra.mxu0 0.0
    %1000 = vmatprep.subr.mxu0 0.0
    %1001 = vmatpush1.msra.mxu0 0.0
    %1002 = vmatprep.subr.mxu0 0.0
    %1003 = vmatpush1.msra.mxu0 0.0
    %1004 = vmatprep.subr.mxu0 0.0
    %1005 = vmatpush1.msra.mxu0 0.0
    %1006 = vmatprep.subr.mxu0 0.0
    %1007 = vmatpush1.msra.mxu0 0.0
    %1008 = vmatprep.subr.mxu0 0.0
    %1009 = vmatpush1.msra.mxu0 0.0
    %1010 = vmatprep.subr.mxu0 0.0
    %1011 = vmatpush1.msra.mxu0 0.0
    %1012 = vmatprep.subr.mxu0 0.0
    %1013 = vmatpush1.msra.mxu0 0.0
    %1014 = vmatprep.subr.mxu0 0.0
    %1015 = vmatpush1.msra.mxu0 0.0
    %1016 = vmatprep.subr.mxu0 0.0
    %1017 = vmatpush1.msra.mxu0 0.0
    %1018 = vmatprep.subr.mxu0 0.0
    %1019 = vmatpush1.msra.mxu0 0.0
    %1020 = vmatprep.subr.mxu0 0.0
    %1021 = vmatpush1.msra.mxu0 0.0
    %1022 = vmatprep.subr.mxu0 0.0
    %1023 = vmatpush1.msra.mxu0 0.0
    %1024 = vmatprep.subr.mxu0 0.0
    %1025 = vmatpush1.msra.mxu0 0.0
    %1026 = vmatprep.subr.mxu0 0.0
    %1027 = vmatpush1.msra.mxu0 0.0
    %1028 = vmatprep.subr.mxu0 0.0
    %1029 = vmatpush1.msra.mxu0 0.0
    %1030 = vmatprep.mubr.f32.mxu0 0.0
    %1031 = vmatmul.mubr.f32.gmra.mrb[0].mxu0 %v964
    %v1032 = vpop.f32.mrb[0].mxu0
    %v1033 = vadd.f32 %v332, %v1032
    %v1034 = vpop.f32.mrb[0].mxu0
    %1035 = vdwg.mxu0
    %1037 = vrot.lane.b32.xlu0 %v952, 96
    %v1038 = vpop.permute.xlu0 %1037
    %v1039 = vsel %vm132, %v1038, 0
    %1041 = vmatprep.subr.mxu0 0.0
    %1042 = vmatpush1.msra.mxu0 %v319
    %1043 = vmatprep.subr.mxu0 0.0
    %1044 = vmatpush1.msra.mxu0 %v320
    %1045 = vmatprep.subr.mxu0 0.0
    %1046 = vmatpush1.msra.mxu0 %v321
    %1047 = vmatprep.subr.mxu0 0.0
    %1048 = vmatpush1.msra.mxu0 %v322
    %1049 = vmatprep.subr.mxu0 0.0
    %1050 = vmatpush1.msra.mxu0 0.0
    %1051 = vmatprep.subr.mxu0 0.0
    %1052 = vmatpush1.msra.mxu0 0.0
    %1053 = vmatprep.subr.mxu0 0.0
    %1054 = vmatpush1.msra.mxu0 0.0
    %1055 = vmatprep.subr.mxu0 0.0
    %1056 = vmatpush1.msra.mxu0 0.0
    %1057 = vmatprep.subr.mxu0 0.0
    %1058 = vmatpush1.msra.mxu0 0.0
    %1059 = vmatprep.subr.mxu0 0.0
    %1060 = vmatpush1.msra.mxu0 0.0
    %1061 = vmatprep.subr.mxu0 0.0
    %1062 = vmatpush1.msra.mxu0 0.0
    %1063 = vmatprep.subr.mxu0 0.0
    %1064 = vmatpush1.msra.mxu0 0.0
    %1065 = vmatprep.subr.mxu0 0.0
    %1066 = vmatpush1.msra.mxu0 0.0
    %1067 = vmatprep.subr.mxu0 0.0
    %1068 = vmatpush1.msra.mxu0 0.0
    %1069 = vmatprep.subr.mxu0 0.0
    %1070 = vmatpush1.msra.mxu0 0.0
    %1071 = vmatprep.subr.mxu0 0.0
    %1072 = vmatpush1.msra.mxu0 0.0
    %1073 = vmatprep.subr.mxu0 0.0
    %1074 = vmatpush1.msra.mxu0 0.0
    %1075 = vmatprep.subr.mxu0 0.0
    %1076 = vmatpush1.msra.mxu0 0.0
    %1077 = vmatprep.subr.mxu0 0.0
    %1078 = vmatpush1.msra.mxu0 0.0
    %1079 = vmatprep.subr.mxu0 0.0
    %1080 = vmatpush1.msra.mxu0 0.0
    %1081 = vmatprep.subr.mxu0 0.0
    %1082 = vmatpush1.msra.mxu0 0.0
    %1083 = vmatprep.subr.mxu0 0.0
    %1084 = vmatpush1.msra.mxu0 0.0
    %1085 = vmatprep.subr.mxu0 0.0
    %1086 = vmatpush1.msra.mxu0 0.0
    %1087 = vmatprep.subr.mxu0 0.0
    %1088 = vmatpush1.msra.mxu0 0.0
    %1089 = vmatprep.subr.mxu0 0.0
    %1090 = vmatpush1.msra.mxu0 0.0
    %1091 = vmatprep.subr.mxu0 0.0
    %1092 = vmatpush1.msra.mxu0 0.0
    %1093 = vmatprep.subr.mxu0 0.0
    %1094 = vmatpush1.msra.mxu0 0.0
    %1095 = vmatprep.subr.mxu0 0.0
    %1096 = vmatpush1.msra.mxu0 0.0
    %1097 = vmatprep.subr.mxu0 0.0
    %1098 = vmatpush1.msra.mxu0 0.0
    %1099 = vmatprep.subr.mxu0 0.0
    %1100 = vmatpush1.msra.mxu0 0.0
    %1101 = vmatprep.subr.mxu0 0.0
    %1102 = vmatpush1.msra.mxu0 0.0
    %1103 = vmatprep.subr.mxu0 0.0
    %1104 = vmatpush1.msra.mxu0 0.0
    %1105 = vmatprep.mubr.f32.mxu0 0.0
    %1106 = vmatmul.mubr.f32.gmra.mrb[0].mxu0 %v1039
    %v1107 = vpop.f32.mrb[0].mxu0
    %v1108 = vadd.f32 %v411, %v1107
    %v1109 = vpop.f32.mrb[0].mxu0
    %1110 = vdwg.mxu0
    %v1111 = vadd.f32 %v958, %v1033
    %v1112 = vxor.u32 %v1111, 2147483648
    %v1113 = vmul.f32 %v1112, 1.442695
    %v1114 = vpow.pop %v1113
    %v1115 = vadd.f32 %v1114, 1.0
    %v1116 = vrcp.pop %v1115
    %v1117 = vmul.f32 1.0, %v1116
    %1119 = vrot.lane.b32.xlu0 %v1033, 64
    %v1120 = vpop.permute.xlu0 %1119
    %v1122 = vmul.f32 %v1117, %v1120
    %1124 = vrot.lane.b32.xlu0 %v1122, 64
    %v1125 = vpop.permute.xlu0 %1124
    %v1127 = vadd.f32 %v958, %v1125
    %v1128 = vtanh.pop %v1127
    %v1129 = vsub.f32 1.0, %v1117
    %1131 = vrot.lane.b32.xlu0 %v1128, 96
    %v1132 = vpop.permute.xlu0 %1131
    %v1134 = vmul.f32 %v1129, %v1132
    %v1135 = vmul.f32 %v1117, %v926
    %v1136 = vadd.f32 %v1134, %v1135
    %v1137 = vadd.f32 %v960, %v1108
    %v1138 = vxor.u32 %v1137, 2147483648
    %v1139 = vmul.f32 %v1138, 1.442695
    %v1140 = vpow.pop %v1139
    %v1141 = vadd.f32 %v1140, 1.0
    %v1142 = vrcp.pop %v1141
    %v1143 = vmul.f32 1.0, %v1142
    %1145 = vrot.lane.b32.xlu0 %v1108, 64
    %v1146 = vpop.permute.xlu0 %1145
    %v1148 = vmul.f32 %v1143, %v1146
    %1150 = vrot.lane.b32.xlu0 %v1148, 64
    %v1151 = vpop.permute.xlu0 %1150
    %v1153 = vadd.f32 %v960, %v1151
    %v1154 = vtanh.pop %v1153
    %v1155 = vsub.f32 1.0, %v1143
    %1157 = vrot.lane.b32.xlu0 %v1154, 96
    %v1158 = vpop.permute.xlu0 %1157
    %v1160 = vmul.f32 %v1155, %v1158
    %v1161 = vmul.f32 %v1143, %v952
    %v1162 = vadd.f32 %v1160, %v1161
    %v1163 = vmax.f32 %v953, %v1136
    %v1164 = vmax.f32 %v954, %v1162
    %v1165 = vadd.f32 %v955, %v1136
    %v1166 = vadd.f32 %v956, %v1162
    %s1167 = scalar_lea.vmem [#allocation2], 32
    %v1168 = vld [vmem:[%s1167] sm:$0xff]
    %s1169 = scalar_lea.vmem [#allocation3], 24
    %v1170 = vld [vmem:[%s1169] sm:$0xff]
    %1172 = vrot.lane.b32.xlu0 %v1136, 96
    %v1173 = vpop.permute.xlu0 %1172
    %v1174 = vsel %vm132, %v1173, 0
    %1176 = vmatprep.subr.mxu0 0.0
    %1177 = vmatpush1.msra.mxu0 %v315
    %1178 = vmatprep.subr.mxu0 0.0
    %1179 = vmatpush1.msra.mxu0 %v316
    %1180 = vmatprep.subr.mxu0 0.0
    %1181 = vmatpush1.msra.mxu0 %v317
    %1182 = vmatprep.subr.mxu0 0.0
    %1183 = vmatpush1.msra.mxu0 %v318
    %1184 = vmatprep.subr.mxu0 0.0
    %1185 = vmatpush1.msra.mxu0 0.0
    %1186 = vmatprep.subr.mxu0 0.0
    %1187 = vmatpush1.msra.mxu0 0.0
    %1188 = vmatprep.subr.mxu0 0.0
    %1189 = vmatpush1.msra.mxu0 0.0
    %1190 = vmatprep.subr.mxu0 0.0
    %1191 = vmatpush1.msra.mxu0 0.0
    %1192 = vmatprep.subr.mxu0 0.0
    %1193 = vmatpush1.msra.mxu0 0.0
    %1194 = vmatprep.subr.mxu0 0.0
    %1195 = vmatpush1.msra.mxu0 0.0
    %1196 = vmatprep.subr.mxu0 0.0
    %1197 = vmatpush1.msra.mxu0 0.0
    %1198 = vmatprep.subr.mxu0 0.0
    %1199 = vmatpush1.msra.mxu0 0.0
    %1200 = vmatprep.subr.mxu0 0.0
    %1201 = vmatpush1.msra.mxu0 0.0
    %1202 = vmatprep.subr.mxu0 0.0
    %1203 = vmatpush1.msra.mxu0 0.0
    %1204 = vmatprep.subr.mxu0 0.0
    %1205 = vmatpush1.msra.mxu0 0.0
    %1206 = vmatprep.subr.mxu0 0.0
    %1207 = vmatpush1.msra.mxu0 0.0
    %1208 = vmatprep.subr.mxu0 0.0
    %1209 = vmatpush1.msra.mxu0 0.0
    %1210 = vmatprep.subr.mxu0 0.0
    %1211 = vmatpush1.msra.mxu0 0.0
    %1212 = vmatprep.subr.mxu0 0.0
    %1213 = vmatpush1.msra.mxu0 0.0
    %1214 = vmatprep.subr.mxu0 0.0
    %1215 = vmatpush1.msra.mxu0 0.0
    %1216 = vmatprep.subr.mxu0 0.0
    %1217 = vmatpush1.msra.mxu0 0.0
    %1218 = vmatprep.subr.mxu0 0.0
    %1219 = vmatpush1.msra.mxu0 0.0
    %1220 = vmatprep.subr.mxu0 0.0
    %1221 = vmatpush1.msra.mxu0 0.0
    %1222 = vmatprep.subr.mxu0 0.0
    %1223 = vmatpush1.msra.mxu0 0.0
    %1224 = vmatprep.subr.mxu0 0.0
    %1225 = vmatpush1.msra.mxu0 0.0
    %1226 = vmatprep.subr.mxu0 0.0
    %1227 = vmatpush1.msra.mxu0 0.0
    %1228 = vmatprep.subr.mxu0 0.0
    %1229 = vmatpush1.msra.mxu0 0.0
    %1230 = vmatprep.subr.mxu0 0.0
    %1231 = vmatpush1.msra.mxu0 0.0
    %1232 = vmatprep.subr.mxu0 0.0
    %1233 = vmatpush1.msra.mxu0 0.0
    %1234 = vmatprep.subr.mxu0 0.0
    %1235 = vmatpush1.msra.mxu0 0.0
    %1236 = vmatprep.subr.mxu0 0.0
    %1237 = vmatpush1.msra.mxu0 0.0
    %1238 = vmatprep.subr.mxu0 0.0
    %1239 = vmatpush1.msra.mxu0 0.0
    %1240 = vmatprep.mubr.f32.mxu0 0.0
    %1241 = vmatmul.mubr.f32.gmra.mrb[0].mxu0 %v1174
    %v1242 = vpop.f32.mrb[0].mxu0
    %v1243 = vadd.f32 %v332, %v1242
    %v1244 = vpop.f32.mrb[0].mxu0
    %1245 = vdwg.mxu0
    %1247 = vrot.lane.b32.xlu0 %v1162, 96
    %v1248 = vpop.permute.xlu0 %1247
    %v1249 = vsel %vm132, %v1248, 0
    %1251 = vmatprep.subr.mxu0 0.0
    %1252 = vmatpush1.msra.mxu0 %v319
    %1253 = vmatprep.subr.mxu0 0.0
    %1254 = vmatpush1.msra.mxu0 %v320
    %1255 = vmatprep.subr.mxu0 0.0
    %1256 = vmatpush1.msra.mxu0 %v321
    %1257 = vmatprep.subr.mxu0 0.0
    %1258 = vmatpush1.msra.mxu0 %v322
    %1259 = vmatprep.subr.mxu0 0.0
    %1260 = vmatpush1.msra.mxu0 0.0
    %1261 = vmatprep.subr.mxu0 0.0
    %1262 = vmatpush1.msra.mxu0 0.0
    %1263 = vmatprep.subr.mxu0 0.0
    %1264 = vmatpush1.msra.mxu0 0.0
    %1265 = vmatprep.subr.mxu0 0.0
    %1266 = vmatpush1.msra.mxu0 0.0
    %1267 = vmatprep.subr.mxu0 0.0
    %1268 = vmatpush1.msra.mxu0 0.0
    %1269 = vmatprep.subr.mxu0 0.0
    %1270 = vmatpush1.msra.mxu0 0.0
    %1271 = vmatprep.subr.mxu0 0.0
    %1272 = vmatpush1.msra.mxu0 0.0
    %1273 = vmatprep.subr.mxu0 0.0
    %1274 = vmatpush1.msra.mxu0 0.0
    %1275 = vmatprep.subr.mxu0 0.0
    %1276 = vmatpush1.msra.mxu0 0.0
    %1277 = vmatprep.subr.mxu0 0.0
    %1278 = vmatpush1.msra.mxu0 0.0
    %1279 = vmatprep.subr.mxu0 0.0
    %1280 = vmatpush1.msra.mxu0 0.0
    %1281 = vmatprep.subr.mxu0 0.0
    %1282 = vmatpush1.msra.mxu0 0.0
    %1283 = vmatprep.subr.mxu0 0.0
    %1284 = vmatpush1.msra.mxu0 0.0
    %1285 = vmatprep.subr.mxu0 0.0
    %1286 = vmatpush1.msra.mxu0 0.0
    %1287 = vmatprep.subr.mxu0 0.0
    %1288 = vmatpush1.msra.mxu0 0.0
    %1289 = vmatprep.subr.mxu0 0.0
    %1290 = vmatpush1.msra.mxu0 0.0
    %1291 = vmatprep.subr.mxu0 0.0
    %1292 = vmatpush1.msra.mxu0 0.0
    %1293 = vmatprep.subr.mxu0 0.0
    %1294 = vmatpush1.msra.mxu0 0.0
    %1295 = vmatprep.subr.mxu0 0.0
    %1296 = vmatpush1.msra.mxu0 0.0
    %1297 = vmatprep.subr.mxu0 0.0
    %1298 = vmatpush1.msra.mxu0 0.0
    %1299 = vmatprep.subr.mxu0 0.0
    %1300 = vmatpush1.msra.mxu0 0.0
    %1301 = vmatprep.subr.mxu0 0.0
    %1302 = vmatpush1.msra.mxu0 0.0
    %1303 = vmatprep.subr.mxu0 0.0
    %1304 = vmatpush1.msra.mxu0 0.0
    %1305 = vmatprep.subr.mxu0 0.0
    %1306 = vmatpush1.msra.mxu0 0.0
    %1307 = vmatprep.subr.mxu0 0.0
    %1308 = vmatpush1.msra.mxu0 0.0
    %1309 = vmatprep.subr.mxu0 0.0
    %1310 = vmatpush1.msra.mxu0 0.0
    %1311 = vmatprep.subr.mxu0 0.0
    %1312 = vmatpush1.msra.mxu0 0.0
    %1313 = vmatprep.subr.mxu0 0.0
    %1314 = vmatpush1.msra.mxu0 0.0
    %1315 = vmatprep.mubr.f32.mxu0 0.0
    %1316 = vmatmul.mubr.f32.gmra.mrb[0].mxu0 %v1249
    %v1317 = vpop.f32.mrb[0].mxu0
    %v1318 = vadd.f32 %v411, %v1317
    %v1319 = vpop.f32.mrb[0].mxu0
    %1320 = vdwg.mxu0
    %v1321 = vadd.f32 %v1168, %v1243
    %v1322 = vxor.u32 %v1321, 2147483648
    %v1323 = vmul.f32 %v1322, 1.442695
    %v1324 = vpow.pop %v1323
    %v1325 = vadd.f32 %v1324, 1.0
    %v1326 = vrcp.pop %v1325
    %v1327 = vmul.f32 1.0, %v1326
    %1329 = vrot.lane.b32.xlu0 %v1243, 64
    %v1330 = vpop.permute.xlu0 %1329
    %v1332 = vmul.f32 %v1327, %v1330
    %1334 = vrot.lane.b32.xlu0 %v1332, 64
    %v1335 = vpop.permute.xlu0 %1334
    %v1337 = vadd.f32 %v1168, %v1335
    %v1338 = vtanh.pop %v1337
    %v1339 = vsub.f32 1.0, %v1327
    %1341 = vrot.lane.b32.xlu0 %v1338, 96
    %v1342 = vpop.permute.xlu0 %1341
    %v1344 = vmul.f32 %v1339, %v1342
    %v1345 = vmul.f32 %v1327, %v1136
    %v1346 = vadd.f32 %v1344, %v1345
    %v1347 = vadd.f32 %v1170, %v1318
    %v1348 = vxor.u32 %v1347, 2147483648
    %v1349 = vmul.f32 %v1348, 1.442695
    %v1350 = vpow.pop %v1349
    %v1351 = vadd.f32 %v1350, 1.0
    %v1352 = vrcp.pop %v1351
    %v1353 = vmul.f32 1.0, %v1352
    %1355 = vrot.lane.b32.xlu0 %v1318, 64
    %v1356 = vpop.permute.xlu0 %1355
    %v1358 = vmul.f32 %v1353, %v1356
    %1360 = vrot.lane.b32.xlu0 %v1358, 64
    %v1361 = vpop.permute.xlu0 %1360
    %v1363 = vadd.f32 %v1170, %v1361
    %v1364 = vtanh.pop %v1363
    %v1365 = vsub.f32 1.0, %v1353
    %1367 = vrot.lane.b32.xlu0 %v1364, 96
    %v1368 = vpop.permute.xlu0 %1367
    %v1370 = vmul.f32 %v1365, %v1368
    %v1371 = vmul.f32 %v1353, %v1162
    %v1372 = vadd.f32 %v1370, %v1371
    %v1373 = vmax.f32 %v1163, %v1346
    %v1374 = vmax.f32 %v1164, %v1372
    %v1375 = vadd.f32 %v1165, %v1346
    %v1376 = vadd.f32 %v1166, %v1372
    %s1377 = scalar_lea.vmem [#allocation2], 40
    %v1378 = vld [vmem:[%s1377] sm:$0xff]
    %s1379 = scalar_lea.vmem [#allocation3], 16
    %v1380 = vld [vmem:[%s1379] sm:$0xff]
    %1382 = vrot.lane.b32.xlu0 %v1346, 96
    %v1383 = vpop.permute.xlu0 %1382
    %v1384 = vsel %vm132, %v1383, 0
    %1386 = vmatprep.subr.mxu0 0.0
    %1387 = vmatpush1.msra.mxu0 %v315
    %1388 = vmatprep.subr.mxu0 0.0
    %1389 = vmatpush1.msra.mxu0 %v316
    %1390 = vmatprep.subr.mxu0 0.0
    %1391 = vmatpush1.msra.mxu0 %v317
    %1392 = vmatprep.subr.mxu0 0.0
    %1393 = vmatpush1.msra.mxu0 %v318
    %1394 = vmatprep.subr.mxu0 0.0
    %1395 = vmatpush1.msra.mxu0 0.0
    %1396 = vmatprep.subr.mxu0 0.0
    %1397 = vmatpush1.msra.mxu0 0.0
    %1398 = vmatprep.subr.mxu0 0.0
    %1399 = vmatpush1.msra.mxu0 0.0
    %1400 = vmatprep.subr.mxu0 0.0
    %1401 = vmatpush1.msra.mxu0 0.0
    %1402 = vmatprep.subr.mxu0 0.0
    %1403 = vmatpush1.msra.mxu0 0.0
    %1404 = vmatprep.subr.mxu0 0.0
    %1405 = vmatpush1.msra.mxu0 0.0
    %1406 = vmatprep.subr.mxu0 0.0
    %1407 = vmatpush1.msra.mxu0 0.0
    %1408 = vmatprep.subr.mxu0 0.0
    %1409 = vmatpush1.msra.mxu0 0.0
    %1410 = vmatprep.subr.mxu0 0.0
    %1411 = vmatpush1.msra.mxu0 0.0
    %1412 = vmatprep.subr.mxu0 0.0
    %1413 = vmatpush1.msra.mxu0 0.0
    %1414 = vmatprep.subr.mxu0 0.0
    %1415 = vmatpush1.msra.mxu0 0.0
    %1416 = vmatprep.subr.mxu0 0.0
    %1417 = vmatpush1.msra.mxu0 0.0
    %1418 = vmatprep.subr.mxu0 0.0
    %1419 = vmatpush1.msra.mxu0 0.0
    %1420 = vmatprep.subr.mxu0 0.0
    %1421 = vmatpush1.msra.mxu0 0.0
    %1422 = vmatprep.subr.mxu0 0.0
    %1423 = vmatpush1.msra.mxu0 0.0
    %1424 = vmatprep.subr.mxu0 0.0
    %1425 = vmatpush1.msra.mxu0 0.0
    %1426 = vmatprep.subr.mxu0 0.0
    %1427 = vmatpush1.msra.mxu0 0.0
    %1428 = vmatprep.subr.mxu0 0.0
    %1429 = vmatpush1.msra.mxu0 0.0
    %1430 = vmatprep.subr.mxu0 0.0
    %1431 = vmatpush1.msra.mxu0 0.0
    %1432 = vmatprep.subr.mxu0 0.0
    %1433 = vmatpush1.msra.mxu0 0.0
    %1434 = vmatprep.subr.mxu0 0.0
    %1435 = vmatpush1.msra.mxu0 0.0
    %1436 = vmatprep.subr.mxu0 0.0
    %1437 = vmatpush1.msra.mxu0 0.0
    %1438 = vmatprep.subr.mxu0 0.0
    %1439 = vmatpush1.msra.mxu0 0.0
    %1440 = vmatprep.subr.mxu0 0.0
    %1441 = vmatpush1.msra.mxu0 0.0
    %1442 = vmatprep.subr.mxu0 0.0
    %1443 = vmatpush1.msra.mxu0 0.0
    %1444 = vmatprep.subr.mxu0 0.0
    %1445 = vmatpush1.msra.mxu0 0.0
    %1446 = vmatprep.subr.mxu0 0.0
    %1447 = vmatpush1.msra.mxu0 0.0
    %1448 = vmatprep.subr.mxu0 0.0
    %1449 = vmatpush1.msra.mxu0 0.0
    %1450 = vmatprep.mubr.f32.mxu0 0.0
    %1451 = vmatmul.mubr.f32.gmra.mrb[0].mxu0 %v1384
    %v1452 = vpop.f32.mrb[0].mxu0
    %v1453 = vadd.f32 %v332, %v1452
    %v1454 = vpop.f32.mrb[0].mxu0
    %1455 = vdwg.mxu0
    %1457 = vrot.lane.b32.xlu0 %v1372, 96
    %v1458 = vpop.permute.xlu0 %1457
    %v1459 = vsel %vm132, %v1458, 0
    %1461 = vmatprep.subr.mxu0 0.0
    %1462 = vmatpush1.msra.mxu0 %v319
    %1463 = vmatprep.subr.mxu0 0.0
    %1464 = vmatpush1.msra.mxu0 %v320
    %1465 = vmatprep.subr.mxu0 0.0
    %1466 = vmatpush1.msra.mxu0 %v321
    %1467 = vmatprep.subr.mxu0 0.0
    %1468 = vmatpush1.msra.mxu0 %v322
    %1469 = vmatprep.subr.mxu0 0.0
    %1470 = vmatpush1.msra.mxu0 0.0
    %1471 = vmatprep.subr.mxu0 0.0
    %1472 = vmatpush1.msra.mxu0 0.0
    %1473 = vmatprep.subr.mxu0 0.0
    %1474 = vmatpush1.msra.mxu0 0.0
    %1475 = vmatprep.subr.mxu0 0.0
    %1476 = vmatpush1.msra.mxu0 0.0
    %1477 = vmatprep.subr.mxu0 0.0
    %1478 = vmatpush1.msra.mxu0 0.0
    %1479 = vmatprep.subr.mxu0 0.0
    %1480 = vmatpush1.msra.mxu0 0.0
    %1481 = vmatprep.subr.mxu0 0.0
    %1482 = vmatpush1.msra.mxu0 0.0
    %1483 = vmatprep.subr.mxu0 0.0
    %1484 = vmatpush1.msra.mxu0 0.0
    %1485 = vmatprep.subr.mxu0 0.0
    %1486 = vmatpush1.msra.mxu0 0.0
    %1487 = vmatprep.subr.mxu0 0.0
    %1488 = vmatpush1.msra.mxu0 0.0
    %1489 = vmatprep.subr.mxu0 0.0
    %1490 = vmatpush1.msra.mxu0 0.0
    %1491 = vmatprep.subr.mxu0 0.0
    %1492 = vmatpush1.msra.mxu0 0.0
    %1493 = vmatprep.subr.mxu0 0.0
    %1494 = vmatpush1.msra.mxu0 0.0
    %1495 = vmatprep.subr.mxu0 0.0
    %1496 = vmatpush1.msra.mxu0 0.0
    %1497 = vmatprep.subr.mxu0 0.0
    %1498 = vmatpush1.msra.mxu0 0.0
    %1499 = vmatprep.subr.mxu0 0.0
    %1500 = vmatpush1.msra.mxu0 0.0
    %1501 = vmatprep.subr.mxu0 0.0
    %1502 = vmatpush1.msra.mxu0 0.0
    %1503 = vmatprep.subr.mxu0 0.0
    %1504 = vmatpush1.msra.mxu0 0.0
    %1505 = vmatprep.subr.mxu0 0.0
    %1506 = vmatpush1.msra.mxu0 0.0
    %1507 = vmatprep.subr.mxu0 0.0
    %1508 = vmatpush1.msra.mxu0 0.0
    %1509 = vmatprep.subr.mxu0 0.0
    %1510 = vmatpush1.msra.mxu0 0.0
    %1511 = vmatprep.subr.mxu0 0.0
    %1512 = vmatpush1.msra.mxu0 0.0
    %1513 = vmatprep.subr.mxu0 0.0
    %1514 = vmatpush1.msra.mxu0 0.0
    %1515 = vmatprep.subr.mxu0 0.0
    %1516 = vmatpush1.msra.mxu0 0.0
    %1517 = vmatprep.subr.mxu0 0.0
    %1518 = vmatpush1.msra.mxu0 0.0
    %1519 = vmatprep.subr.mxu0 0.0
    %1520 = vmatpush1.msra.mxu0 0.0
    %1521 = vmatprep.subr.mxu0 0.0
    %1522 = vmatpush1.msra.mxu0 0.0
    %1523 = vmatprep.subr.mxu0 0.0
    %1524 = vmatpush1.msra.mxu0 0.0
    %1525 = vmatprep.mubr.f32.mxu0 0.0
    %1526 = vmatmul.mubr.f32.gmra.mrb[0].mxu0 %v1459
    %v1527 = vpop.f32.mrb[0].mxu0
    %v1528 = vadd.f32 %v411, %v1527
    %v1529 = vpop.f32.mrb[0].mxu0
    %1530 = vdwg.mxu0
    %v1531 = vadd.f32 %v1378, %v1453
    %v1532 = vxor.u32 %v1531, 2147483648
    %v1533 = vmul.f32 %v1532, 1.442695
    %v1534 = vpow.pop %v1533
    %v1535 = vadd.f32 %v1534, 1.0
    %v1536 = vrcp.pop %v1535
    %v1537 = vmul.f32 1.0, %v1536
    %1539 = vrot.lane.b32.xlu0 %v1453, 64
    %v1540 = vpop.permute.xlu0 %1539
    %v1542 = vmul.f32 %v1537, %v1540
    %1544 = vrot.lane.b32.xlu0 %v1542, 64
    %v1545 = vpop.permute.xlu0 %1544
    %v1547 = vadd.f32 %v1378, %v1545
    %v1548 = vtanh.pop %v1547
    %v1549 = vsub.f32 1.0, %v1537
    %1551 = vrot.lane.b32.xlu0 %v1548, 96
    %v1552 = vpop.permute.xlu0 %1551
    %v1554 = vmul.f32 %v1549, %v1552
    %v1555 = vmul.f32 %v1537, %v1346
    %v1556 = vadd.f32 %v1554, %v1555
    %v1557 = vadd.f32 %v1380, %v1528
    %v1558 = vxor.u32 %v1557, 2147483648
    %v1559 = vmul.f32 %v1558, 1.442695
    %v1560 = vpow.pop %v1559
    %v1561 = vadd.f32 %v1560, 1.0
    %v1562 = vrcp.pop %v1561
    %v1563 = vmul.f32 1.0, %v1562
    %1565 = vrot.lane.b32.xlu0 %v1528, 64
    %v1566 = vpop.permute.xlu0 %1565
    %v1568 = vmul.f32 %v1563, %v1566
    %1570 = vrot.lane.b32.xlu0 %v1568, 64
    %v1571 = vpop.permute.xlu0 %1570
    %v1573 = vadd.f32 %v1380, %v1571
    %v1574 = vtanh.pop %v1573
    %v1575 = vsub.f32 1.0, %v1563
    %1577 = vrot.lane.b32.xlu0 %v1574, 96
    %v1578 = vpop.permute.xlu0 %1577
    %v1580 = vmul.f32 %v1575, %v1578
    %v1581 = vmul.f32 %v1563, %v1372
    %v1582 = vadd.f32 %v1580, %v1581
    %v1583 = vmax.f32 %v1373, %v1556
    %v1584 = vmax.f32 %v1374, %v1582
    %v1585 = vadd.f32 %v1375, %v1556
    %v1586 = vadd.f32 %v1376, %v1582
    %s1587 = scalar_lea.vmem [#allocation2], 48
    %v1588 = vld [vmem:[%s1587] sm:$0xff]
    %s1589 = scalar_lea.vmem [#allocation3], 8
    %v1590 = vld [vmem:[%s1589] sm:$0xff]
    %1592 = vrot.lane.b32.xlu0 %v1556, 96
    %v1593 = vpop.permute.xlu0 %1592
    %v1594 = vsel %vm132, %v1593, 0
    %1596 = vmatprep.subr.mxu0 0.0
    %1597 = vmatpush1.msra.mxu0 %v315
    %1598 = vmatprep.subr.mxu0 0.0
    %1599 = vmatpush1.msra.mxu0 %v316
    %1600 = vmatprep.subr.mxu0 0.0
    %1601 = vmatpush1.msra.mxu0 %v317
    %1602 = vmatprep.subr.mxu0 0.0
    %1603 = vmatpush1.msra.mxu0 %v318
    %1604 = vmatprep.subr.mxu0 0.0
    %1605 = vmatpush1.msra.mxu0 0.0
    %1606 = vmatprep.subr.mxu0 0.0
    %1607 = vmatpush1.msra.mxu0 0.0
    %1608 = vmatprep.subr.mxu0 0.0
    %1609 = vmatpush1.msra.mxu0 0.0
    %1610 = vmatprep.subr.mxu0 0.0
    %1611 = vmatpush1.msra.mxu0 0.0
    %1612 = vmatprep.subr.mxu0 0.0
    %1613 = vmatpush1.msra.mxu0 0.0
    %1614 = vmatprep.subr.mxu0 0.0
    %1615 = vmatpush1.msra.mxu0 0.0
    %1616 = vmatprep.subr.mxu0 0.0
    %1617 = vmatpush1.msra.mxu0 0.0
    %1618 = vmatprep.subr.mxu0 0.0
    %1619 = vmatpush1.msra.mxu0 0.0
    %1620 = vmatprep.subr.mxu0 0.0
    %1621 = vmatpush1.msra.mxu0 0.0
    %1622 = vmatprep.subr.mxu0 0.0
    %1623 = vmatpush1.msra.mxu0 0.0
    %1624 = vmatprep.subr.mxu0 0.0
    %1625 = vmatpush1.msra.mxu0 0.0
    %1626 = vmatprep.subr.mxu0 0.0
    %1627 = vmatpush1.msra.mxu0 0.0
    %1628 = vmatprep.subr.mxu0 0.0
    %1629 = vmatpush1.msra.mxu0 0.0
    %1630 = vmatprep.subr.mxu0 0.0
    %1631 = vmatpush1.msra.mxu0 0.0
    %1632 = vmatprep.subr.mxu0 0.0
    %1633 = vmatpush1.msra.mxu0 0.0
    %1634 = vmatprep.subr.mxu0 0.0
    %1635 = vmatpush1.msra.mxu0 0.0
    %1636 = vmatprep.subr.mxu0 0.0
    %1637 = vmatpush1.msra.mxu0 0.0
    %1638 = vmatprep.subr.mxu0 0.0
    %1639 = vmatpush1.msra.mxu0 0.0
    %1640 = vmatprep.subr.mxu0 0.0
    %1641 = vmatpush1.msra.mxu0 0.0
    %1642 = vmatprep.subr.mxu0 0.0
    %1643 = vmatpush1.msra.mxu0 0.0
    %1644 = vmatprep.subr.mxu0 0.0
    %1645 = vmatpush1.msra.mxu0 0.0
    %1646 = vmatprep.subr.mxu0 0.0
    %1647 = vmatpush1.msra.mxu0 0.0
    %1648 = vmatprep.subr.mxu0 0.0
    %1649 = vmatpush1.msra.mxu0 0.0
    %1650 = vmatprep.subr.mxu0 0.0
    %1651 = vmatpush1.msra.mxu0 0.0
    %1652 = vmatprep.subr.mxu0 0.0
    %1653 = vmatpush1.msra.mxu0 0.0
    %1654 = vmatprep.subr.mxu0 0.0
    %1655 = vmatpush1.msra.mxu0 0.0
    %1656 = vmatprep.subr.mxu0 0.0
    %1657 = vmatpush1.msra.mxu0 0.0
    %1658 = vmatprep.subr.mxu0 0.0
    %1659 = vmatpush1.msra.mxu0 0.0
    %1660 = vmatprep.mubr.f32.mxu0 0.0
    %1661 = vmatmul.mubr.f32.gmra.mrb[0].mxu0 %v1594
    %v1662 = vpop.f32.mrb[0].mxu0
    %v1663 = vadd.f32 %v332, %v1662
    %v1664 = vpop.f32.mrb[0].mxu0
    %1665 = vdwg.mxu0
    %1667 = vrot.lane.b32.xlu0 %v1582, 96
    %v1668 = vpop.permute.xlu0 %1667
    %v1669 = vsel %vm132, %v1668, 0
    %1671 = vmatprep.subr.mxu0 0.0
    %1672 = vmatpush1.msra.mxu0 %v319
    %1673 = vmatprep.subr.mxu0 0.0
    %1674 = vmatpush1.msra.mxu0 %v320
    %1675 = vmatprep.subr.mxu0 0.0
    %1676 = vmatpush1.msra.mxu0 %v321
    %1677 = vmatprep.subr.mxu0 0.0
    %1678 = vmatpush1.msra.mxu0 %v322
    %1679 = vmatprep.subr.mxu0 0.0
    %1680 = vmatpush1.msra.mxu0 0.0
    %1681 = vmatprep.subr.mxu0 0.0
    %1682 = vmatpush1.msra.mxu0 0.0
    %1683 = vmatprep.subr.mxu0 0.0
    %1684 = vmatpush1.msra.mxu0 0.0
    %1685 = vmatprep.subr.mxu0 0.0
    %1686 = vmatpush1.msra.mxu0 0.0
    %1687 = vmatprep.subr.mxu0 0.0
    %1688 = vmatpush1.msra.mxu0 0.0
    %1689 = vmatprep.subr.mxu0 0.0
    %1690 = vmatpush1.msra.mxu0 0.0
    %1691 = vmatprep.subr.mxu0 0.0
    %1692 = vmatpush1.msra.mxu0 0.0
    %1693 = vmatprep.subr.mxu0 0.0
    %1694 = vmatpush1.msra.mxu0 0.0
    %1695 = vmatprep.subr.mxu0 0.0
    %1696 = vmatpush1.msra.mxu0 0.0
    %1697 = vmatprep.subr.mxu0 0.0
    %1698 = vmatpush1.msra.mxu0 0.0
    %1699 = vmatprep.subr.mxu0 0.0
    %1700 = vmatpush1.msra.mxu0 0.0
    %1701 = vmatprep.subr.mxu0 0.0
    %1702 = vmatpush1.msra.mxu0 0.0
    %1703 = vmatprep.subr.mxu0 0.0
    %1704 = vmatpush1.msra.mxu0 0.0
    %1705 = vmatprep.subr.mxu0 0.0
    %1706 = vmatpush1.msra.mxu0 0.0
    %1707 = vmatprep.subr.mxu0 0.0
    %1708 = vmatpush1.msra.mxu0 0.0
    %1709 = vmatprep.subr.mxu0 0.0
    %1710 = vmatpush1.msra.mxu0 0.0
    %1711 = vmatprep.subr.mxu0 0.0
    %1712 = vmatpush1.msra.mxu0 0.0
    %1713 = vmatprep.subr.mxu0 0.0
    %1714 = vmatpush1.msra.mxu0 0.0
    %1715 = vmatprep.subr.mxu0 0.0
    %1716 = vmatpush1.msra.mxu0 0.0
    %1717 = vmatprep.subr.mxu0 0.0
    %1718 = vmatpush1.msra.mxu0 0.0
    %1719 = vmatprep.subr.mxu0 0.0
    %1720 = vmatpush1.msra.mxu0 0.0
    %1721 = vmatprep.subr.mxu0 0.0
    %1722 = vmatpush1.msra.mxu0 0.0
    %1723 = vmatprep.subr.mxu0 0.0
    %1724 = vmatpush1.msra.mxu0 0.0
    %1725 = vmatprep.subr.mxu0 0.0
    %1726 = vmatpush1.msra.mxu0 0.0
    %1727 = vmatprep.subr.mxu0 0.0
    %1728 = vmatpush1.msra.mxu0 0.0
    %1729 = vmatprep.subr.mxu0 0.0
    %1730 = vmatpush1.msra.mxu0 0.0
    %1731 = vmatprep.subr.mxu0 0.0
    %1732 = vmatpush1.msra.mxu0 0.0
    %1733 = vmatprep.subr.mxu0 0.0
    %1734 = vmatpush1.msra.mxu0 0.0
    %1735 = vmatprep.mubr.f32.mxu0 0.0
    %1736 = vmatmul.mubr.f32.gmra.mrb[0].mxu0 %v1669
    %v1737 = vpop.f32.mrb[0].mxu0
    %v1738 = vadd.f32 %v411, %v1737
    %v1739 = vpop.f32.mrb[0].mxu0
    %1740 = vdwg.mxu0
    %v1741 = vadd.f32 %v1588, %v1663
    %v1742 = vxor.u32 %v1741, 2147483648
    %v1743 = vmul.f32 %v1742, 1.442695
    %v1744 = vpow.pop %v1743
    %v1745 = vadd.f32 %v1744, 1.0
    %v1746 = vrcp.pop %v1745
    %v1747 = vmul.f32 1.0, %v1746
    %1749 = vrot.lane.b32.xlu0 %v1663, 64
    %v1750 = vpop.permute.xlu0 %1749
    %v1752 = vmul.f32 %v1747, %v1750
    %1754 = vrot.lane.b32.xlu0 %v1752, 64
    %v1755 = vpop.permute.xlu0 %1754
    %v1757 = vadd.f32 %v1588, %v1755
    %v1758 = vtanh.pop %v1757
    %v1759 = vsub.f32 1.0, %v1747
    %1761 = vrot.lane.b32.xlu0 %v1758, 96
    %v1762 = vpop.permute.xlu0 %1761
    %v1764 = vmul.f32 %v1759, %v1762
    %v1765 = vmul.f32 %v1747, %v1556
    %v1766 = vadd.f32 %v1764, %v1765
    %v1767 = vadd.f32 %v1590, %v1738
    %v1768 = vxor.u32 %v1767, 2147483648
    %v1769 = vmul.f32 %v1768, 1.442695
    %v1770 = vpow.pop %v1769
    %v1771 = vadd.f32 %v1770, 1.0
    %v1772 = vrcp.pop %v1771
    %v1773 = vmul.f32 1.0, %v1772
    %1775 = vrot.lane.b32.xlu0 %v1738, 64
    %v1776 = vpop.permute.xlu0 %1775
    %v1778 = vmul.f32 %v1773, %v1776
    %1780 = vrot.lane.b32.xlu0 %v1778, 64
    %v1781 = vpop.permute.xlu0 %1780
    %v1783 = vadd.f32 %v1590, %v1781
    %v1784 = vtanh.pop %v1783
    %v1785 = vsub.f32 1.0, %v1773
    %1787 = vrot.lane.b32.xlu0 %v1784, 96
    %v1788 = vpop.permute.xlu0 %1787
    %v1790 = vmul.f32 %v1785, %v1788
    %v1791 = vmul.f32 %v1773, %v1582
    %v1792 = vadd.f32 %v1790, %v1791
    %v1793 = vmax.f32 %v1583, %v1766
    %v1794 = vmax.f32 %v1584, %v1792
    %v1795 = vadd.f32 %v1585, %v1766
    %v1796 = vadd.f32 %v1586, %v1792
    %s1797 = scalar_lea.vmem [#allocation2], 56
    %v1798 = vld [vmem:[%s1797] sm:$0xff]
    %v1799 = vld [vmem:[#allocation3] sm:$0xff]
    %1801 = vrot.lane.b32.xlu0 %v1766, 96
    %v1802 = vpop.permute.xlu0 %1801
    %v1803 = vsel %vm132, %v1802, 0
    %1805 = vmatprep.subr.mxu0 0.0
    %1806 = vmatpush1.msra.mxu0 %v315
    %1807 = vmatprep.subr.mxu0 0.0
    %1808 = vmatpush1.msra.mxu0 %v316
    %1809 = vmatprep.subr.mxu0 0.0
    %1810 = vmatpush1.msra.mxu0 %v317
    %1811 = vmatprep.subr.mxu0 0.0
    %1812 = vmatpush1.msra.mxu0 %v318
    %1813 = vmatprep.subr.mxu0 0.0
    %1814 = vmatpush1.msra.mxu0 0.0
    %1815 = vmatprep.subr.mxu0 0.0
    %1816 = vmatpush1.msra.mxu0 0.0
    %1817 = vmatprep.subr.mxu0 0.0
    %1818 = vmatpush1.msra.mxu0 0.0
    %1819 = vmatprep.subr.mxu0 0.0
    %1820 = vmatpush1.msra.mxu0 0.0
    %1821 = vmatprep.subr.mxu0 0.0
    %1822 = vmatpush1.msra.mxu0 0.0
    %1823 = vmatprep.subr.mxu0 0.0
    %1824 = vmatpush1.msra.mxu0 0.0
    %1825 = vmatprep.subr.mxu0 0.0
    %1826 = vmatpush1.msra.mxu0 0.0
    %1827 = vmatprep.subr.mxu0 0.0
    %1828 = vmatpush1.msra.mxu0 0.0
    %1829 = vmatprep.subr.mxu0 0.0
    %1830 = vmatpush1.msra.mxu0 0.0
    %1831 = vmatprep.subr.mxu0 0.0
    %1832 = vmatpush1.msra.mxu0 0.0
    %1833 = vmatprep.subr.mxu0 0.0
    %1834 = vmatpush1.msra.mxu0 0.0
    %1835 = vmatprep.subr.mxu0 0.0
    %1836 = vmatpush1.msra.mxu0 0.0
    %1837 = vmatprep.subr.mxu0 0.0
    %1838 = vmatpush1.msra.mxu0 0.0
    %1839 = vmatprep.subr.mxu0 0.0
    %1840 = vmatpush1.msra.mxu0 0.0
    %1841 = vmatprep.subr.mxu0 0.0
    %1842 = vmatpush1.msra.mxu0 0.0
    %1843 = vmatprep.subr.mxu0 0.0
    %1844 = vmatpush1.msra.mxu0 0.0
    %1845 = vmatprep.subr.mxu0 0.0
    %1846 = vmatpush1.msra.mxu0 0.0
    %1847 = vmatprep.subr.mxu0 0.0
    %1848 = vmatpush1.msra.mxu0 0.0
    %1849 = vmatprep.subr.mxu0 0.0
    %1850 = vmatpush1.msra.mxu0 0.0
    %1851 = vmatprep.subr.mxu0 0.0
    %1852 = vmatpush1.msra.mxu0 0.0
    %1853 = vmatprep.subr.mxu0 0.0
    %1854 = vmatpush1.msra.mxu0 0.0
    %1855 = vmatprep.subr.mxu0 0.0
    %1856 = vmatpush1.msra.mxu0 0.0
    %1857 = vmatprep.subr.mxu0 0.0
    %1858 = vmatpush1.msra.mxu0 0.0
    %1859 = vmatprep.subr.mxu0 0.0
    %1860 = vmatpush1.msra.mxu0 0.0
    %1861 = vmatprep.subr.mxu0 0.0
    %1862 = vmatpush1.msra.mxu0 0.0
    %1863 = vmatprep.subr.mxu0 0.0
    %1864 = vmatpush1.msra.mxu0 0.0
    %1865 = vmatprep.subr.mxu0 0.0
    %1866 = vmatpush1.msra.mxu0 0.0
    %1867 = vmatprep.subr.mxu0 0.0
    %1868 = vmatpush1.msra.mxu0 0.0
    %1869 = vmatprep.mubr.f32.mxu0 0.0
    %1870 = vmatmul.mubr.f32.gmra.mrb[0].mxu0 %v1803
    %v1871 = vpop.f32.mrb[0].mxu0
    %v1872 = vadd.f32 %v332, %v1871
    %v1873 = vpop.f32.mrb[0].mxu0
    %1874 = vdwg.mxu0
    %1876 = vrot.lane.b32.xlu0 %v1792, 96
    %v1877 = vpop.permute.xlu0 %1876
    %v1878 = vsel %vm132, %v1877, 0
    %1880 = vmatprep.subr.mxu0 0.0
    %1881 = vmatpush1.msra.mxu0 %v319
    %1882 = vmatprep.subr.mxu0 0.0
    %1883 = vmatpush1.msra.mxu0 %v320
    %1884 = vmatprep.subr.mxu0 0.0
    %1885 = vmatpush1.msra.mxu0 %v321
    %1886 = vmatprep.subr.mxu0 0.0
    %1887 = vmatpush1.msra.mxu0 %v322
    %1888 = vmatprep.subr.mxu0 0.0
    %1889 = vmatpush1.msra.mxu0 0.0
    %1890 = vmatprep.subr.mxu0 0.0
    %1891 = vmatpush1.msra.mxu0 0.0
    %1892 = vmatprep.subr.mxu0 0.0
    %1893 = vmatpush1.msra.mxu0 0.0
    %1894 = vmatprep.subr.mxu0 0.0
    %1895 = vmatpush1.msra.mxu0 0.0
    %1896 = vmatprep.subr.mxu0 0.0
    %1897 = vmatpush1.msra.mxu0 0.0
    %1898 = vmatprep.subr.mxu0 0.0
    %1899 = vmatpush1.msra.mxu0 0.0
    %1900 = vmatprep.subr.mxu0 0.0
    %1901 = vmatpush1.msra.mxu0 0.0
    %1902 = vmatprep.subr.mxu0 0.0
    %1903 = vmatpush1.msra.mxu0 0.0
    %1904 = vmatprep.subr.mxu0 0.0
    %1905 = vmatpush1.msra.mxu0 0.0
    %1906 = vmatprep.subr.mxu0 0.0
    %1907 = vmatpush1.msra.mxu0 0.0
    %1908 = vmatprep.subr.mxu0 0.0
    %1909 = vmatpush1.msra.mxu0 0.0
    %1910 = vmatprep.subr.mxu0 0.0
    %1911 = vmatpush1.msra.mxu0 0.0
    %1912 = vmatprep.subr.mxu0 0.0
    %1913 = vmatpush1.msra.mxu0 0.0
    %1914 = vmatprep.subr.mxu0 0.0
    %1915 = vmatpush1.msra.mxu0 0.0
    %1916 = vmatprep.subr.mxu0 0.0
    %1917 = vmatpush1.msra.mxu0 0.0
    %1918 = vmatprep.subr.mxu0 0.0
    %1919 = vmatpush1.msra.mxu0 0.0
    %1920 = vmatprep.subr.mxu0 0.0
    %1921 = vmatpush1.msra.mxu0 0.0
    %1922 = vmatprep.subr.mxu0 0.0
    %1923 = vmatpush1.msra.mxu0 0.0
    %1924 = vmatprep.subr.mxu0 0.0
    %1925 = vmatpush1.msra.mxu0 0.0
    %1926 = vmatprep.subr.mxu0 0.0
    %1927 = vmatpush1.msra.mxu0 0.0
    %1928 = vmatprep.subr.mxu0 0.0
    %1929 = vmatpush1.msra.mxu0 0.0
    %1930 = vmatprep.subr.mxu0 0.0
    %1931 = vmatpush1.msra.mxu0 0.0
    %1932 = vmatprep.subr.mxu0 0.0
    %1933 = vmatpush1.msra.mxu0 0.0
    %1934 = vmatprep.subr.mxu0 0.0
    %1935 = vmatpush1.msra.mxu0 0.0
    %1936 = vmatprep.subr.mxu0 0.0
    %1937 = vmatpush1.msra.mxu0 0.0
    %1938 = vmatprep.subr.mxu0 0.0
    %1939 = vmatpush1.msra.mxu0 0.0
    %1940 = vmatprep.subr.mxu0 0.0
    %1941 = vmatpush1.msra.mxu0 0.0
    %1942 = vmatprep.subr.mxu0 0.0
    %1943 = vmatpush1.msra.mxu0 0.0
    %1944 = vmatprep.mubr.f32.mxu0 0.0
    %1945 = vmatmul.mubr.f32.gmra.mrb[0].mxu0 %v1878
    %v1946 = vpop.f32.mrb[0].mxu0
    %v1947 = vadd.f32 %v411, %v1946
    %v1948 = vpop.f32.mrb[0].mxu0
    %1949 = vdwg.mxu0
    %v1950 = vadd.f32 %v1798, %v1872
    %v1951 = vxor.u32 %v1950, 2147483648
    %v1952 = vmul.f32 %v1951, 1.442695
    %v1953 = vpow.pop %v1952
    %v1954 = vadd.f32 %v1953, 1.0
    %v1955 = vrcp.pop %v1954
    %v1956 = vmul.f32 1.0, %v1955
    %1958 = vrot.lane.b32.xlu0 %v1872, 64
    %v1959 = vpop.permute.xlu0 %1958
    %v1961 = vmul.f32 %v1956, %v1959
    %1963 = vrot.lane.b32.xlu0 %v1961, 64
    %v1964 = vpop.permute.xlu0 %1963
    %v1966 = vadd.f32 %v1798, %v1964
    %v1967 = vtanh.pop %v1966
    %v1968 = vsub.f32 1.0, %v1956
    %1970 = vrot.lane.b32.xlu0 %v1967, 96
    %v1971 = vpop.permute.xlu0 %1970
    %v1973 = vmul.f32 %v1968, %v1971
    %v1974 = vmul.f32 %v1956, %v1766
    %v1975 = vadd.f32 %v1973, %v1974
    %v1976 = vadd.f32 %v1799, %v1947
    %v1977 = vxor.u32 %v1976, 2147483648
    %v1978 = vmul.f32 %v1977, 1.442695
    %v1979 = vpow.pop %v1978
    %v1980 = vadd.f32 %v1979, 1.0
    %v1981 = vrcp.pop %v1980
    %v1982 = vmul.f32 1.0, %v1981
    %1984 = vrot.lane.b32.xlu0 %v1947, 64
    %v1985 = vpop.permute.xlu0 %1984
    %v1987 = vmul.f32 %v1982, %v1985
    %1989 = vrot.lane.b32.xlu0 %v1987, 64
    %v1990 = vpop.permute.xlu0 %1989
    %v1992 = vadd.f32 %v1799, %v1990
    %v1993 = vtanh.pop %v1992
    %v1994 = vsub.f32 1.0, %v1982
    %1996 = vrot.lane.b32.xlu0 %v1993, 96
    %v1997 = vpop.permute.xlu0 %1996
    %v1999 = vmul.f32 %v1994, %v1997
    %v2000 = vmul.f32 %v1982, %v1792
    %v2001 = vadd.f32 %v1999, %v2000
    %v2002 = vmax.f32 %v1793, %v1975
    %v2003 = vmax.f32 %v1794, %v2001
    %v2004 = vadd.f32 %v1795, %v1975
    %v2005 = vadd.f32 %v1796, %v2001
    %v2006 = vmul.f32 %v2004, 0.125
    %v2007 = vmul.f32 %v2005, 0.125
    %2009 = vrot.lane.b32.xlu0 %v2002, 96
    %v2010 = vpop.permute.xlu0 %2009
    %2013 = vrot.lane.b32.xlu0 %v2006, 32
    %v2014 = vpop.permute.xlu0 %2013
    %2017 = vrot.lane.b32.xlu0 %v2007, 64
    %v2018 = vpop.permute.xlu0 %2017
    %v2020 = vsel %vm132, %v2010, %v2003
    %vm2021 = vcmask 523264
    %v2022 = vsel %vm2021, %v2020, %v2014
    %v2023 = vsel %vm210, %v2022, %v2018
    %v2024 = vld [vmem:[%s9] sm:$0xff]
    %v2025 = vld [vmem:[%s9 + $0x8] sm:$0xff]
    %v2026 = vld [vmem:[%s9 + $0x10] sm:$0xff]
    %v2027 = vld [vmem:[%s9 + $0x18] sm:$0xff]
    %v2028 = vld [vmem:[%s9 + $0x20] sm:$0xff]
    %v2029 = vld [vmem:[%s9 + $0x28] sm:$0xff]
    %v2030 = vld [vmem:[%s9 + $0x30] sm:$0xff]
    %v2031 = vld [vmem:[%s9 + $0x38] sm:$0xff]
    %v2032 = vld [vmem:[%s9 + $0x40] sm:$0xff]
    %v2033 = vld [vmem:[%s9 + $0x48] sm:$0xff]
    %v2034 = vld [vmem:[%s9 + $0x50] sm:$0xff]
    %v2035 = vld [vmem:[%s9 + $0x58] sm:$0xff]
    %v2036 = vld [vmem:[%s9 + $0x60] sm:$0xff]
    %v2037 = vld [vmem:[%s9 + $0x68] sm:$0xff]
    %v2038 = vld [vmem:[%s9 + $0x70] sm:$0xff]
    %v2039 = vld [vmem:[%s9 + $0x78] sm:$0xff]
    %v2040 = vld [vmem:[%s10] sm:$0x1]
    %v2042 = vlaneseq
    %v2043 = vshrl.u32 %v2042, 7
    %v2044 = vsub.s32 0, %v2043
    %v2045 = vrot.slane %v2040, %v2044
    %2047 = vmatprep.subr.mxu0 0.0
    %2048 = vmatpush1.msra.mxu0 %v2024
    %2049 = vmatprep.subr.mxu0 0.0
    %2050 = vmatpush1.msra.mxu0 %v2025
    %2051 = vmatprep.subr.mxu0 0.0
    %2052 = vmatpush1.msra.mxu0 %v2026
    %2053 = vmatprep.subr.mxu0 0.0
    %2054 = vmatpush1.msra.mxu0 %v2027
    %2055 = vmatprep.subr.mxu0 0.0
    %2056 = vmatpush1.msra.mxu0 %v2028
    %2057 = vmatprep.subr.mxu0 0.0
    %2058 = vmatpush1.msra.mxu0 %v2029
    %2059 = vmatprep.subr.mxu0 0.0
    %2060 = vmatpush1.msra.mxu0 %v2030
    %2061 = vmatprep.subr.mxu0 0.0
    %2062 = vmatpush1.msra.mxu0 %v2031
    %2063 = vmatprep.subr.mxu0 0.0
    %2064 = vmatpush1.msra.mxu0 %v2032
    %2065 = vmatprep.subr.mxu0 0.0
    %2066 = vmatpush1.msra.mxu0 %v2033
    %2067 = vmatprep.subr.mxu0 0.0
    %2068 = vmatpush1.msra.mxu0 %v2034
    %2069 = vmatprep.subr.mxu0 0.0
    %2070 = vmatpush1.msra.mxu0 %v2035
    %2071 = vmatprep.subr.mxu0 0.0
    %2072 = vmatpush1.msra.mxu0 %v2036
    %2073 = vmatprep.subr.mxu0 0.0
    %2074 = vmatpush1.msra.mxu0 %v2037
    %2075 = vmatprep.subr.mxu0 0.0
    %2076 = vmatpush1.msra.mxu0 %v2038
    %2077 = vmatprep.subr.mxu0 0.0
    %2078 = vmatpush1.msra.mxu0 %v2039
    %2079 = vmatprep.subr.mxu0 0.0
    %2080 = vmatpush1.msra.mxu0 0.0
    %2081 = vmatprep.subr.mxu0 0.0
    %2082 = vmatpush1.msra.mxu0 0.0
    %2083 = vmatprep.subr.mxu0 0.0
    %2084 = vmatpush1.msra.mxu0 0.0
    %2085 = vmatprep.subr.mxu0 0.0
    %2086 = vmatpush1.msra.mxu0 0.0
    %2087 = vmatprep.subr.mxu0 0.0
    %2088 = vmatpush1.msra.mxu0 0.0
    %2089 = vmatprep.subr.mxu0 0.0
    %2090 = vmatpush1.msra.mxu0 0.0
    %2091 = vmatprep.subr.mxu0 0.0
    %2092 = vmatpush1.msra.mxu0 0.0
    %2093 = vmatprep.subr.mxu0 0.0
    %2094 = vmatpush1.msra.mxu0 0.0
    %2095 = vmatprep.subr.mxu0 0.0
    %2096 = vmatpush1.msra.mxu0 0.0
    %2097 = vmatprep.subr.mxu0 0.0
    %2098 = vmatpush1.msra.mxu0 0.0
    %2099 = vmatprep.subr.mxu0 0.0
    %2100 = vmatpush1.msra.mxu0 0.0
    %2101 = vmatprep.subr.mxu0 0.0
    %2102 = vmatpush1.msra.mxu0 0.0
    %2103 = vmatprep.subr.mxu0 0.0
    %2104 = vmatpush1.msra.mxu0 0.0
    %2105 = vmatprep.subr.mxu0 0.0
    %2106 = vmatpush1.msra.mxu0 0.0
    %2107 = vmatprep.subr.mxu0 0.0
    %2108 = vmatpush1.msra.mxu0 0.0
    %2109 = vmatprep.subr.mxu0 0.0
    %2110 = vmatpush1.msra.mxu0 0.0
    %2111 = vmatprep.mubr.f32.mxu0 0.0
    %2112 = vmatmul.mubr.f32.gmra.mrb[0].mxu0 %v2023
    %v2113 = vpop.f32.mrb[0].mxu0
    %v2114 = vadd.f32 %v2045, %v2113
    %v2115 = vpop.f32.mrb[0].mxu0
    %2116 = vdwg.mxu0
    %v2117 = vmax.f32 %v2114, 0.0
    %v2118 = vld [vmem:[%s11] sm:$0xff]
    %v2119 = vld [vmem:[%s11 + $0x8] sm:$0xff]
    %v2120 = vld [vmem:[%s11 + $0x10] sm:$0xff]
    %v2121 = vld [vmem:[%s11 + $0x18] sm:$0xff]
    %v2122 = vld [vmem:[%s12] sm:$0x1]
    %v2124 = vlaneseq
    %v2125 = vshrl.u32 %v2124, 7
    %v2126 = vsub.s32 0, %v2125
    %v2127 = vrot.slane %v2122, %v2126
    %v2130 = vsel %vm132, %v2117, 0
    %2132 = vmatprep.subr.mxu0 0.0
    %2133 = vmatpush1.msra.mxu0 %v2118
    %2134 = vmatprep.subr.mxu0 0.0
    %2135 = vmatpush1.msra.mxu0 %v2119
    %2136 = vmatprep.subr.mxu0 0.0
    %2137 = vmatpush1.msra.mxu0 %v2120
    %2138 = vmatprep.subr.mxu0 0.0
    %2139 = vmatpush1.msra.mxu0 %v2121
    %2140 = vmatprep.subr.mxu0 0.0
    %2141 = vmatpush1.msra.mxu0 0.0
    %2142 = vmatprep.subr.mxu0 0.0
    %2143 = vmatpush1.msra.mxu0 0.0
    %2144 = vmatprep.subr.mxu0 0.0
    %2145 = vmatpush1.msra.mxu0 0.0
    %2146 = vmatprep.subr.mxu0 0.0
    %2147 = vmatpush1.msra.mxu0 0.0
    %2148 = vmatprep.subr.mxu0 0.0
    %2149 = vmatpush1.msra.mxu0 0.0
    %2150 = vmatprep.subr.mxu0 0.0
    %2151 = vmatpush1.msra.mxu0 0.0
    %2152 = vmatprep.subr.mxu0 0.0
    %2153 = vmatpush1.msra.mxu0 0.0
    %2154 = vmatprep.subr.mxu0 0.0
    %2155 = vmatpush1.msra.mxu0 0.0
    %2156 = vmatprep.subr.mxu0 0.0
    %2157 = vmatpush1.msra.mxu0 0.0
    %2158 = vmatprep.subr.mxu0 0.0
    %2159 = vmatpush1.msra.mxu0 0.0
    %2160 = vmatprep.subr.mxu0 0.0
    %2161 = vmatpush1.msra.mxu0 0.0
    %2162 = vmatprep.subr.mxu0 0.0
    %2163 = vmatpush1.msra.mxu0 0.0
    %2164 = vmatprep.subr.mxu0 0.0
    %2165 = vmatpush1.msra.mxu0 0.0
    %2166 = vmatprep.subr.mxu0 0.0
    %2167 = vmatpush1.msra.mxu0 0.0
    %2168 = vmatprep.subr.mxu0 0.0
    %2169 = vmatpush1.msra.mxu0 0.0
    %2170 = vmatprep.subr.mxu0 0.0
    %2171 = vmatpush1.msra.mxu0 0.0
    %2172 = vmatprep.subr.mxu0 0.0
    %2173 = vmatpush1.msra.mxu0 0.0
    %2174 = vmatprep.subr.mxu0 0.0
    %2175 = vmatpush1.msra.mxu0 0.0
    %2176 = vmatprep.subr.mxu0 0.0
    %2177 = vmatpush1.msra.mxu0 0.0
    %2178 = vmatprep.subr.mxu0 0.0
    %2179 = vmatpush1.msra.mxu0 0.0
    %2180 = vmatprep.subr.mxu0 0.0
    %2181 = vmatpush1.msra.mxu0 0.0
    %2182 = vmatprep.subr.mxu0 0.0
    %2183 = vmatpush1.msra.mxu0 0.0
    %2184 = vmatprep.subr.mxu0 0.0
    %2185 = vmatpush1.msra.mxu0 0.0
    %2186 = vmatprep.subr.mxu0 0.0
    %2187 = vmatpush1.msra.mxu0 0.0
    %2188 = vmatprep.subr.mxu0 0.0
    %2189 = vmatpush1.msra.mxu0 0.0
    %2190 = vmatprep.subr.mxu0 0.0
    %2191 = vmatpush1.msra.mxu0 0.0
    %2192 = vmatprep.subr.mxu0 0.0
    %2193 = vmatpush1.msra.mxu0 0.0
    %2194 = vmatprep.subr.mxu0 0.0
    %2195 = vmatpush1.msra.mxu0 0.0
    %2196 = vmatprep.mubr.f32.mxu0 0.0
    %2197 = vmatmul.mubr.f32.gmra.mrb[0].mxu0 %v2130
    %v2198 = vpop.f32.mrb[0].mxu0
    %v2199 = vadd.f32 %v2127, %v2198
    %v2200 = vpop.f32.mrb[0].mxu0
    %2201 = vdwg.mxu0
    %2202 = vst [vmem:[#allocation12] sm:$0xff] %v2199
    // Predicated region
    $region70: #{tpu_custom_call.1} parent=1 // pred_check
      _
    $region71: #{tpu_custom_call.1} parent=1 // pred_check_branch
      %2204 = sbr.rel (0) target = $region73
    $region72: #{tpu_custom_call.1} parent=1 // pred_region
      %s2206 = ssub.s32 128, 128
      %2207 = vsyncadd [#allocation6], %s2206
      %s2209 = sshll.u32 [#allocation12], 4
      %s2210 = int_to_ptr.vmem [resolvable:$true] %s2209
      %2212 = dma.vmem_to_hbm [thread:$0]  %s2210, 128, %s13, [#allocation6]
    $region73: #{tpu_custom_call.1} parent=1 // pred_fallthru
      _
    // Predicated region
    $region74: #{tpu_custom_call.1} parent=1 // pred_check
      _
    $region75: #{tpu_custom_call.1} parent=1 // pred_check_branch
      %2214 = sbr.rel (0) target = $region77
    $region76: #{tpu_custom_call.1} parent=1 // pred_region
      %2215 = dma.done [#allocation6], 128
    $region77: #{tpu_custom_call.1} parent=1 // pred_fallthru
      _
    %2216 = vsyncpa [#allocation5], 1
    %2217 = vsyncpa [#allocation8], 1
    %2218 = vsyncpa [#allocation11], 1
    %2219 = vsyncpa [#allocation6], 1

</llo_original>
